<compile_context>
chip_gen: v7x
topology: tpu7x:2x2x1
jax: 0.10.0
libtpu: 0.0.40
codegen_flags: <defaults>
</compile_context>

<pallas_src>
import functools

import jax
import jax.numpy as jnp
from jax import lax
from jax.experimental import pallas as pl
from jax.experimental.pallas import tpu as pltpu

# ------------------------- small synthetic config -------------------------
HIDDEN = 128          # hidden_size
INTERMEDIATE = 256    # intermediate_size
NUM_LAYERS = 2        # num_hidden_layers
NUM_HEADS = 4         # num_attention_heads
HEAD_DIM = HIDDEN // NUM_HEADS
NUM_CHANNELS = 3
IMAGE_SIZE = 32
PATCH_SIZE = 8
LN_EPS = 1e-6
NUM_PATCHES = (IMAGE_SIZE // PATCH_SIZE) ** 2        # 16
CPP = NUM_CHANNELS * PATCH_SIZE * PATCH_SIZE         # 192
CPP_PAD = pl.cdiv(CPP, 128) * 128                    # 256 (MXU-aligned K)
IMGS_PER_BLOCK = 2                                   # tokens per grid step = 32
BATCH = 4                                            # -> grid=(2,), 2 TCs busy


# ------------------------------ math helpers ------------------------------
def _layernorm(x, w, b, eps):
    mu = jnp.mean(x, axis=-1, keepdims=True)
    var = jnp.mean((x - mu) ** 2, axis=-1, keepdims=True)
    return (x - mu) * lax.rsqrt(var + eps) * w + b


def _gelu_tanh(x):
    # matches torch.nn.functional.gelu(..., approximate='tanh')
    c = 0.7978845608028654  # sqrt(2/pi)
    return 0.5 * x * (1.0 + jnp.tanh(c * (x + 0.044715 * x * x * x)))


def _softmax(x):
    # exact normalization (f32); attention rows match torch softmax closely
    m = jnp.max(x, axis=-1, keepdims=True)
    e = jnp.exp(x - m)
    return e / jnp.sum(e, axis=-1, keepdims=True)


# ----------------------- fully fused forward kernel ------------------------
def fused_kernel(patches_ref, wemb_ref, embed_ref,
                 ln1w_ref, ln1b_ref,
                 wqkv_ref, bqkv_ref, wo_ref, bo_ref,
                 ln2w_ref, ln2b_ref,
                 w1_ref, b1_ref, w2_ref, b2_ref,
                 postw_ref, postb_ref,
                 out_ref,
                 *, num_layers, num_heads, imgs_per_block, seq_len,
                 head_dim, hidden, scale, eps):
    f32 = jnp.float32
    bf16 = jnp.bfloat16

    # ---- patch embedding: conv-as-matmul + (conv bias + position) add ----
    # patches_ref: (M, CPP_PAD) bf16 with M = imgs_per_block * seq_len
    x = jnp.dot(patches_ref[...], wemb_ref[...], preferred_element_type=f32)
    x = x + embed_ref[...]                                        # (M, D) f32

    # NOTE: at real Siglip depth (L=27) switch this static unroll to
    # lax.fori_loop with dynamic ref indexing (wqkv_ref[l], ...) to bound
    # vreg live ranges and code size; at L=2 static unroll is fine.
    for l in range(num_layers):
        # ---- self-attention block (pre-LN, residual) ----
        h = _layernorm(x, ln1w_ref[l], ln1b_ref[l], eps)          # (M, D) f32

        # fused QKV: one lane-dense (M,128)x(128,384) matmul per layer
        qkv = jnp.dot(h.astype(bf16), wqkv_ref[l],
                      preferred_element_type=f32) + bqkv_ref[l]   # (M, 3D)
        qkv16 = qkv.astype(bf16)                                  # cast once
        q16 = qkv16[:, :hidden]
        k16 = qkv16[:, hidden:2 * hidden]
        v16 = qkv16[:, 2 * hidden:]

        # per-head / per-image score+context matmuls (block-diagonal attention)
        ctx_heads = []
        for hh in range(num_heads):                               # static unroll
            cs = slice(hh * head_dim, (hh + 1) * head_dim)
            qh, kh, vh = q16[:, cs], k16[:, cs], v16[:, cs]       # (M, hd) bf16
            ctx_imgs = []
            for g in range(imgs_per_block):                       # static unroll
                rs = slice(g * seq_len, (g + 1) * seq_len)
                s = lax.dot_general(qh[rs], kh[rs],
                                    (((1,), (1,)), ((), ())),
                                    preferred_element_type=f32) * scale  # (S,S)
                p = _softmax(s)                                   # f32
                ctx_imgs.append(jnp.dot(p.astype(bf16), vh[rs],
                                        preferred_element_type=f32))  # (S, hd)
            ctx_heads.append(jnp.concatenate(ctx_imgs, axis=0)
                             if imgs_per_block > 1 else ctx_imgs[0])
        ctx = jnp.concatenate(ctx_heads, axis=1)                  # (M, D) f32

        # fused output projection: one K=128 matmul against the unsplit wo
        attn = jnp.dot(ctx.astype(bf16), wo_ref[l],
                       preferred_element_type=f32) + bo_ref[l]
        x = x + attn

        # ---- MLP block (pre-LN, residual) ----
        h2 = _layernorm(x, ln2w_ref[l], ln2b_ref[l], eps)
        h2 = jnp.dot(h2.astype(bf16), w1_ref[l],
                     preferred_element_type=f32) + b1_ref[l]
        h2 = _gelu_tanh(h2)
        h2 = jnp.dot(h2.astype(bf16), w2_ref[l],
                     preferred_element_type=f32) + b2_ref[l]
        x = x + h2

    # ---- final post-layernorm ----
    out_ref[...] = _layernorm(x, postw_ref[...], postb_ref[...], eps)


def siglip_fused_call(patches_flat, w):
    BN, CPPp = patches_flat.shape
    rows = IMGS_PER_BLOCK * NUM_PATCHES           # tokens per grid step (32)
    num_blocks = BN // rows
    D = HIDDEN

    # Weight specs: whole array, constant block index -> DMA'd once, never
    # re-issued across grid steps.  NOTE: at real Siglip sizes (D=1152, L=27,
    # v7x 64 MiB VMEM) these must become per-layer streamed blocks (layer grid
    # axis or pltpu.emit_pipeline) + pipeline_mode=pl.Buffered(1); at the toy
    # config (<1 MiB of weights) fully-resident is fine.
    def wspec(arr):
        nd = arr.ndim
        return pl.BlockSpec(arr.shape, lambda b: (0,) * nd)

    args = (patches_flat, w["w_embed"], w["embed_bias"],
            w["ln1_w"], w["ln1_b"],
            w["wqkv"], w["bqkv"], w["wo"], w["bo"],
            w["ln2_w"], w["ln2_b"],
            w["w1"], w["b1"], w["w2"], w["b2"],
            w["post_w"], w["post_b"])

    in_specs = ([pl.BlockSpec((rows, CPPp), lambda b: (b, 0))]
                + [wspec(a) for a in args[1:]])

    kernel = functools.partial(
        fused_kernel, num_layers=NUM_LAYERS, num_heads=NUM_HEADS,
        imgs_per_block=IMGS_PER_BLOCK, seq_len=NUM_PATCHES,
        head_dim=HEAD_DIM, hidden=HIDDEN,
        scale=HEAD_DIM ** (-0.5), eps=LN_EPS)

    return pl.pallas_call(
        kernel,
        out_shape=jax.ShapeDtypeStruct((BN, D), jnp.float32),
        grid=(num_blocks,),
        in_specs=in_specs,
        out_specs=pl.BlockSpec((rows, D), lambda b: (b, 0)),
        compiler_params=pltpu.CompilerParams(
            dimension_semantics=("parallel",)),
    )(*args)


# ------------------------------ parameters ---------------------------------
def init_params(key):
    L, D, I = NUM_LAYERS, HIDDEN, INTERMEDIATE
    keys = iter(jax.random.split(key, 16))

    def nrm(shape, scale=0.02):
        return scale * jax.random.normal(next(keys), shape, dtype=jnp.float32)

    return {
        "conv_w": nrm((D, NUM_CHANNELS, PATCH_SIZE, PATCH_SIZE), 0.05),
        "conv_b": nrm((1, D)),
        "pos": nrm((NUM_PATCHES, D)),
        # per-layer weights stacked on a leading L axis, (in, out) layout
        "ln1_w": jnp.ones((L, 1, D), jnp.float32),
        "ln1_b": jnp.zeros((L, 1, D), jnp.float32),
        "wq": nrm((L, D, D)), "bq": nrm((L, 1, D)),
        "wk": nrm((L, D, D)), "bk": nrm((L, 1, D)),
        "wv": nrm((L, D, D)), "bv": nrm((L, 1, D)),
        "wo": nrm((L, D, D)), "bo": nrm((L, 1, D)),
        "ln2_w": jnp.ones((L, 1, D), jnp.float32),
        "ln2_b": jnp.zeros((L, 1, D), jnp.float32),
        "w1": nrm((L, D, I)), "b1": nrm((L, 1, I)),
        "w2": nrm((L, I, D)), "b2": nrm((L, 1, D)),
        "post_w": jnp.ones((1, D), jnp.float32),
        "post_b": jnp.zeros((1, D), jnp.float32),
    }


def prepare_weights(p):
    """One-time (init-time) reshape/fuse/pad/cast to the kernel layout.

    Called ONCE outside the jitted forward; its outputs are passed to every
    forward call, so no per-call weight re-preparation happens in XLA.
    """
    bf16 = jnp.bfloat16

    # conv weight flattened as (c, ph, pw) rows, K padded 192 -> 256
    w_embed = p["conv_w"].reshape(HIDDEN, CPP).T
    w_embed = jnp.pad(w_embed, ((0, CPP_PAD - CPP), (0, 0))).astype(bf16)

    # conv bias + positional embedding folded into one (M, D) add, tiled for
    # the IMGS_PER_BLOCK images handled by each grid step.
    embed_bias = jnp.tile(p["conv_b"] + p["pos"], (IMGS_PER_BLOCK, 1))

    return {
        "w_embed": w_embed,
        "embed_bias": embed_bias,
        "ln1_w": p["ln1_w"], "ln1_b": p["ln1_b"],
        # fused QKV: (L, D, 3D) bf16 and (L, 1, 3D) bias
        "wqkv": jnp.concatenate([p["wq"], p["wk"], p["wv"]], axis=-1).astype(bf16),
        "bqkv": jnp.concatenate([p["bq"], p["bk"], p["bv"]], axis=-1),
        "wo": p["wo"].astype(bf16), "bo": p["bo"],
        "ln2_w": p["ln2_w"], "ln2_b": p["ln2_b"],
        "w1": p["w1"].astype(bf16), "b1": p["b1"],
        "w2": p["w2"].astype(bf16), "b2": p["b2"],
        "post_w": p["post_w"], "post_b": p["post_b"],
    }


# ------------------------------- forward -----------------------------------
@jax.jit
def siglip_vision_forward(pixel_values, prepared):
    # pixel_values: (B, C, H, W) float32  (NCHW, like PyTorch)
    B, C, Himg, Wimg = pixel_values.shape
    P = PATCH_SIZE
    gh, gw = Himg // P, Wimg // P

    # TODO(synk): patch extraction (space-to-depth) stays as tiny XLA glue;
    # a 6-D transpose inside the Pallas kernel has no clean Mosaic lowering.
    # bf16 cast happens BEFORE the relayout/pad to halve the bytes moved.
    px = pixel_values.astype(jnp.bfloat16)
    patches = px.reshape(B, C, gh, P, gw, P)
    patches = patches.transpose(0, 2, 4, 1, 3, 5).reshape(B * gh * gw, C * P * P)
    patches = jnp.pad(patches, ((0, 0), (0, CPP_PAD - C * P * P)))

    out = siglip_fused_call(patches, prepared)          # (B*N, D)
    return out.reshape(B, gh * gw, HIDDEN)


# --------------------------------- main -------------------------------------
if __name__ == "__main__":
    key = jax.random.PRNGKey(0)
    k_params, k_input = jax.random.split(key)

    params = init_params(k_params)
    prepared = prepare_weights(params)          # hoisted: runs once at init
    prepared = jax.block_until_ready(prepared)

    assert BATCH % IMGS_PER_BLOCK == 0
    pixel_values = jax.random.normal(
        k_input, (BATCH, NUM_CHANNELS, IMAGE_SIZE, IMAGE_SIZE),
        dtype=jnp.float32)

    out = siglip_vision_forward(pixel_values, prepared)
    out = jax.block_until_ready(out)
    assert out.shape == (BATCH, NUM_PATCHES, HIDDEN), out.shape
    assert bool(jnp.all(jnp.isfinite(out)))
    print("KERNEL_OK")
</pallas_src>

<mosaic_0001>
module attributes {stable_mosaic.version = 11 : i64} {
  func.func @fused_kernel(%arg0: i32, %arg1: memref<32x256xbf16, #tpu.memory_space<vmem>>, %arg2: memref<256x128xbf16, #tpu.memory_space<vmem>>, %arg3: memref<32x128xf32, #tpu.memory_space<vmem>>, %arg4: memref<2x1x128xf32, #tpu.memory_space<vmem>>, %arg5: memref<2x1x128xf32, #tpu.memory_space<vmem>>, %arg6: memref<2x128x384xbf16, #tpu.memory_space<vmem>>, %arg7: memref<2x1x384xf32, #tpu.memory_space<vmem>>, %arg8: memref<2x128x128xbf16, #tpu.memory_space<vmem>>, %arg9: memref<2x1x128xf32, #tpu.memory_space<vmem>>, %arg10: memref<2x1x128xf32, #tpu.memory_space<vmem>>, %arg11: memref<2x1x128xf32, #tpu.memory_space<vmem>>, %arg12: memref<2x128x256xbf16, #tpu.memory_space<vmem>>, %arg13: memref<2x1x256xf32, #tpu.memory_space<vmem>>, %arg14: memref<2x256x128xbf16, #tpu.memory_space<vmem>>, %arg15: memref<2x1x128xf32, #tpu.memory_space<vmem>>, %arg16: memref<1x128xf32, #tpu.memory_space<vmem>>, %arg17: memref<1x128xf32, #tpu.memory_space<vmem>>, %arg18: memref<32x128xf32, #tpu.memory_space<vmem>>) attributes {dimension_semantics = [#tpu.dimension_semantics<parallel>], iteration_bounds = array<i64: 2>, scalar_prefetch = 0 : i64, scratch_operands = 0 : i64, tpu.core_type = #tpu.core_type<tc>, window_params = [{transform_indices = @transform_0, window_bounds = array<i64: 32, 256>}, {pipeline_mode = #tpu.pipeline_mode<synchronous>, transform_indices = @transform_1, window_bounds = array<i64: 256, 128>}, {pipeline_mode = #tpu.pipeline_mode<synchronous>, transform_indices = @transform_2, window_bounds = array<i64: 32, 128>}, {pipeline_mode = #tpu.pipeline_mode<synchronous>, transform_indices = @transform_3, window_bounds = array<i64: 2, 1, 128>}, {pipeline_mode = #tpu.pipeline_mode<synchronous>, transform_indices = @transform_4, window_bounds = array<i64: 2, 1, 128>}, {pipeline_mode = #tpu.pipeline_mode<synchronous>, transform_indices = @transform_5, window_bounds = array<i64: 2, 128, 384>}, {pipeline_mode = #tpu.pipeline_mode<synchronous>, transform_indices = @transform_6, window_bounds = array<i64: 2, 1, 384>}, {pipeline_mode = #tpu.pipeline_mode<synchronous>, transform_indices = @transform_7, window_bounds = array<i64: 2, 128, 128>}, {pipeline_mode = #tpu.pipeline_mode<synchronous>, transform_indices = @transform_8, window_bounds = array<i64: 2, 1, 128>}, {pipeline_mode = #tpu.pipeline_mode<synchronous>, transform_indices = @transform_9, window_bounds = array<i64: 2, 1, 128>}, {pipeline_mode = #tpu.pipeline_mode<synchronous>, transform_indices = @transform_10, window_bounds = array<i64: 2, 1, 128>}, {pipeline_mode = #tpu.pipeline_mode<synchronous>, transform_indices = @transform_11, window_bounds = array<i64: 2, 128, 256>}, {pipeline_mode = #tpu.pipeline_mode<synchronous>, transform_indices = @transform_12, window_bounds = array<i64: 2, 1, 256>}, {pipeline_mode = #tpu.pipeline_mode<synchronous>, transform_indices = @transform_13, window_bounds = array<i64: 2, 256, 128>}, {pipeline_mode = #tpu.pipeline_mode<synchronous>, transform_indices = @transform_14, window_bounds = array<i64: 2, 1, 128>}, {pipeline_mode = #tpu.pipeline_mode<synchronous>, transform_indices = @transform_15, window_bounds = array<i64: 1, 128>}, {pipeline_mode = #tpu.pipeline_mode<synchronous>, transform_indices = @transform_16, window_bounds = array<i64: 1, 128>}, {transform_indices = @transform_17, window_bounds = array<i64: 32, 128>}]} {
    %c0 = arith.constant 0 : index
    %c0_0 = arith.constant 0 : index
    %0 = vector.load %arg1[%c0, %c0_0] : memref<32x256xbf16, #tpu.memory_space<vmem>>, vector<32x256xbf16>
    %c0_1 = arith.constant 0 : index
    %c0_2 = arith.constant 0 : index
    %1 = vector.load %arg2[%c0_1, %c0_2] : memref<256x128xbf16, #tpu.memory_space<vmem>>, vector<256x128xbf16>
    %cst = arith.constant dense<0.000000e+00> : vector<32x128xf32>
    %2 = tpu.matmul %0, %1, %cst {dimension_numbers = #tpu.dot_dimension_numbers<[1], [0], [0], [1], [0, 0, 1, 1], [], []>} : vector<32x256xbf16>, vector<256x128xbf16>, vector<32x128xf32> -> vector<32x128xf32>
    %c0_3 = arith.constant 0 : index
    %c0_4 = arith.constant 0 : index
    %3 = vector.load %arg3[%c0_3, %c0_4] : memref<32x128xf32, #tpu.memory_space<vmem>>, vector<32x128xf32>
    %4 = arith.addf %2, %3 : vector<32x128xf32>
    %c0_5 = arith.constant 0 : index
    %c0_6 = arith.constant 0 : index
    %c0_7 = arith.constant 0 : index
    %5 = vector.load %arg4[%c0_5, %c0_6, %c0_7] : memref<2x1x128xf32, #tpu.memory_space<vmem>>, vector<1x1x128xf32>
    %6 = vector.shape_cast %5 : vector<1x1x128xf32> to vector<1x128xf32>
    %c0_8 = arith.constant 0 : index
    %c0_9 = arith.constant 0 : index
    %c0_10 = arith.constant 0 : index
    %7 = vector.load %arg5[%c0_8, %c0_9, %c0_10] : memref<2x1x128xf32, #tpu.memory_space<vmem>>, vector<1x1x128xf32>
    %8 = vector.shape_cast %7 : vector<1x1x128xf32> to vector<1x128xf32>
    %cst_11 = arith.constant dense<0.000000e+00> : vector<32xf32>
    %9 = vector.multi_reduction <add>, %4, %cst_11 [1] : vector<32x128xf32> to vector<32xf32>
    %10 = vector.shape_cast %9 : vector<32xf32> to vector<32x1xf32>
    %cst_12 = arith.constant 1.280000e+02 : f32
    %11 = vector.broadcast %cst_12 : f32 to vector<32x1xf32>
    %12 = arith.divf %10, %11 : vector<32x1xf32>
    %13 = vector.broadcast %12 : vector<32x1xf32> to vector<32x128xf32>
    %14 = arith.subf %4, %13 : vector<32x128xf32>
    %15 = arith.mulf %14, %14 : vector<32x128xf32>
    %cst_13 = arith.constant dense<0.000000e+00> : vector<32xf32>
    %16 = vector.multi_reduction <add>, %15, %cst_13 [1] : vector<32x128xf32> to vector<32xf32>
    %17 = vector.shape_cast %16 : vector<32xf32> to vector<32x1xf32>
    %cst_14 = arith.constant 1.280000e+02 : f32
    %18 = vector.broadcast %cst_14 : f32 to vector<32x1xf32>
    %19 = arith.divf %17, %18 : vector<32x1xf32>
    %20 = vector.broadcast %12 : vector<32x1xf32> to vector<32x128xf32>
    %21 = arith.subf %4, %20 : vector<32x128xf32>
    %cst_15 = arith.constant 9.99999997E-7 : f32
    %22 = vector.broadcast %cst_15 : f32 to vector<32x1xf32>
    %23 = arith.addf %19, %22 : vector<32x1xf32>
    %24 = math.rsqrt %23 : vector<32x1xf32>
    %25 = vector.broadcast %24 : vector<32x1xf32> to vector<32x128xf32>
    %26 = arith.mulf %21, %25 : vector<32x128xf32>
    %27 = vector.broadcast %6 : vector<1x128xf32> to vector<32x128xf32>
    %28 = arith.mulf %26, %27 : vector<32x128xf32>
    %29 = vector.broadcast %8 : vector<1x128xf32> to vector<32x128xf32>
    %30 = arith.addf %28, %29 : vector<32x128xf32>
    %31 = arith.truncf %30 : vector<32x128xf32> to vector<32x128xbf16>
    %c0_16 = arith.constant 0 : index
    %c0_17 = arith.constant 0 : index
    %c0_18 = arith.constant 0 : index
    %32 = vector.load %arg6[%c0_16, %c0_17, %c0_18] : memref<2x128x384xbf16, #tpu.memory_space<vmem>>, vector<1x128x384xbf16>
    %33 = vector.shape_cast %32 : vector<1x128x384xbf16> to vector<128x384xbf16>
    %cst_19 = arith.constant dense<0.000000e+00> : vector<32x384xf32>
    %34 = tpu.matmul %31, %33, %cst_19 {dimension_numbers = #tpu.dot_dimension_numbers<[1], [0], [0], [1], [0, 0, 1, 1], [], []>} : vector<32x128xbf16>, vector<128x384xbf16>, vector<32x384xf32> -> vector<32x384xf32>
    %c0_20 = arith.constant 0 : index
    %c0_21 = arith.constant 0 : index
    %c0_22 = arith.constant 0 : index
    %35 = vector.load %arg7[%c0_20, %c0_21, %c0_22] : memref<2x1x384xf32, #tpu.memory_space<vmem>>, vector<1x1x384xf32>
    %36 = vector.shape_cast %35 : vector<1x1x384xf32> to vector<1x384xf32>
    %37 = vector.broadcast %36 : vector<1x384xf32> to vector<32x384xf32>
    %38 = arith.addf %34, %37 : vector<32x384xf32>
    %39 = arith.truncf %38 : vector<32x384xf32> to vector<32x384xbf16>
    %40 = vector.extract_strided_slice %39 {offsets = [0, 0], sizes = [32, 128], strides = [1, 1]} : vector<32x384xbf16> to vector<32x128xbf16>
    %41 = vector.extract_strided_slice %39 {offsets = [0, 128], sizes = [32, 128], strides = [1, 1]} : vector<32x384xbf16> to vector<32x128xbf16>
    %42 = vector.extract_strided_slice %39 {offsets = [0, 256], sizes = [32, 128], strides = [1, 1]} : vector<32x384xbf16> to vector<32x128xbf16>
    %43 = vector.extract_strided_slice %40 {offsets = [0, 0], sizes = [32, 32], strides = [1, 1]} : vector<32x128xbf16> to vector<32x32xbf16>
    %44 = vector.extract_strided_slice %41 {offsets = [0, 0], sizes = [32, 32], strides = [1, 1]} : vector<32x128xbf16> to vector<32x32xbf16>
    %45 = vector.extract_strided_slice %42 {offsets = [0, 0], sizes = [32, 32], strides = [1, 1]} : vector<32x128xbf16> to vector<32x32xbf16>
    %46 = vector.extract_strided_slice %43 {offsets = [0, 0], sizes = [16, 32], strides = [1, 1]} : vector<32x32xbf16> to vector<16x32xbf16>
    %47 = vector.extract_strided_slice %44 {offsets = [0, 0], sizes = [16, 32], strides = [1, 1]} : vector<32x32xbf16> to vector<16x32xbf16>
    %cst_23 = arith.constant dense<0.000000e+00> : vector<16x16xf32>
    %48 = tpu.matmul %46, %47, %cst_23 {dimension_numbers = #tpu.dot_dimension_numbers<[1], [1], [0], [0], [0, 0, 1, 0], [], []>} : vector<16x32xbf16>, vector<16x32xbf16>, vector<16x16xf32> -> vector<16x16xf32>
    %cst_24 = arith.constant 0.176776692 : f32
    %49 = vector.broadcast %cst_24 : f32 to vector<16x16xf32>
    %50 = arith.mulf %48, %49 : vector<16x16xf32>
    %cst_25 = arith.constant dense<0xFF800000> : vector<16xf32>
    %51 = vector.multi_reduction <maximumf>, %50, %cst_25 [1] : vector<16x16xf32> to vector<16xf32>
    %52 = vector.shape_cast %51 : vector<16xf32> to vector<16x1xf32>
    %53 = vector.broadcast %52 : vector<16x1xf32> to vector<16x16xf32>
    %54 = arith.subf %50, %53 : vector<16x16xf32>
    %55 = math.exp %54 : vector<16x16xf32>
    %cst_26 = arith.constant dense<0.000000e+00> : vector<16xf32>
    %56 = vector.multi_reduction <add>, %55, %cst_26 [1] : vector<16x16xf32> to vector<16xf32>
    %57 = vector.shape_cast %56 : vector<16xf32> to vector<16x1xf32>
    %58 = vector.broadcast %57 : vector<16x1xf32> to vector<16x16xf32>
    %59 = arith.divf %55, %58 : vector<16x16xf32>
    %60 = arith.truncf %59 : vector<16x16xf32> to vector<16x16xbf16>
    %61 = vector.extract_strided_slice %45 {offsets = [0, 0], sizes = [16, 32], strides = [1, 1]} : vector<32x32xbf16> to vector<16x32xbf16>
    %cst_27 = arith.constant dense<0.000000e+00> : vector<16x32xf32>
    %62 = tpu.matmul %60, %61, %cst_27 {dimension_numbers = #tpu.dot_dimension_numbers<[1], [0], [0], [1], [0, 0, 1, 1], [], []>} : vector<16x16xbf16>, vector<16x32xbf16>, vector<16x32xf32> -> vector<16x32xf32>
    %63 = vector.extract_strided_slice %43 {offsets = [16, 0], sizes = [16, 32], strides = [1, 1]} : vector<32x32xbf16> to vector<16x32xbf16>
    %64 = vector.extract_strided_slice %44 {offsets = [16, 0], sizes = [16, 32], strides = [1, 1]} : vector<32x32xbf16> to vector<16x32xbf16>
    %cst_28 = arith.constant dense<0.000000e+00> : vector<16x16xf32>
    %65 = tpu.matmul %63, %64, %cst_28 {dimension_numbers = #tpu.dot_dimension_numbers<[1], [1], [0], [0], [0, 0, 1, 0], [], []>} : vector<16x32xbf16>, vector<16x32xbf16>, vector<16x16xf32> -> vector<16x16xf32>
    %cst_29 = arith.constant 0.176776692 : f32
    %66 = vector.broadcast %cst_29 : f32 to vector<16x16xf32>
    %67 = arith.mulf %65, %66 : vector<16x16xf32>
    %cst_30 = arith.constant dense<0xFF800000> : vector<16xf32>
    %68 = vector.multi_reduction <maximumf>, %67, %cst_30 [1] : vector<16x16xf32> to vector<16xf32>
    %69 = vector.shape_cast %68 : vector<16xf32> to vector<16x1xf32>
    %70 = vector.broadcast %69 : vector<16x1xf32> to vector<16x16xf32>
    %71 = arith.subf %67, %70 : vector<16x16xf32>
    %72 = math.exp %71 : vector<16x16xf32>
    %cst_31 = arith.constant dense<0.000000e+00> : vector<16xf32>
    %73 = vector.multi_reduction <add>, %72, %cst_31 [1] : vector<16x16xf32> to vector<16xf32>
    %74 = vector.shape_cast %73 : vector<16xf32> to vector<16x1xf32>
    %75 = vector.broadcast %74 : vector<16x1xf32> to vector<16x16xf32>
    %76 = arith.divf %72, %75 : vector<16x16xf32>
    %77 = arith.truncf %76 : vector<16x16xf32> to vector<16x16xbf16>
    %78 = vector.extract_strided_slice %45 {offsets = [16, 0], sizes = [16, 32], strides = [1, 1]} : vector<32x32xbf16> to vector<16x32xbf16>
    %cst_32 = arith.constant dense<0.000000e+00> : vector<16x32xf32>
    %79 = tpu.matmul %77, %78, %cst_32 {dimension_numbers = #tpu.dot_dimension_numbers<[1], [0], [0], [1], [0, 0, 1, 1], [], []>} : vector<16x16xbf16>, vector<16x32xbf16>, vector<16x32xf32> -> vector<16x32xf32>
    %80 = tpu.concatenate %62, %79 in 0 : vector<16x32xf32>, vector<16x32xf32> -> vector<32x32xf32>
    %81 = vector.extract_strided_slice %40 {offsets = [0, 32], sizes = [32, 32], strides = [1, 1]} : vector<32x128xbf16> to vector<32x32xbf16>
    %82 = vector.extract_strided_slice %41 {offsets = [0, 32], sizes = [32, 32], strides = [1, 1]} : vector<32x128xbf16> to vector<32x32xbf16>
    %83 = vector.extract_strided_slice %42 {offsets = [0, 32], sizes = [32, 32], strides = [1, 1]} : vector<32x128xbf16> to vector<32x32xbf16>
    %84 = vector.extract_strided_slice %81 {offsets = [0, 0], sizes = [16, 32], strides = [1, 1]} : vector<32x32xbf16> to vector<16x32xbf16>
    %85 = vector.extract_strided_slice %82 {offsets = [0, 0], sizes = [16, 32], strides = [1, 1]} : vector<32x32xbf16> to vector<16x32xbf16>
    %cst_33 = arith.constant dense<0.000000e+00> : vector<16x16xf32>
    %86 = tpu.matmul %84, %85, %cst_33 {dimension_numbers = #tpu.dot_dimension_numbers<[1], [1], [0], [0], [0, 0, 1, 0], [], []>} : vector<16x32xbf16>, vector<16x32xbf16>, vector<16x16xf32> -> vector<16x16xf32>
    %cst_34 = arith.constant 0.176776692 : f32
    %87 = vector.broadcast %cst_34 : f32 to vector<16x16xf32>
    %88 = arith.mulf %86, %87 : vector<16x16xf32>
    %cst_35 = arith.constant dense<0xFF800000> : vector<16xf32>
    %89 = vector.multi_reduction <maximumf>, %88, %cst_35 [1] : vector<16x16xf32> to vector<16xf32>
    %90 = vector.shape_cast %89 : vector<16xf32> to vector<16x1xf32>
    %91 = vector.broadcast %90 : vector<16x1xf32> to vector<16x16xf32>
    %92 = arith.subf %88, %91 : vector<16x16xf32>
    %93 = math.exp %92 : vector<16x16xf32>
    %cst_36 = arith.constant dense<0.000000e+00> : vector<16xf32>
    %94 = vector.multi_reduction <add>, %93, %cst_36 [1] : vector<16x16xf32> to vector<16xf32>
    %95 = vector.shape_cast %94 : vector<16xf32> to vector<16x1xf32>
    %96 = vector.broadcast %95 : vector<16x1xf32> to vector<16x16xf32>
    %97 = arith.divf %93, %96 : vector<16x16xf32>
    %98 = arith.truncf %97 : vector<16x16xf32> to vector<16x16xbf16>
    %99 = vector.extract_strided_slice %83 {offsets = [0, 0], sizes = [16, 32], strides = [1, 1]} : vector<32x32xbf16> to vector<16x32xbf16>
    %cst_37 = arith.constant dense<0.000000e+00> : vector<16x32xf32>
    %100 = tpu.matmul %98, %99, %cst_37 {dimension_numbers = #tpu.dot_dimension_numbers<[1], [0], [0], [1], [0, 0, 1, 1], [], []>} : vector<16x16xbf16>, vector<16x32xbf16>, vector<16x32xf32> -> vector<16x32xf32>
    %101 = vector.extract_strided_slice %81 {offsets = [16, 0], sizes = [16, 32], strides = [1, 1]} : vector<32x32xbf16> to vector<16x32xbf16>
    %102 = vector.extract_strided_slice %82 {offsets = [16, 0], sizes = [16, 32], strides = [1, 1]} : vector<32x32xbf16> to vector<16x32xbf16>
    %cst_38 = arith.constant dense<0.000000e+00> : vector<16x16xf32>
    %103 = tpu.matmul %101, %102, %cst_38 {dimension_numbers = #tpu.dot_dimension_numbers<[1], [1], [0], [0], [0, 0, 1, 0], [], []>} : vector<16x32xbf16>, vector<16x32xbf16>, vector<16x16xf32> -> vector<16x16xf32>
    %cst_39 = arith.constant 0.176776692 : f32
    %104 = vector.broadcast %cst_39 : f32 to vector<16x16xf32>
    %105 = arith.mulf %103, %104 : vector<16x16xf32>
    %cst_40 = arith.constant dense<0xFF800000> : vector<16xf32>
    %106 = vector.multi_reduction <maximumf>, %105, %cst_40 [1] : vector<16x16xf32> to vector<16xf32>
    %107 = vector.shape_cast %106 : vector<16xf32> to vector<16x1xf32>
    %108 = vector.broadcast %107 : vector<16x1xf32> to vector<16x16xf32>
    %109 = arith.subf %105, %108 : vector<16x16xf32>
    %110 = math.exp %109 : vector<16x16xf32>
    %cst_41 = arith.constant dense<0.000000e+00> : vector<16xf32>
    %111 = vector.multi_reduction <add>, %110, %cst_41 [1] : vector<16x16xf32> to vector<16xf32>
    %112 = vector.shape_cast %111 : vector<16xf32> to vector<16x1xf32>
    %113 = vector.broadcast %112 : vector<16x1xf32> to vector<16x16xf32>
    %114 = arith.divf %110, %113 : vector<16x16xf32>
    %115 = arith.truncf %114 : vector<16x16xf32> to vector<16x16xbf16>
    %116 = vector.extract_strided_slice %83 {offsets = [16, 0], sizes = [16, 32], strides = [1, 1]} : vector<32x32xbf16> to vector<16x32xbf16>
    %cst_42 = arith.constant dense<0.000000e+00> : vector<16x32xf32>
    %117 = tpu.matmul %115, %116, %cst_42 {dimension_numbers = #tpu.dot_dimension_numbers<[1], [0], [0], [1], [0, 0, 1, 1], [], []>} : vector<16x16xbf16>, vector<16x32xbf16>, vector<16x32xf32> -> vector<16x32xf32>
    %118 = tpu.concatenate %100, %117 in 0 : vector<16x32xf32>, vector<16x32xf32> -> vector<32x32xf32>
    %119 = vector.extract_strided_slice %40 {offsets = [0, 64], sizes = [32, 32], strides = [1, 1]} : vector<32x128xbf16> to vector<32x32xbf16>
    %120 = vector.extract_strided_slice %41 {offsets = [0, 64], sizes = [32, 32], strides = [1, 1]} : vector<32x128xbf16> to vector<32x32xbf16>
    %121 = vector.extract_strided_slice %42 {offsets = [0, 64], sizes = [32, 32], strides = [1, 1]} : vector<32x128xbf16> to vector<32x32xbf16>
    %122 = vector.extract_strided_slice %119 {offsets = [0, 0], sizes = [16, 32], strides = [1, 1]} : vector<32x32xbf16> to vector<16x32xbf16>
    %123 = vector.extract_strided_slice %120 {offsets = [0, 0], sizes = [16, 32], strides = [1, 1]} : vector<32x32xbf16> to vector<16x32xbf16>
    %cst_43 = arith.constant dense<0.000000e+00> : vector<16x16xf32>
    %124 = tpu.matmul %122, %123, %cst_43 {dimension_numbers = #tpu.dot_dimension_numbers<[1], [1], [0], [0], [0, 0, 1, 0], [], []>} : vector<16x32xbf16>, vector<16x32xbf16>, vector<16x16xf32> -> vector<16x16xf32>
    %cst_44 = arith.constant 0.176776692 : f32
    %125 = vector.broadcast %cst_44 : f32 to vector<16x16xf32>
    %126 = arith.mulf %124, %125 : vector<16x16xf32>
    %cst_45 = arith.constant dense<0xFF800000> : vector<16xf32>
    %127 = vector.multi_reduction <maximumf>, %126, %cst_45 [1] : vector<16x16xf32> to vector<16xf32>
    %128 = vector.shape_cast %127 : vector<16xf32> to vector<16x1xf32>
    %129 = vector.broadcast %128 : vector<16x1xf32> to vector<16x16xf32>
    %130 = arith.subf %126, %129 : vector<16x16xf32>
    %131 = math.exp %130 : vector<16x16xf32>
    %cst_46 = arith.constant dense<0.000000e+00> : vector<16xf32>
    %132 = vector.multi_reduction <add>, %131, %cst_46 [1] : vector<16x16xf32> to vector<16xf32>
    %133 = vector.shape_cast %132 : vector<16xf32> to vector<16x1xf32>
    %134 = vector.broadcast %133 : vector<16x1xf32> to vector<16x16xf32>
    %135 = arith.divf %131, %134 : vector<16x16xf32>
    %136 = arith.truncf %135 : vector<16x16xf32> to vector<16x16xbf16>
    %137 = vector.extract_strided_slice %121 {offsets = [0, 0], sizes = [16, 32], strides = [1, 1]} : vector<32x32xbf16> to vector<16x32xbf16>
    %cst_47 = arith.constant dense<0.000000e+00> : vector<16x32xf32>
    %138 = tpu.matmul %136, %137, %cst_47 {dimension_numbers = #tpu.dot_dimension_numbers<[1], [0], [0], [1], [0, 0, 1, 1], [], []>} : vector<16x16xbf16>, vector<16x32xbf16>, vector<16x32xf32> -> vector<16x32xf32>
    %139 = vector.extract_strided_slice %119 {offsets = [16, 0], sizes = [16, 32], strides = [1, 1]} : vector<32x32xbf16> to vector<16x32xbf16>
    %140 = vector.extract_strided_slice %120 {offsets = [16, 0], sizes = [16, 32], strides = [1, 1]} : vector<32x32xbf16> to vector<16x32xbf16>
    %cst_48 = arith.constant dense<0.000000e+00> : vector<16x16xf32>
    %141 = tpu.matmul %139, %140, %cst_48 {dimension_numbers = #tpu.dot_dimension_numbers<[1], [1], [0], [0], [0, 0, 1, 0], [], []>} : vector<16x32xbf16>, vector<16x32xbf16>, vector<16x16xf32> -> vector<16x16xf32>
    %cst_49 = arith.constant 0.176776692 : f32
    %142 = vector.broadcast %cst_49 : f32 to vector<16x16xf32>
    %143 = arith.mulf %141, %142 : vector<16x16xf32>
    %cst_50 = arith.constant dense<0xFF800000> : vector<16xf32>
    %144 = vector.multi_reduction <maximumf>, %143, %cst_50 [1] : vector<16x16xf32> to vector<16xf32>
    %145 = vector.shape_cast %144 : vector<16xf32> to vector<16x1xf32>
    %146 = vector.broadcast %145 : vector<16x1xf32> to vector<16x16xf32>
    %147 = arith.subf %143, %146 : vector<16x16xf32>
    %148 = math.exp %147 : vector<16x16xf32>
    %cst_51 = arith.constant dense<0.000000e+00> : vector<16xf32>
    %149 = vector.multi_reduction <add>, %148, %cst_51 [1] : vector<16x16xf32> to vector<16xf32>
    %150 = vector.shape_cast %149 : vector<16xf32> to vector<16x1xf32>
    %151 = vector.broadcast %150 : vector<16x1xf32> to vector<16x16xf32>
    %152 = arith.divf %148, %151 : vector<16x16xf32>
    %153 = arith.truncf %152 : vector<16x16xf32> to vector<16x16xbf16>
    %154 = vector.extract_strided_slice %121 {offsets = [16, 0], sizes = [16, 32], strides = [1, 1]} : vector<32x32xbf16> to vector<16x32xbf16>
    %cst_52 = arith.constant dense<0.000000e+00> : vector<16x32xf32>
    %155 = tpu.matmul %153, %154, %cst_52 {dimension_numbers = #tpu.dot_dimension_numbers<[1], [0], [0], [1], [0, 0, 1, 1], [], []>} : vector<16x16xbf16>, vector<16x32xbf16>, vector<16x32xf32> -> vector<16x32xf32>
    %156 = tpu.concatenate %138, %155 in 0 : vector<16x32xf32>, vector<16x32xf32> -> vector<32x32xf32>
    %157 = vector.extract_strided_slice %40 {offsets = [0, 96], sizes = [32, 32], strides = [1, 1]} : vector<32x128xbf16> to vector<32x32xbf16>
    %158 = vector.extract_strided_slice %41 {offsets = [0, 96], sizes = [32, 32], strides = [1, 1]} : vector<32x128xbf16> to vector<32x32xbf16>
    %159 = vector.extract_strided_slice %42 {offsets = [0, 96], sizes = [32, 32], strides = [1, 1]} : vector<32x128xbf16> to vector<32x32xbf16>
    %160 = vector.extract_strided_slice %157 {offsets = [0, 0], sizes = [16, 32], strides = [1, 1]} : vector<32x32xbf16> to vector<16x32xbf16>
    %161 = vector.extract_strided_slice %158 {offsets = [0, 0], sizes = [16, 32], strides = [1, 1]} : vector<32x32xbf16> to vector<16x32xbf16>
    %cst_53 = arith.constant dense<0.000000e+00> : vector<16x16xf32>
    %162 = tpu.matmul %160, %161, %cst_53 {dimension_numbers = #tpu.dot_dimension_numbers<[1], [1], [0], [0], [0, 0, 1, 0], [], []>} : vector<16x32xbf16>, vector<16x32xbf16>, vector<16x16xf32> -> vector<16x16xf32>
    %cst_54 = arith.constant 0.176776692 : f32
    %163 = vector.broadcast %cst_54 : f32 to vector<16x16xf32>
    %164 = arith.mulf %162, %163 : vector<16x16xf32>
    %cst_55 = arith.constant dense<0xFF800000> : vector<16xf32>
    %165 = vector.multi_reduction <maximumf>, %164, %cst_55 [1] : vector<16x16xf32> to vector<16xf32>
    %166 = vector.shape_cast %165 : vector<16xf32> to vector<16x1xf32>
    %167 = vector.broadcast %166 : vector<16x1xf32> to vector<16x16xf32>
    %168 = arith.subf %164, %167 : vector<16x16xf32>
    %169 = math.exp %168 : vector<16x16xf32>
    %cst_56 = arith.constant dense<0.000000e+00> : vector<16xf32>
    %170 = vector.multi_reduction <add>, %169, %cst_56 [1] : vector<16x16xf32> to vector<16xf32>
    %171 = vector.shape_cast %170 : vector<16xf32> to vector<16x1xf32>
    %172 = vector.broadcast %171 : vector<16x1xf32> to vector<16x16xf32>
    %173 = arith.divf %169, %172 : vector<16x16xf32>
    %174 = arith.truncf %173 : vector<16x16xf32> to vector<16x16xbf16>
    %175 = vector.extract_strided_slice %159 {offsets = [0, 0], sizes = [16, 32], strides = [1, 1]} : vector<32x32xbf16> to vector<16x32xbf16>
    %cst_57 = arith.constant dense<0.000000e+00> : vector<16x32xf32>
    %176 = tpu.matmul %174, %175, %cst_57 {dimension_numbers = #tpu.dot_dimension_numbers<[1], [0], [0], [1], [0, 0, 1, 1], [], []>} : vector<16x16xbf16>, vector<16x32xbf16>, vector<16x32xf32> -> vector<16x32xf32>
    %177 = vector.extract_strided_slice %157 {offsets = [16, 0], sizes = [16, 32], strides = [1, 1]} : vector<32x32xbf16> to vector<16x32xbf16>
    %178 = vector.extract_strided_slice %158 {offsets = [16, 0], sizes = [16, 32], strides = [1, 1]} : vector<32x32xbf16> to vector<16x32xbf16>
    %cst_58 = arith.constant dense<0.000000e+00> : vector<16x16xf32>
    %179 = tpu.matmul %177, %178, %cst_58 {dimension_numbers = #tpu.dot_dimension_numbers<[1], [1], [0], [0], [0, 0, 1, 0], [], []>} : vector<16x32xbf16>, vector<16x32xbf16>, vector<16x16xf32> -> vector<16x16xf32>
    %cst_59 = arith.constant 0.176776692 : f32
    %180 = vector.broadcast %cst_59 : f32 to vector<16x16xf32>
    %181 = arith.mulf %179, %180 : vector<16x16xf32>
    %cst_60 = arith.constant dense<0xFF800000> : vector<16xf32>
    %182 = vector.multi_reduction <maximumf>, %181, %cst_60 [1] : vector<16x16xf32> to vector<16xf32>
    %183 = vector.shape_cast %182 : vector<16xf32> to vector<16x1xf32>
    %184 = vector.broadcast %183 : vector<16x1xf32> to vector<16x16xf32>
    %185 = arith.subf %181, %184 : vector<16x16xf32>
    %186 = math.exp %185 : vector<16x16xf32>
    %cst_61 = arith.constant dense<0.000000e+00> : vector<16xf32>
    %187 = vector.multi_reduction <add>, %186, %cst_61 [1] : vector<16x16xf32> to vector<16xf32>
    %188 = vector.shape_cast %187 : vector<16xf32> to vector<16x1xf32>
    %189 = vector.broadcast %188 : vector<16x1xf32> to vector<16x16xf32>
    %190 = arith.divf %186, %189 : vector<16x16xf32>
    %191 = arith.truncf %190 : vector<16x16xf32> to vector<16x16xbf16>
    %192 = vector.extract_strided_slice %159 {offsets = [16, 0], sizes = [16, 32], strides = [1, 1]} : vector<32x32xbf16> to vector<16x32xbf16>
    %cst_62 = arith.constant dense<0.000000e+00> : vector<16x32xf32>
    %193 = tpu.matmul %191, %192, %cst_62 {dimension_numbers = #tpu.dot_dimension_numbers<[1], [0], [0], [1], [0, 0, 1, 1], [], []>} : vector<16x16xbf16>, vector<16x32xbf16>, vector<16x32xf32> -> vector<16x32xf32>
    %194 = tpu.concatenate %176, %193 in 0 : vector<16x32xf32>, vector<16x32xf32> -> vector<32x32xf32>
    %195 = tpu.concatenate %80, %118, %156, %194 in 1 : vector<32x32xf32>, vector<32x32xf32>, vector<32x32xf32>, vector<32x32xf32> -> vector<32x128xf32>
    %196 = arith.truncf %195 : vector<32x128xf32> to vector<32x128xbf16>
    %c0_63 = arith.constant 0 : index
    %c0_64 = arith.constant 0 : index
    %c0_65 = arith.constant 0 : index
    %197 = vector.load %arg8[%c0_63, %c0_64, %c0_65] : memref<2x128x128xbf16, #tpu.memory_space<vmem>>, vector<1x128x128xbf16>
    %198 = vector.shape_cast %197 : vector<1x128x128xbf16> to vector<128x128xbf16>
    %cst_66 = arith.constant dense<0.000000e+00> : vector<32x128xf32>
    %199 = tpu.matmul %196, %198, %cst_66 {dimension_numbers = #tpu.dot_dimension_numbers<[1], [0], [0], [1], [0, 0, 1, 1], [], []>} : vector<32x128xbf16>, vector<128x128xbf16>, vector<32x128xf32> -> vector<32x128xf32>
    %c0_67 = arith.constant 0 : index
    %c0_68 = arith.constant 0 : index
    %c0_69 = arith.constant 0 : index
    %200 = vector.load %arg9[%c0_67, %c0_68, %c0_69] : memref<2x1x128xf32, #tpu.memory_space<vmem>>, vector<1x1x128xf32>
    %201 = vector.shape_cast %200 : vector<1x1x128xf32> to vector<1x128xf32>
    %202 = vector.broadcast %201 : vector<1x128xf32> to vector<32x128xf32>
    %203 = arith.addf %199, %202 : vector<32x128xf32>
    %204 = arith.addf %4, %203 : vector<32x128xf32>
    %c0_70 = arith.constant 0 : index
    %c0_71 = arith.constant 0 : index
    %c0_72 = arith.constant 0 : index
    %205 = vector.load %arg10[%c0_70, %c0_71, %c0_72] : memref<2x1x128xf32, #tpu.memory_space<vmem>>, vector<1x1x128xf32>
    %206 = vector.shape_cast %205 : vector<1x1x128xf32> to vector<1x128xf32>
    %c0_73 = arith.constant 0 : index
    %c0_74 = arith.constant 0 : index
    %c0_75 = arith.constant 0 : index
    %207 = vector.load %arg11[%c0_73, %c0_74, %c0_75] : memref<2x1x128xf32, #tpu.memory_space<vmem>>, vector<1x1x128xf32>
    %208 = vector.shape_cast %207 : vector<1x1x128xf32> to vector<1x128xf32>
    %cst_76 = arith.constant dense<0.000000e+00> : vector<32xf32>
    %209 = vector.multi_reduction <add>, %204, %cst_76 [1] : vector<32x128xf32> to vector<32xf32>
    %210 = vector.shape_cast %209 : vector<32xf32> to vector<32x1xf32>
    %cst_77 = arith.constant 1.280000e+02 : f32
    %211 = vector.broadcast %cst_77 : f32 to vector<32x1xf32>
    %212 = arith.divf %210, %211 : vector<32x1xf32>
    %213 = vector.broadcast %212 : vector<32x1xf32> to vector<32x128xf32>
    %214 = arith.subf %204, %213 : vector<32x128xf32>
    %215 = arith.mulf %214, %214 : vector<32x128xf32>
    %cst_78 = arith.constant dense<0.000000e+00> : vector<32xf32>
    %216 = vector.multi_reduction <add>, %215, %cst_78 [1] : vector<32x128xf32> to vector<32xf32>
    %217 = vector.shape_cast %216 : vector<32xf32> to vector<32x1xf32>
    %cst_79 = arith.constant 1.280000e+02 : f32
    %218 = vector.broadcast %cst_79 : f32 to vector<32x1xf32>
    %219 = arith.divf %217, %218 : vector<32x1xf32>
    %220 = vector.broadcast %212 : vector<32x1xf32> to vector<32x128xf32>
    %221 = arith.subf %204, %220 : vector<32x128xf32>
    %cst_80 = arith.constant 9.99999997E-7 : f32
    %222 = vector.broadcast %cst_80 : f32 to vector<32x1xf32>
    %223 = arith.addf %219, %222 : vector<32x1xf32>
    %224 = math.rsqrt %223 : vector<32x1xf32>
    %225 = vector.broadcast %224 : vector<32x1xf32> to vector<32x128xf32>
    %226 = arith.mulf %221, %225 : vector<32x128xf32>
    %227 = vector.broadcast %206 : vector<1x128xf32> to vector<32x128xf32>
    %228 = arith.mulf %226, %227 : vector<32x128xf32>
    %229 = vector.broadcast %208 : vector<1x128xf32> to vector<32x128xf32>
    %230 = arith.addf %228, %229 : vector<32x128xf32>
    %231 = arith.truncf %230 : vector<32x128xf32> to vector<32x128xbf16>
    %c0_81 = arith.constant 0 : index
    %c0_82 = arith.constant 0 : index
    %c0_83 = arith.constant 0 : index
    %232 = vector.load %arg12[%c0_81, %c0_82, %c0_83] : memref<2x128x256xbf16, #tpu.memory_space<vmem>>, vector<1x128x256xbf16>
    %233 = vector.shape_cast %232 : vector<1x128x256xbf16> to vector<128x256xbf16>
    %cst_84 = arith.constant dense<0.000000e+00> : vector<32x256xf32>
    %234 = tpu.matmul %231, %233, %cst_84 {dimension_numbers = #tpu.dot_dimension_numbers<[1], [0], [0], [1], [0, 0, 1, 1], [], []>} : vector<32x128xbf16>, vector<128x256xbf16>, vector<32x256xf32> -> vector<32x256xf32>
    %c0_85 = arith.constant 0 : index
    %c0_86 = arith.constant 0 : index
    %c0_87 = arith.constant 0 : index
    %235 = vector.load %arg13[%c0_85, %c0_86, %c0_87] : memref<2x1x256xf32, #tpu.memory_space<vmem>>, vector<1x1x256xf32>
    %236 = vector.shape_cast %235 : vector<1x1x256xf32> to vector<1x256xf32>
    %237 = vector.broadcast %236 : vector<1x256xf32> to vector<32x256xf32>
    %238 = arith.addf %234, %237 : vector<32x256xf32>
    %cst_88 = arith.constant 5.000000e-01 : f32
    %239 = vector.broadcast %cst_88 : f32 to vector<32x256xf32>
    %240 = arith.mulf %239, %238 : vector<32x256xf32>
    %cst_89 = arith.constant 4.471500e-02 : f32
    %241 = vector.broadcast %cst_89 : f32 to vector<32x256xf32>
    %242 = arith.mulf %241, %238 : vector<32x256xf32>
    %243 = arith.mulf %242, %238 : vector<32x256xf32>
    %244 = arith.mulf %243, %238 : vector<32x256xf32>
    %245 = arith.addf %238, %244 : vector<32x256xf32>
    %cst_90 = arith.constant 0.797884583 : f32
    %246 = vector.broadcast %cst_90 : f32 to vector<32x256xf32>
    %247 = arith.mulf %246, %245 : vector<32x256xf32>
    %248 = math.tanh %247 : vector<32x256xf32>
    %cst_91 = arith.constant 1.000000e+00 : f32
    %249 = vector.broadcast %cst_91 : f32 to vector<32x256xf32>
    %250 = arith.addf %249, %248 : vector<32x256xf32>
    %251 = arith.mulf %240, %250 : vector<32x256xf32>
    %252 = arith.truncf %251 : vector<32x256xf32> to vector<32x256xbf16>
    %c0_92 = arith.constant 0 : index
    %c0_93 = arith.constant 0 : index
    %c0_94 = arith.constant 0 : index
    %253 = vector.load %arg14[%c0_92, %c0_93, %c0_94] : memref<2x256x128xbf16, #tpu.memory_space<vmem>>, vector<1x256x128xbf16>
    %254 = vector.shape_cast %253 : vector<1x256x128xbf16> to vector<256x128xbf16>
    %cst_95 = arith.constant dense<0.000000e+00> : vector<32x128xf32>
    %255 = tpu.matmul %252, %254, %cst_95 {dimension_numbers = #tpu.dot_dimension_numbers<[1], [0], [0], [1], [0, 0, 1, 1], [], []>} : vector<32x256xbf16>, vector<256x128xbf16>, vector<32x128xf32> -> vector<32x128xf32>
    %c0_96 = arith.constant 0 : index
    %c0_97 = arith.constant 0 : index
    %c0_98 = arith.constant 0 : index
    %256 = vector.load %arg15[%c0_96, %c0_97, %c0_98] : memref<2x1x128xf32, #tpu.memory_space<vmem>>, vector<1x1x128xf32>
    %257 = vector.shape_cast %256 : vector<1x1x128xf32> to vector<1x128xf32>
    %258 = vector.broadcast %257 : vector<1x128xf32> to vector<32x128xf32>
    %259 = arith.addf %255, %258 : vector<32x128xf32>
    %260 = arith.addf %204, %259 : vector<32x128xf32>
    %c1 = arith.constant 1 : index
    %c0_99 = arith.constant 0 : index
    %c0_100 = arith.constant 0 : index
    %261 = vector.load %arg4[%c1, %c0_99, %c0_100] : memref<2x1x128xf32, #tpu.memory_space<vmem>>, vector<1x1x128xf32>
    %262 = vector.shape_cast %261 : vector<1x1x128xf32> to vector<1x128xf32>
    %c1_101 = arith.constant 1 : index
    %c0_102 = arith.constant 0 : index
    %c0_103 = arith.constant 0 : index
    %263 = vector.load %arg5[%c1_101, %c0_102, %c0_103] : memref<2x1x128xf32, #tpu.memory_space<vmem>>, vector<1x1x128xf32>
    %264 = vector.shape_cast %263 : vector<1x1x128xf32> to vector<1x128xf32>
    %cst_104 = arith.constant dense<0.000000e+00> : vector<32xf32>
    %265 = vector.multi_reduction <add>, %260, %cst_104 [1] : vector<32x128xf32> to vector<32xf32>
    %266 = vector.shape_cast %265 : vector<32xf32> to vector<32x1xf32>
    %cst_105 = arith.constant 1.280000e+02 : f32
    %267 = vector.broadcast %cst_105 : f32 to vector<32x1xf32>
    %268 = arith.divf %266, %267 : vector<32x1xf32>
    %269 = vector.broadcast %268 : vector<32x1xf32> to vector<32x128xf32>
    %270 = arith.subf %260, %269 : vector<32x128xf32>
    %271 = arith.mulf %270, %270 : vector<32x128xf32>
    %cst_106 = arith.constant dense<0.000000e+00> : vector<32xf32>
    %272 = vector.multi_reduction <add>, %271, %cst_106 [1] : vector<32x128xf32> to vector<32xf32>
    %273 = vector.shape_cast %272 : vector<32xf32> to vector<32x1xf32>
    %cst_107 = arith.constant 1.280000e+02 : f32
    %274 = vector.broadcast %cst_107 : f32 to vector<32x1xf32>
    %275 = arith.divf %273, %274 : vector<32x1xf32>
    %276 = vector.broadcast %268 : vector<32x1xf32> to vector<32x128xf32>
    %277 = arith.subf %260, %276 : vector<32x128xf32>
    %cst_108 = arith.constant 9.99999997E-7 : f32
    %278 = vector.broadcast %cst_108 : f32 to vector<32x1xf32>
    %279 = arith.addf %275, %278 : vector<32x1xf32>
    %280 = math.rsqrt %279 : vector<32x1xf32>
    %281 = vector.broadcast %280 : vector<32x1xf32> to vector<32x128xf32>
    %282 = arith.mulf %277, %281 : vector<32x128xf32>
    %283 = vector.broadcast %262 : vector<1x128xf32> to vector<32x128xf32>
    %284 = arith.mulf %282, %283 : vector<32x128xf32>
    %285 = vector.broadcast %264 : vector<1x128xf32> to vector<32x128xf32>
    %286 = arith.addf %284, %285 : vector<32x128xf32>
    %287 = arith.truncf %286 : vector<32x128xf32> to vector<32x128xbf16>
    %c1_109 = arith.constant 1 : index
    %c0_110 = arith.constant 0 : index
    %c0_111 = arith.constant 0 : index
    %288 = vector.load %arg6[%c1_109, %c0_110, %c0_111] : memref<2x128x384xbf16, #tpu.memory_space<vmem>>, vector<1x128x384xbf16>
    %289 = vector.shape_cast %288 : vector<1x128x384xbf16> to vector<128x384xbf16>
    %cst_112 = arith.constant dense<0.000000e+00> : vector<32x384xf32>
    %290 = tpu.matmul %287, %289, %cst_112 {dimension_numbers = #tpu.dot_dimension_numbers<[1], [0], [0], [1], [0, 0, 1, 1], [], []>} : vector<32x128xbf16>, vector<128x384xbf16>, vector<32x384xf32> -> vector<32x384xf32>
    %c1_113 = arith.constant 1 : index
    %c0_114 = arith.constant 0 : index
    %c0_115 = arith.constant 0 : index
    %291 = vector.load %arg7[%c1_113, %c0_114, %c0_115] : memref<2x1x384xf32, #tpu.memory_space<vmem>>, vector<1x1x384xf32>
    %292 = vector.shape_cast %291 : vector<1x1x384xf32> to vector<1x384xf32>
    %293 = vector.broadcast %292 : vector<1x384xf32> to vector<32x384xf32>
    %294 = arith.addf %290, %293 : vector<32x384xf32>
    %295 = arith.truncf %294 : vector<32x384xf32> to vector<32x384xbf16>
    %296 = vector.extract_strided_slice %295 {offsets = [0, 0], sizes = [32, 128], strides = [1, 1]} : vector<32x384xbf16> to vector<32x128xbf16>
    %297 = vector.extract_strided_slice %295 {offsets = [0, 128], sizes = [32, 128], strides = [1, 1]} : vector<32x384xbf16> to vector<32x128xbf16>
    %298 = vector.extract_strided_slice %295 {offsets = [0, 256], sizes = [32, 128], strides = [1, 1]} : vector<32x384xbf16> to vector<32x128xbf16>
    %299 = vector.extract_strided_slice %296 {offsets = [0, 0], sizes = [32, 32], strides = [1, 1]} : vector<32x128xbf16> to vector<32x32xbf16>
    %300 = vector.extract_strided_slice %297 {offsets = [0, 0], sizes = [32, 32], strides = [1, 1]} : vector<32x128xbf16> to vector<32x32xbf16>
    %301 = vector.extract_strided_slice %298 {offsets = [0, 0], sizes = [32, 32], strides = [1, 1]} : vector<32x128xbf16> to vector<32x32xbf16>
    %302 = vector.extract_strided_slice %299 {offsets = [0, 0], sizes = [16, 32], strides = [1, 1]} : vector<32x32xbf16> to vector<16x32xbf16>
    %303 = vector.extract_strided_slice %300 {offsets = [0, 0], sizes = [16, 32], strides = [1, 1]} : vector<32x32xbf16> to vector<16x32xbf16>
    %cst_116 = arith.constant dense<0.000000e+00> : vector<16x16xf32>
    %304 = tpu.matmul %302, %303, %cst_116 {dimension_numbers = #tpu.dot_dimension_numbers<[1], [1], [0], [0], [0, 0, 1, 0], [], []>} : vector<16x32xbf16>, vector<16x32xbf16>, vector<16x16xf32> -> vector<16x16xf32>
    %cst_117 = arith.constant 0.176776692 : f32
    %305 = vector.broadcast %cst_117 : f32 to vector<16x16xf32>
    %306 = arith.mulf %304, %305 : vector<16x16xf32>
    %cst_118 = arith.constant dense<0xFF800000> : vector<16xf32>
    %307 = vector.multi_reduction <maximumf>, %306, %cst_118 [1] : vector<16x16xf32> to vector<16xf32>
    %308 = vector.shape_cast %307 : vector<16xf32> to vector<16x1xf32>
    %309 = vector.broadcast %308 : vector<16x1xf32> to vector<16x16xf32>
    %310 = arith.subf %306, %309 : vector<16x16xf32>
    %311 = math.exp %310 : vector<16x16xf32>
    %cst_119 = arith.constant dense<0.000000e+00> : vector<16xf32>
    %312 = vector.multi_reduction <add>, %311, %cst_119 [1] : vector<16x16xf32> to vector<16xf32>
    %313 = vector.shape_cast %312 : vector<16xf32> to vector<16x1xf32>
    %314 = vector.broadcast %313 : vector<16x1xf32> to vector<16x16xf32>
    %315 = arith.divf %311, %314 : vector<16x16xf32>
    %316 = arith.truncf %315 : vector<16x16xf32> to vector<16x16xbf16>
    %317 = vector.extract_strided_slice %301 {offsets = [0, 0], sizes = [16, 32], strides = [1, 1]} : vector<32x32xbf16> to vector<16x32xbf16>
    %cst_120 = arith.constant dense<0.000000e+00> : vector<16x32xf32>
    %318 = tpu.matmul %316, %317, %cst_120 {dimension_numbers = #tpu.dot_dimension_numbers<[1], [0], [0], [1], [0, 0, 1, 1], [], []>} : vector<16x16xbf16>, vector<16x32xbf16>, vector<16x32xf32> -> vector<16x32xf32>
    %319 = vector.extract_strided_slice %299 {offsets = [16, 0], sizes = [16, 32], strides = [1, 1]} : vector<32x32xbf16> to vector<16x32xbf16>
    %320 = vector.extract_strided_slice %300 {offsets = [16, 0], sizes = [16, 32], strides = [1, 1]} : vector<32x32xbf16> to vector<16x32xbf16>
    %cst_121 = arith.constant dense<0.000000e+00> : vector<16x16xf32>
    %321 = tpu.matmul %319, %320, %cst_121 {dimension_numbers = #tpu.dot_dimension_numbers<[1], [1], [0], [0], [0, 0, 1, 0], [], []>} : vector<16x32xbf16>, vector<16x32xbf16>, vector<16x16xf32> -> vector<16x16xf32>
    %cst_122 = arith.constant 0.176776692 : f32
    %322 = vector.broadcast %cst_122 : f32 to vector<16x16xf32>
    %323 = arith.mulf %321, %322 : vector<16x16xf32>
    %cst_123 = arith.constant dense<0xFF800000> : vector<16xf32>
    %324 = vector.multi_reduction <maximumf>, %323, %cst_123 [1] : vector<16x16xf32> to vector<16xf32>
    %325 = vector.shape_cast %324 : vector<16xf32> to vector<16x1xf32>
    %326 = vector.broadcast %325 : vector<16x1xf32> to vector<16x16xf32>
    %327 = arith.subf %323, %326 : vector<16x16xf32>
    %328 = math.exp %327 : vector<16x16xf32>
    %cst_124 = arith.constant dense<0.000000e+00> : vector<16xf32>
    %329 = vector.multi_reduction <add>, %328, %cst_124 [1] : vector<16x16xf32> to vector<16xf32>
    %330 = vector.shape_cast %329 : vector<16xf32> to vector<16x1xf32>
    %331 = vector.broadcast %330 : vector<16x1xf32> to vector<16x16xf32>
    %332 = arith.divf %328, %331 : vector<16x16xf32>
    %333 = arith.truncf %332 : vector<16x16xf32> to vector<16x16xbf16>
    %334 = vector.extract_strided_slice %301 {offsets = [16, 0], sizes = [16, 32], strides = [1, 1]} : vector<32x32xbf16> to vector<16x32xbf16>
    %cst_125 = arith.constant dense<0.000000e+00> : vector<16x32xf32>
    %335 = tpu.matmul %333, %334, %cst_125 {dimension_numbers = #tpu.dot_dimension_numbers<[1], [0], [0], [1], [0, 0, 1, 1], [], []>} : vector<16x16xbf16>, vector<16x32xbf16>, vector<16x32xf32> -> vector<16x32xf32>
    %336 = tpu.concatenate %318, %335 in 0 : vector<16x32xf32>, vector<16x32xf32> -> vector<32x32xf32>
    %337 = vector.extract_strided_slice %296 {offsets = [0, 32], sizes = [32, 32], strides = [1, 1]} : vector<32x128xbf16> to vector<32x32xbf16>
    %338 = vector.extract_strided_slice %297 {offsets = [0, 32], sizes = [32, 32], strides = [1, 1]} : vector<32x128xbf16> to vector<32x32xbf16>
    %339 = vector.extract_strided_slice %298 {offsets = [0, 32], sizes = [32, 32], strides = [1, 1]} : vector<32x128xbf16> to vector<32x32xbf16>
    %340 = vector.extract_strided_slice %337 {offsets = [0, 0], sizes = [16, 32], strides = [1, 1]} : vector<32x32xbf16> to vector<16x32xbf16>
    %341 = vector.extract_strided_slice %338 {offsets = [0, 0], sizes = [16, 32], strides = [1, 1]} : vector<32x32xbf16> to vector<16x32xbf16>
    %cst_126 = arith.constant dense<0.000000e+00> : vector<16x16xf32>
    %342 = tpu.matmul %340, %341, %cst_126 {dimension_numbers = #tpu.dot_dimension_numbers<[1], [1], [0], [0], [0, 0, 1, 0], [], []>} : vector<16x32xbf16>, vector<16x32xbf16>, vector<16x16xf32> -> vector<16x16xf32>
    %cst_127 = arith.constant 0.176776692 : f32
    %343 = vector.broadcast %cst_127 : f32 to vector<16x16xf32>
    %344 = arith.mulf %342, %343 : vector<16x16xf32>
    %cst_128 = arith.constant dense<0xFF800000> : vector<16xf32>
    %345 = vector.multi_reduction <maximumf>, %344, %cst_128 [1] : vector<16x16xf32> to vector<16xf32>
    %346 = vector.shape_cast %345 : vector<16xf32> to vector<16x1xf32>
    %347 = vector.broadcast %346 : vector<16x1xf32> to vector<16x16xf32>
    %348 = arith.subf %344, %347 : vector<16x16xf32>
    %349 = math.exp %348 : vector<16x16xf32>
    %cst_129 = arith.constant dense<0.000000e+00> : vector<16xf32>
    %350 = vector.multi_reduction <add>, %349, %cst_129 [1] : vector<16x16xf32> to vector<16xf32>
    %351 = vector.shape_cast %350 : vector<16xf32> to vector<16x1xf32>
    %352 = vector.broadcast %351 : vector<16x1xf32> to vector<16x16xf32>
    %353 = arith.divf %349, %352 : vector<16x16xf32>
    %354 = arith.truncf %353 : vector<16x16xf32> to vector<16x16xbf16>
    %355 = vector.extract_strided_slice %339 {offsets = [0, 0], sizes = [16, 32], strides = [1, 1]} : vector<32x32xbf16> to vector<16x32xbf16>
    %cst_130 = arith.constant dense<0.000000e+00> : vector<16x32xf32>
    %356 = tpu.matmul %354, %355, %cst_130 {dimension_numbers = #tpu.dot_dimension_numbers<[1], [0], [0], [1], [0, 0, 1, 1], [], []>} : vector<16x16xbf16>, vector<16x32xbf16>, vector<16x32xf32> -> vector<16x32xf32>
    %357 = vector.extract_strided_slice %337 {offsets = [16, 0], sizes = [16, 32], strides = [1, 1]} : vector<32x32xbf16> to vector<16x32xbf16>
    %358 = vector.extract_strided_slice %338 {offsets = [16, 0], sizes = [16, 32], strides = [1, 1]} : vector<32x32xbf16> to vector<16x32xbf16>
    %cst_131 = arith.constant dense<0.000000e+00> : vector<16x16xf32>
    %359 = tpu.matmul %357, %358, %cst_131 {dimension_numbers = #tpu.dot_dimension_numbers<[1], [1], [0], [0], [0, 0, 1, 0], [], []>} : vector<16x32xbf16>, vector<16x32xbf16>, vector<16x16xf32> -> vector<16x16xf32>
    %cst_132 = arith.constant 0.176776692 : f32
    %360 = vector.broadcast %cst_132 : f32 to vector<16x16xf32>
    %361 = arith.mulf %359, %360 : vector<16x16xf32>
    %cst_133 = arith.constant dense<0xFF800000> : vector<16xf32>
    %362 = vector.multi_reduction <maximumf>, %361, %cst_133 [1] : vector<16x16xf32> to vector<16xf32>
    %363 = vector.shape_cast %362 : vector<16xf32> to vector<16x1xf32>
    %364 = vector.broadcast %363 : vector<16x1xf32> to vector<16x16xf32>
    %365 = arith.subf %361, %364 : vector<16x16xf32>
    %366 = math.exp %365 : vector<16x16xf32>
    %cst_134 = arith.constant dense<0.000000e+00> : vector<16xf32>
    %367 = vector.multi_reduction <add>, %366, %cst_134 [1] : vector<16x16xf32> to vector<16xf32>
    %368 = vector.shape_cast %367 : vector<16xf32> to vector<16x1xf32>
    %369 = vector.broadcast %368 : vector<16x1xf32> to vector<16x16xf32>
    %370 = arith.divf %366, %369 : vector<16x16xf32>
    %371 = arith.truncf %370 : vector<16x16xf32> to vector<16x16xbf16>
    %372 = vector.extract_strided_slice %339 {offsets = [16, 0], sizes = [16, 32], strides = [1, 1]} : vector<32x32xbf16> to vector<16x32xbf16>
    %cst_135 = arith.constant dense<0.000000e+00> : vector<16x32xf32>
    %373 = tpu.matmul %371, %372, %cst_135 {dimension_numbers = #tpu.dot_dimension_numbers<[1], [0], [0], [1], [0, 0, 1, 1], [], []>} : vector<16x16xbf16>, vector<16x32xbf16>, vector<16x32xf32> -> vector<16x32xf32>
    %374 = tpu.concatenate %356, %373 in 0 : vector<16x32xf32>, vector<16x32xf32> -> vector<32x32xf32>
    %375 = vector.extract_strided_slice %296 {offsets = [0, 64], sizes = [32, 32], strides = [1, 1]} : vector<32x128xbf16> to vector<32x32xbf16>
    %376 = vector.extract_strided_slice %297 {offsets = [0, 64], sizes = [32, 32], strides = [1, 1]} : vector<32x128xbf16> to vector<32x32xbf16>
    %377 = vector.extract_strided_slice %298 {offsets = [0, 64], sizes = [32, 32], strides = [1, 1]} : vector<32x128xbf16> to vector<32x32xbf16>
    %378 = vector.extract_strided_slice %375 {offsets = [0, 0], sizes = [16, 32], strides = [1, 1]} : vector<32x32xbf16> to vector<16x32xbf16>
    %379 = vector.extract_strided_slice %376 {offsets = [0, 0], sizes = [16, 32], strides = [1, 1]} : vector<32x32xbf16> to vector<16x32xbf16>
    %cst_136 = arith.constant dense<0.000000e+00> : vector<16x16xf32>
    %380 = tpu.matmul %378, %379, %cst_136 {dimension_numbers = #tpu.dot_dimension_numbers<[1], [1], [0], [0], [0, 0, 1, 0], [], []>} : vector<16x32xbf16>, vector<16x32xbf16>, vector<16x16xf32> -> vector<16x16xf32>
    %cst_137 = arith.constant 0.176776692 : f32
    %381 = vector.broadcast %cst_137 : f32 to vector<16x16xf32>
    %382 = arith.mulf %380, %381 : vector<16x16xf32>
    %cst_138 = arith.constant dense<0xFF800000> : vector<16xf32>
    %383 = vector.multi_reduction <maximumf>, %382, %cst_138 [1] : vector<16x16xf32> to vector<16xf32>
    %384 = vector.shape_cast %383 : vector<16xf32> to vector<16x1xf32>
    %385 = vector.broadcast %384 : vector<16x1xf32> to vector<16x16xf32>
    %386 = arith.subf %382, %385 : vector<16x16xf32>
    %387 = math.exp %386 : vector<16x16xf32>
    %cst_139 = arith.constant dense<0.000000e+00> : vector<16xf32>
    %388 = vector.multi_reduction <add>, %387, %cst_139 [1] : vector<16x16xf32> to vector<16xf32>
    %389 = vector.shape_cast %388 : vector<16xf32> to vector<16x1xf32>
    %390 = vector.broadcast %389 : vector<16x1xf32> to vector<16x16xf32>
    %391 = arith.divf %387, %390 : vector<16x16xf32>
    %392 = arith.truncf %391 : vector<16x16xf32> to vector<16x16xbf16>
    %393 = vector.extract_strided_slice %377 {offsets = [0, 0], sizes = [16, 32], strides = [1, 1]} : vector<32x32xbf16> to vector<16x32xbf16>
    %cst_140 = arith.constant dense<0.000000e+00> : vector<16x32xf32>
    %394 = tpu.matmul %392, %393, %cst_140 {dimension_numbers = #tpu.dot_dimension_numbers<[1], [0], [0], [1], [0, 0, 1, 1], [], []>} : vector<16x16xbf16>, vector<16x32xbf16>, vector<16x32xf32> -> vector<16x32xf32>
    %395 = vector.extract_strided_slice %375 {offsets = [16, 0], sizes = [16, 32], strides = [1, 1]} : vector<32x32xbf16> to vector<16x32xbf16>
    %396 = vector.extract_strided_slice %376 {offsets = [16, 0], sizes = [16, 32], strides = [1, 1]} : vector<32x32xbf16> to vector<16x32xbf16>
    %cst_141 = arith.constant dense<0.000000e+00> : vector<16x16xf32>
    %397 = tpu.matmul %395, %396, %cst_141 {dimension_numbers = #tpu.dot_dimension_numbers<[1], [1], [0], [0], [0, 0, 1, 0], [], []>} : vector<16x32xbf16>, vector<16x32xbf16>, vector<16x16xf32> -> vector<16x16xf32>
    %cst_142 = arith.constant 0.176776692 : f32
    %398 = vector.broadcast %cst_142 : f32 to vector<16x16xf32>
    %399 = arith.mulf %397, %398 : vector<16x16xf32>
    %cst_143 = arith.constant dense<0xFF800000> : vector<16xf32>
    %400 = vector.multi_reduction <maximumf>, %399, %cst_143 [1] : vector<16x16xf32> to vector<16xf32>
    %401 = vector.shape_cast %400 : vector<16xf32> to vector<16x1xf32>
    %402 = vector.broadcast %401 : vector<16x1xf32> to vector<16x16xf32>
    %403 = arith.subf %399, %402 : vector<16x16xf32>
    %404 = math.exp %403 : vector<16x16xf32>
    %cst_144 = arith.constant dense<0.000000e+00> : vector<16xf32>
    %405 = vector.multi_reduction <add>, %404, %cst_144 [1] : vector<16x16xf32> to vector<16xf32>
    %406 = vector.shape_cast %405 : vector<16xf32> to vector<16x1xf32>
    %407 = vector.broadcast %406 : vector<16x1xf32> to vector<16x16xf32>
    %408 = arith.divf %404, %407 : vector<16x16xf32>
    %409 = arith.truncf %408 : vector<16x16xf32> to vector<16x16xbf16>
    %410 = vector.extract_strided_slice %377 {offsets = [16, 0], sizes = [16, 32], strides = [1, 1]} : vector<32x32xbf16> to vector<16x32xbf16>
    %cst_145 = arith.constant dense<0.000000e+00> : vector<16x32xf32>
    %411 = tpu.matmul %409, %410, %cst_145 {dimension_numbers = #tpu.dot_dimension_numbers<[1], [0], [0], [1], [0, 0, 1, 1], [], []>} : vector<16x16xbf16>, vector<16x32xbf16>, vector<16x32xf32> -> vector<16x32xf32>
    %412 = tpu.concatenate %394, %411 in 0 : vector<16x32xf32>, vector<16x32xf32> -> vector<32x32xf32>
    %413 = vector.extract_strided_slice %296 {offsets = [0, 96], sizes = [32, 32], strides = [1, 1]} : vector<32x128xbf16> to vector<32x32xbf16>
    %414 = vector.extract_strided_slice %297 {offsets = [0, 96], sizes = [32, 32], strides = [1, 1]} : vector<32x128xbf16> to vector<32x32xbf16>
    %415 = vector.extract_strided_slice %298 {offsets = [0, 96], sizes = [32, 32], strides = [1, 1]} : vector<32x128xbf16> to vector<32x32xbf16>
    %416 = vector.extract_strided_slice %413 {offsets = [0, 0], sizes = [16, 32], strides = [1, 1]} : vector<32x32xbf16> to vector<16x32xbf16>
    %417 = vector.extract_strided_slice %414 {offsets = [0, 0], sizes = [16, 32], strides = [1, 1]} : vector<32x32xbf16> to vector<16x32xbf16>
    %cst_146 = arith.constant dense<0.000000e+00> : vector<16x16xf32>
    %418 = tpu.matmul %416, %417, %cst_146 {dimension_numbers = #tpu.dot_dimension_numbers<[1], [1], [0], [0], [0, 0, 1, 0], [], []>} : vector<16x32xbf16>, vector<16x32xbf16>, vector<16x16xf32> -> vector<16x16xf32>
    %cst_147 = arith.constant 0.176776692 : f32
    %419 = vector.broadcast %cst_147 : f32 to vector<16x16xf32>
    %420 = arith.mulf %418, %419 : vector<16x16xf32>
    %cst_148 = arith.constant dense<0xFF800000> : vector<16xf32>
    %421 = vector.multi_reduction <maximumf>, %420, %cst_148 [1] : vector<16x16xf32> to vector<16xf32>
    %422 = vector.shape_cast %421 : vector<16xf32> to vector<16x1xf32>
    %423 = vector.broadcast %422 : vector<16x1xf32> to vector<16x16xf32>
    %424 = arith.subf %420, %423 : vector<16x16xf32>
    %425 = math.exp %424 : vector<16x16xf32>
    %cst_149 = arith.constant dense<0.000000e+00> : vector<16xf32>
    %426 = vector.multi_reduction <add>, %425, %cst_149 [1] : vector<16x16xf32> to vector<16xf32>
    %427 = vector.shape_cast %426 : vector<16xf32> to vector<16x1xf32>
    %428 = vector.broadcast %427 : vector<16x1xf32> to vector<16x16xf32>
    %429 = arith.divf %425, %428 : vector<16x16xf32>
    %430 = arith.truncf %429 : vector<16x16xf32> to vector<16x16xbf16>
    %431 = vector.extract_strided_slice %415 {offsets = [0, 0], sizes = [16, 32], strides = [1, 1]} : vector<32x32xbf16> to vector<16x32xbf16>
    %cst_150 = arith.constant dense<0.000000e+00> : vector<16x32xf32>
    %432 = tpu.matmul %430, %431, %cst_150 {dimension_numbers = #tpu.dot_dimension_numbers<[1], [0], [0], [1], [0, 0, 1, 1], [], []>} : vector<16x16xbf16>, vector<16x32xbf16>, vector<16x32xf32> -> vector<16x32xf32>
    %433 = vector.extract_strided_slice %413 {offsets = [16, 0], sizes = [16, 32], strides = [1, 1]} : vector<32x32xbf16> to vector<16x32xbf16>
    %434 = vector.extract_strided_slice %414 {offsets = [16, 0], sizes = [16, 32], strides = [1, 1]} : vector<32x32xbf16> to vector<16x32xbf16>
    %cst_151 = arith.constant dense<0.000000e+00> : vector<16x16xf32>
    %435 = tpu.matmul %433, %434, %cst_151 {dimension_numbers = #tpu.dot_dimension_numbers<[1], [1], [0], [0], [0, 0, 1, 0], [], []>} : vector<16x32xbf16>, vector<16x32xbf16>, vector<16x16xf32> -> vector<16x16xf32>
    %cst_152 = arith.constant 0.176776692 : f32
    %436 = vector.broadcast %cst_152 : f32 to vector<16x16xf32>
    %437 = arith.mulf %435, %436 : vector<16x16xf32>
    %cst_153 = arith.constant dense<0xFF800000> : vector<16xf32>
    %438 = vector.multi_reduction <maximumf>, %437, %cst_153 [1] : vector<16x16xf32> to vector<16xf32>
    %439 = vector.shape_cast %438 : vector<16xf32> to vector<16x1xf32>
    %440 = vector.broadcast %439 : vector<16x1xf32> to vector<16x16xf32>
    %441 = arith.subf %437, %440 : vector<16x16xf32>
    %442 = math.exp %441 : vector<16x16xf32>
    %cst_154 = arith.constant dense<0.000000e+00> : vector<16xf32>
    %443 = vector.multi_reduction <add>, %442, %cst_154 [1] : vector<16x16xf32> to vector<16xf32>
    %444 = vector.shape_cast %443 : vector<16xf32> to vector<16x1xf32>
    %445 = vector.broadcast %444 : vector<16x1xf32> to vector<16x16xf32>
    %446 = arith.divf %442, %445 : vector<16x16xf32>
    %447 = arith.truncf %446 : vector<16x16xf32> to vector<16x16xbf16>
    %448 = vector.extract_strided_slice %415 {offsets = [16, 0], sizes = [16, 32], strides = [1, 1]} : vector<32x32xbf16> to vector<16x32xbf16>
    %cst_155 = arith.constant dense<0.000000e+00> : vector<16x32xf32>
    %449 = tpu.matmul %447, %448, %cst_155 {dimension_numbers = #tpu.dot_dimension_numbers<[1], [0], [0], [1], [0, 0, 1, 1], [], []>} : vector<16x16xbf16>, vector<16x32xbf16>, vector<16x32xf32> -> vector<16x32xf32>
    %450 = tpu.concatenate %432, %449 in 0 : vector<16x32xf32>, vector<16x32xf32> -> vector<32x32xf32>
    %451 = tpu.concatenate %336, %374, %412, %450 in 1 : vector<32x32xf32>, vector<32x32xf32>, vector<32x32xf32>, vector<32x32xf32> -> vector<32x128xf32>
    %452 = arith.truncf %451 : vector<32x128xf32> to vector<32x128xbf16>
    %c1_156 = arith.constant 1 : index
    %c0_157 = arith.constant 0 : index
    %c0_158 = arith.constant 0 : index
    %453 = vector.load %arg8[%c1_156, %c0_157, %c0_158] : memref<2x128x128xbf16, #tpu.memory_space<vmem>>, vector<1x128x128xbf16>
    %454 = vector.shape_cast %453 : vector<1x128x128xbf16> to vector<128x128xbf16>
    %cst_159 = arith.constant dense<0.000000e+00> : vector<32x128xf32>
    %455 = tpu.matmul %452, %454, %cst_159 {dimension_numbers = #tpu.dot_dimension_numbers<[1], [0], [0], [1], [0, 0, 1, 1], [], []>} : vector<32x128xbf16>, vector<128x128xbf16>, vector<32x128xf32> -> vector<32x128xf32>
    %c1_160 = arith.constant 1 : index
    %c0_161 = arith.constant 0 : index
    %c0_162 = arith.constant 0 : index
    %456 = vector.load %arg9[%c1_160, %c0_161, %c0_162] : memref<2x1x128xf32, #tpu.memory_space<vmem>>, vector<1x1x128xf32>
    %457 = vector.shape_cast %456 : vector<1x1x128xf32> to vector<1x128xf32>
    %458 = vector.broadcast %457 : vector<1x128xf32> to vector<32x128xf32>
    %459 = arith.addf %455, %458 : vector<32x128xf32>
    %460 = arith.addf %260, %459 : vector<32x128xf32>
    %c1_163 = arith.constant 1 : index
    %c0_164 = arith.constant 0 : index
    %c0_165 = arith.constant 0 : index
    %461 = vector.load %arg10[%c1_163, %c0_164, %c0_165] : memref<2x1x128xf32, #tpu.memory_space<vmem>>, vector<1x1x128xf32>
    %462 = vector.shape_cast %461 : vector<1x1x128xf32> to vector<1x128xf32>
    %c1_166 = arith.constant 1 : index
    %c0_167 = arith.constant 0 : index
    %c0_168 = arith.constant 0 : index
    %463 = vector.load %arg11[%c1_166, %c0_167, %c0_168] : memref<2x1x128xf32, #tpu.memory_space<vmem>>, vector<1x1x128xf32>
    %464 = vector.shape_cast %463 : vector<1x1x128xf32> to vector<1x128xf32>
    %cst_169 = arith.constant dense<0.000000e+00> : vector<32xf32>
    %465 = vector.multi_reduction <add>, %460, %cst_169 [1] : vector<32x128xf32> to vector<32xf32>
    %466 = vector.shape_cast %465 : vector<32xf32> to vector<32x1xf32>
    %cst_170 = arith.constant 1.280000e+02 : f32
    %467 = vector.broadcast %cst_170 : f32 to vector<32x1xf32>
    %468 = arith.divf %466, %467 : vector<32x1xf32>
    %469 = vector.broadcast %468 : vector<32x1xf32> to vector<32x128xf32>
    %470 = arith.subf %460, %469 : vector<32x128xf32>
    %471 = arith.mulf %470, %470 : vector<32x128xf32>
    %cst_171 = arith.constant dense<0.000000e+00> : vector<32xf32>
    %472 = vector.multi_reduction <add>, %471, %cst_171 [1] : vector<32x128xf32> to vector<32xf32>
    %473 = vector.shape_cast %472 : vector<32xf32> to vector<32x1xf32>
    %cst_172 = arith.constant 1.280000e+02 : f32
    %474 = vector.broadcast %cst_172 : f32 to vector<32x1xf32>
    %475 = arith.divf %473, %474 : vector<32x1xf32>
    %476 = vector.broadcast %468 : vector<32x1xf32> to vector<32x128xf32>
    %477 = arith.subf %460, %476 : vector<32x128xf32>
    %cst_173 = arith.constant 9.99999997E-7 : f32
    %478 = vector.broadcast %cst_173 : f32 to vector<32x1xf32>
    %479 = arith.addf %475, %478 : vector<32x1xf32>
    %480 = math.rsqrt %479 : vector<32x1xf32>
    %481 = vector.broadcast %480 : vector<32x1xf32> to vector<32x128xf32>
    %482 = arith.mulf %477, %481 : vector<32x128xf32>
    %483 = vector.broadcast %462 : vector<1x128xf32> to vector<32x128xf32>
    %484 = arith.mulf %482, %483 : vector<32x128xf32>
    %485 = vector.broadcast %464 : vector<1x128xf32> to vector<32x128xf32>
    %486 = arith.addf %484, %485 : vector<32x128xf32>
    %487 = arith.truncf %486 : vector<32x128xf32> to vector<32x128xbf16>
    %c1_174 = arith.constant 1 : index
    %c0_175 = arith.constant 0 : index
    %c0_176 = arith.constant 0 : index
    %488 = vector.load %arg12[%c1_174, %c0_175, %c0_176] : memref<2x128x256xbf16, #tpu.memory_space<vmem>>, vector<1x128x256xbf16>
    %489 = vector.shape_cast %488 : vector<1x128x256xbf16> to vector<128x256xbf16>
    %cst_177 = arith.constant dense<0.000000e+00> : vector<32x256xf32>
    %490 = tpu.matmul %487, %489, %cst_177 {dimension_numbers = #tpu.dot_dimension_numbers<[1], [0], [0], [1], [0, 0, 1, 1], [], []>} : vector<32x128xbf16>, vector<128x256xbf16>, vector<32x256xf32> -> vector<32x256xf32>
    %c1_178 = arith.constant 1 : index
    %c0_179 = arith.constant 0 : index
    %c0_180 = arith.constant 0 : index
    %491 = vector.load %arg13[%c1_178, %c0_179, %c0_180] : memref<2x1x256xf32, #tpu.memory_space<vmem>>, vector<1x1x256xf32>
    %492 = vector.shape_cast %491 : vector<1x1x256xf32> to vector<1x256xf32>
    %493 = vector.broadcast %492 : vector<1x256xf32> to vector<32x256xf32>
    %494 = arith.addf %490, %493 : vector<32x256xf32>
    %cst_181 = arith.constant 5.000000e-01 : f32
    %495 = vector.broadcast %cst_181 : f32 to vector<32x256xf32>
    %496 = arith.mulf %495, %494 : vector<32x256xf32>
    %cst_182 = arith.constant 4.471500e-02 : f32
    %497 = vector.broadcast %cst_182 : f32 to vector<32x256xf32>
    %498 = arith.mulf %497, %494 : vector<32x256xf32>
    %499 = arith.mulf %498, %494 : vector<32x256xf32>
    %500 = arith.mulf %499, %494 : vector<32x256xf32>
    %501 = arith.addf %494, %500 : vector<32x256xf32>
    %cst_183 = arith.constant 0.797884583 : f32
    %502 = vector.broadcast %cst_183 : f32 to vector<32x256xf32>
    %503 = arith.mulf %502, %501 : vector<32x256xf32>
    %504 = math.tanh %503 : vector<32x256xf32>
    %cst_184 = arith.constant 1.000000e+00 : f32
    %505 = vector.broadcast %cst_184 : f32 to vector<32x256xf32>
    %506 = arith.addf %505, %504 : vector<32x256xf32>
    %507 = arith.mulf %496, %506 : vector<32x256xf32>
    %508 = arith.truncf %507 : vector<32x256xf32> to vector<32x256xbf16>
    %c1_185 = arith.constant 1 : index
    %c0_186 = arith.constant 0 : index
    %c0_187 = arith.constant 0 : index
    %509 = vector.load %arg14[%c1_185, %c0_186, %c0_187] : memref<2x256x128xbf16, #tpu.memory_space<vmem>>, vector<1x256x128xbf16>
    %510 = vector.shape_cast %509 : vector<1x256x128xbf16> to vector<256x128xbf16>
    %cst_188 = arith.constant dense<0.000000e+00> : vector<32x128xf32>
    %511 = tpu.matmul %508, %510, %cst_188 {dimension_numbers = #tpu.dot_dimension_numbers<[1], [0], [0], [1], [0, 0, 1, 1], [], []>} : vector<32x256xbf16>, vector<256x128xbf16>, vector<32x128xf32> -> vector<32x128xf32>
    %c1_189 = arith.constant 1 : index
    %c0_190 = arith.constant 0 : index
    %c0_191 = arith.constant 0 : index
    %512 = vector.load %arg15[%c1_189, %c0_190, %c0_191] : memref<2x1x128xf32, #tpu.memory_space<vmem>>, vector<1x1x128xf32>
    %513 = vector.shape_cast %512 : vector<1x1x128xf32> to vector<1x128xf32>
    %514 = vector.broadcast %513 : vector<1x128xf32> to vector<32x128xf32>
    %515 = arith.addf %511, %514 : vector<32x128xf32>
    %516 = arith.addf %460, %515 : vector<32x128xf32>
    %c0_192 = arith.constant 0 : index
    %c0_193 = arith.constant 0 : index
    %517 = vector.load %arg16[%c0_192, %c0_193] : memref<1x128xf32, #tpu.memory_space<vmem>>, vector<1x128xf32>
    %c0_194 = arith.constant 0 : index
    %c0_195 = arith.constant 0 : index
    %518 = vector.load %arg17[%c0_194, %c0_195] : memref<1x128xf32, #tpu.memory_space<vmem>>, vector<1x128xf32>
    %cst_196 = arith.constant dense<0.000000e+00> : vector<32xf32>
    %519 = vector.multi_reduction <add>, %516, %cst_196 [1] : vector<32x128xf32> to vector<32xf32>
    %520 = vector.shape_cast %519 : vector<32xf32> to vector<32x1xf32>
    %cst_197 = arith.constant 1.280000e+02 : f32
    %521 = vector.broadcast %cst_197 : f32 to vector<32x1xf32>
    %522 = arith.divf %520, %521 : vector<32x1xf32>
    %523 = vector.broadcast %522 : vector<32x1xf32> to vector<32x128xf32>
    %524 = arith.subf %516, %523 : vector<32x128xf32>
    %525 = arith.mulf %524, %524 : vector<32x128xf32>
    %cst_198 = arith.constant dense<0.000000e+00> : vector<32xf32>
    %526 = vector.multi_reduction <add>, %525, %cst_198 [1] : vector<32x128xf32> to vector<32xf32>
    %527 = vector.shape_cast %526 : vector<32xf32> to vector<32x1xf32>
    %cst_199 = arith.constant 1.280000e+02 : f32
    %528 = vector.broadcast %cst_199 : f32 to vector<32x1xf32>
    %529 = arith.divf %527, %528 : vector<32x1xf32>
    %530 = vector.broadcast %522 : vector<32x1xf32> to vector<32x128xf32>
    %531 = arith.subf %516, %530 : vector<32x128xf32>
    %cst_200 = arith.constant 9.99999997E-7 : f32
    %532 = vector.broadcast %cst_200 : f32 to vector<32x1xf32>
    %533 = arith.addf %529, %532 : vector<32x1xf32>
    %534 = math.rsqrt %533 : vector<32x1xf32>
    %535 = vector.broadcast %534 : vector<32x1xf32> to vector<32x128xf32>
    %536 = arith.mulf %531, %535 : vector<32x128xf32>
    %537 = vector.broadcast %517 : vector<1x128xf32> to vector<32x128xf32>
    %538 = arith.mulf %536, %537 : vector<32x128xf32>
    %539 = vector.broadcast %518 : vector<1x128xf32> to vector<32x128xf32>
    %540 = arith.addf %538, %539 : vector<32x128xf32>
    %c0_201 = arith.constant 0 : index
    %c0_202 = arith.constant 0 : index
    %541 = vector.load %arg18[%c0_201, %c0_202] : memref<32x128xf32, #tpu.memory_space<vmem>>, vector<32x128xf32>
    tpu.vector_store %arg18[%c0_201, %c0_202], %540 {strides = array<i32>} : memref<32x128xf32, #tpu.memory_space<vmem>>, vector<32x128xf32>,
    return
  }
  func.func @transform_0(%arg0: i32) -> (i32, i32) {
    %c0_i32 = arith.constant 0 : i32
    %c0_i32_0 = arith.constant 0 : i32
    return %arg0, %c0_i32 : i32, i32
  }
  func.func @transform_1(%arg0: i32) -> (i32, i32) {
    %c0_i32 = arith.constant 0 : i32
    %c0_i32_0 = arith.constant 0 : i32
    %c0_i32_1 = arith.constant 0 : i32
    return %c0_i32, %c0_i32_0 : i32, i32
  }
  func.func @transform_2(%arg0: i32) -> (i32, i32) {
    %c0_i32 = arith.constant 0 : i32
    %c0_i32_0 = arith.constant 0 : i32
    %c0_i32_1 = arith.constant 0 : i32
    return %c0_i32, %c0_i32_0 : i32, i32
  }
  func.func @transform_3(%arg0: i32) -> (i32, i32, i32) {
    %c0_i32 = arith.constant 0 : i32
    %c0_i32_0 = arith.constant 0 : i32
    %c0_i32_1 = arith.constant 0 : i32
    %c0_i32_2 = arith.constant 0 : i32
    return %c0_i32, %c0_i32_0, %c0_i32_1 : i32, i32, i32
  }
  func.func @transform_4(%arg0: i32) -> (i32, i32, i32) {
    %c0_i32 = arith.constant 0 : i32
    %c0_i32_0 = arith.constant 0 : i32
    %c0_i32_1 = arith.constant 0 : i32
    %c0_i32_2 = arith.constant 0 : i32
    return %c0_i32, %c0_i32_0, %c0_i32_1 : i32, i32, i32
  }
  func.func @transform_5(%arg0: i32) -> (i32, i32, i32) {
    %c0_i32 = arith.constant 0 : i32
    %c0_i32_0 = arith.constant 0 : i32
    %c0_i32_1 = arith.constant 0 : i32
    %c0_i32_2 = arith.constant 0 : i32
    return %c0_i32, %c0_i32_0, %c0_i32_1 : i32, i32, i32
  }
  func.func @transform_6(%arg0: i32) -> (i32, i32, i32) {
    %c0_i32 = arith.constant 0 : i32
    %c0_i32_0 = arith.constant 0 : i32
    %c0_i32_1 = arith.constant 0 : i32
    %c0_i32_2 = arith.constant 0 : i32
    return %c0_i32, %c0_i32_0, %c0_i32_1 : i32, i32, i32
  }
  func.func @transform_7(%arg0: i32) -> (i32, i32, i32) {
    %c0_i32 = arith.constant 0 : i32
    %c0_i32_0 = arith.constant 0 : i32
    %c0_i32_1 = arith.constant 0 : i32
    %c0_i32_2 = arith.constant 0 : i32
    return %c0_i32, %c0_i32_0, %c0_i32_1 : i32, i32, i32
  }
  func.func @transform_8(%arg0: i32) -> (i32, i32, i32) {
    %c0_i32 = arith.constant 0 : i32
    %c0_i32_0 = arith.constant 0 : i32
    %c0_i32_1 = arith.constant 0 : i32
    %c0_i32_2 = arith.constant 0 : i32
    return %c0_i32, %c0_i32_0, %c0_i32_1 : i32, i32, i32
  }
  func.func @transform_9(%arg0: i32) -> (i32, i32, i32) {
    %c0_i32 = arith.constant 0 : i32
    %c0_i32_0 = arith.constant 0 : i32
    %c0_i32_1 = arith.constant 0 : i32
    %c0_i32_2 = arith.constant 0 : i32
    return %c0_i32, %c0_i32_0, %c0_i32_1 : i32, i32, i32
  }
  func.func @transform_10(%arg0: i32) -> (i32, i32, i32) {
    %c0_i32 = arith.constant 0 : i32
    %c0_i32_0 = arith.constant 0 : i32
    %c0_i32_1 = arith.constant 0 : i32
    %c0_i32_2 = arith.constant 0 : i32
    return %c0_i32, %c0_i32_0, %c0_i32_1 : i32, i32, i32
  }
  func.func @transform_11(%arg0: i32) -> (i32, i32, i32) {
    %c0_i32 = arith.constant 0 : i32
    %c0_i32_0 = arith.constant 0 : i32
    %c0_i32_1 = arith.constant 0 : i32
    %c0_i32_2 = arith.constant 0 : i32
    return %c0_i32, %c0_i32_0, %c0_i32_1 : i32, i32, i32
  }
  func.func @transform_12(%arg0: i32) -> (i32, i32, i32) {
    %c0_i32 = arith.constant 0 : i32
    %c0_i32_0 = arith.constant 0 : i32
    %c0_i32_1 = arith.constant 0 : i32
    %c0_i32_2 = arith.constant 0 : i32
    return %c0_i32, %c0_i32_0, %c0_i32_1 : i32, i32, i32
  }
  func.func @transform_13(%arg0: i32) -> (i32, i32, i32) {
    %c0_i32 = arith.constant 0 : i32
    %c0_i32_0 = arith.constant 0 : i32
    %c0_i32_1 = arith.constant 0 : i32
    %c0_i32_2 = arith.constant 0 : i32
    return %c0_i32, %c0_i32_0, %c0_i32_1 : i32, i32, i32
  }
  func.func @transform_14(%arg0: i32) -> (i32, i32, i32) {
    %c0_i32 = arith.constant 0 : i32
    %c0_i32_0 = arith.constant 0 : i32
    %c0_i32_1 = arith.constant 0 : i32
    %c0_i32_2 = arith.constant 0 : i32
    return %c0_i32, %c0_i32_0, %c0_i32_1 : i32, i32, i32
  }
  func.func @transform_15(%arg0: i32) -> (i32, i32) {
    %c0_i32 = arith.constant 0 : i32
    %c0_i32_0 = arith.constant 0 : i32
    %c0_i32_1 = arith.constant 0 : i32
    return %c0_i32, %c0_i32_0 : i32, i32
  }
  func.func @transform_16(%arg0: i32) -> (i32, i32) {
    %c0_i32 = arith.constant 0 : i32
    %c0_i32_0 = arith.constant 0 : i32
    %c0_i32_1 = arith.constant 0 : i32
    return %c0_i32, %c0_i32_0 : i32, i32
  }
  func.func @transform_17(%arg0: i32) -> (i32, i32) {
    %c0_i32 = arith.constant 0 : i32
    %c0_i32_0 = arith.constant 0 : i32
    return %arg0, %c0_i32 : i32, i32
  }
}

</mosaic_0001>

<llo_original>
// kernel: siglip_vision_forward.1
$region0: #{siglip_vision_forward.1}
  #allocation0 [shape = 'u32[]', space=smem, size = 0x4, offset = 0x4, fixed_abs, tag = 'smem constant byte address 0x4 - core index']
  #allocation1 [shape = 'u32[144,128]{1,0:T(1,128)}', space=vmem, size = 0x12000, scoped, tag = 'internal scratch']
  %s0 = inlined_call_operand.vmem [shape: bf16[64,256], index: 0, kind: input, shape index: {}]
  %s1 = inlined_call_operand.vmem [shape: bf16[256,128], index: 1, kind: input, shape index: {}]
  %s2 = inlined_call_operand.vmem [shape: f32[32,128], index: 2, kind: input, shape index: {}]
  %s3 = inlined_call_operand.vmem [shape: f32[2,1,128], index: 3, kind: input, shape index: {}]
  %s4 = inlined_call_operand.vmem [shape: f32[2,1,128], index: 4, kind: input, shape index: {}]
  %s5 = inlined_call_operand.vmem [shape: bf16[2,128,384], index: 5, kind: input, shape index: {}]
  %s6 = inlined_call_operand.vmem [shape: f32[2,1,384], index: 6, kind: input, shape index: {}]
  %s7 = inlined_call_operand.vmem [shape: bf16[2,128,128], index: 7, kind: input, shape index: {}]
  %s8 = inlined_call_operand.vmem [shape: f32[2,1,128], index: 8, kind: input, shape index: {}]
  %s9 = inlined_call_operand.vmem [shape: f32[2,1,128], index: 9, kind: input, shape index: {}]
  %s10 = inlined_call_operand.vmem [shape: f32[2,1,128], index: 10, kind: input, shape index: {}]
  %s11 = inlined_call_operand.vmem [shape: bf16[2,128,256], index: 11, kind: input, shape index: {}]
  %s12 = inlined_call_operand.vmem [shape: f32[2,1,256], index: 12, kind: input, shape index: {}]
  %s13 = inlined_call_operand.vmem [shape: bf16[2,256,128], index: 13, kind: input, shape index: {}]
  %s14 = inlined_call_operand.vmem [shape: f32[2,1,128], index: 14, kind: input, shape index: {}]
  %s15 = inlined_call_operand.vmem [shape: f32[1,128], index: 15, kind: input, shape index: {}]
  %s16 = inlined_call_operand.vmem [shape: f32[1,128], index: 16, kind: input, shape index: {}]
  %s17 = inlined_call_operand.hbm [shape: f32[64,128], index: 17, kind: output, shape index: {}]
  %s18 = sld [smem:[#allocation0]]
  $region101: #{siglip_vision_forward.1} parent=0
    _
  %s20 = ssub.s32 1, %s18
  %s21 = scalar_select 0, %s20, %s18
  $region1: #{siglip_vision_forward.1} parent=0
    #allocation2 [shape = 'u8[32768]{0}', space=vmem, size = 0x8000, scoped, tag = 'output window, operand 0']
    #allocation3 [shape = 's32[2]{0}', space=sflag, size = 0x8, scoped, tag = 'scoped memory for siglip_vision_forward.1']
    %22 = vsyncpa [#allocation3], 0
    %s23 = scalar_lea.sflag [#allocation3], 1
    %24 = vsyncpa %s23, 0
    loop: start=0, step=1, limit=4
    $region2: #{siglip_vision_forward.1} parent=1 // loop_pre_header
      _
    $region3: #{siglip_vision_forward.1} parent=1 // loop_header
      %s26 = sphi 0, %s30
      %p27 = scmp.ge.s32.totalorder %s26, 4
      %s36 = sphi 0, %s38
      %s39 = sphi 0, %s36
      %s40 = sphi 0, %s39
      %s56 = sphi 0, %s40
      %s60 = sphi 0, %s60
      %s62 = sphi 0, %s60
      %s63 = sphi 0, %s62
      %s77 = sphi 0, %s63
      %s81 = sphi 0, %s81
      %s83 = sphi 0, %s81
      %s84 = sphi 0, %s83
      %s98 = sphi 0, %s84
      %s102 = sphi 0, %s102
      %s104 = sphi 0, %s102
      %s105 = sphi 0, %s104
      %s119 = sphi 0, %s105
      %s123 = sphi 0, %s123
      %s125 = sphi 0, %s123
      %s126 = sphi 0, %s125
      %s140 = sphi 0, %s126
      %s144 = sphi 0, %s144
      %s146 = sphi 0, %s144
      %s147 = sphi 0, %s146
      %s161 = sphi 0, %s147
      %s165 = sphi 0, %s165
      %s167 = sphi 0, %s165
      %s168 = sphi 0, %s167
      %s182 = sphi 0, %s168
      %s186 = sphi 0, %s186
      %s188 = sphi 0, %s186
      %s189 = sphi 0, %s188
      %s203 = sphi 0, %s189
      %s207 = sphi 0, %s207
      %s209 = sphi 0, %s207
      %s210 = sphi 0, %s209
      %s224 = sphi 0, %s210
      %s228 = sphi 0, %s228
      %s230 = sphi 0, %s228
      %s231 = sphi 0, %s230
      %s245 = sphi 0, %s231
      %s249 = sphi 0, %s249
      %s251 = sphi 0, %s249
      %s252 = sphi 0, %s251
      %s266 = sphi 0, %s252
      %s270 = sphi 0, %s270
      %s272 = sphi 0, %s270
      %s273 = sphi 0, %s272
      %s287 = sphi 0, %s273
      %s291 = sphi 0, %s291
      %s293 = sphi 0, %s291
      %s294 = sphi 0, %s293
      %s308 = sphi 0, %s294
      %s312 = sphi 0, %s312
      %s314 = sphi 0, %s312
      %s315 = sphi 0, %s314
      %s329 = sphi 0, %s315
      %s333 = sphi 0, %s333
      %s335 = sphi 0, %s333
      %s336 = sphi 0, %s335
      %s350 = sphi 0, %s336
      %s354 = sphi 0, %s354
      %s356 = sphi 0, %s354
      %s357 = sphi 0, %s356
      %s371 = sphi 0, %s357
      %s375 = sphi 0, %s375
      %s377 = sphi 0, %s375
      %s378 = sphi 0, %s377
      %s392 = sphi 0, %s378
      %s398 = sphi 0, %s400
      %s401 = sphi 0, %s398
      %s402 = sphi 0, %s401
      %s418 = sphi 0, %s402
    $region4: #{siglip_vision_forward.1} parent=1 // loop_header_branch
      %29 = sbr.rel (%p27) target = $region8
    $region5: #{siglip_vision_forward.1} parent=1 // loop_body
      %s31 = ssub.s32 %s26, 1
      %s32 = ssub.s32 %s26, 2
      %s33 = sadd.s32 %s26, 1
      %s34 = ssub.s32 %s26, %s33
      %p35 = scmp.eq.s32.totalorder %s34, 0
      %s37 = sadd.s32 %s36, 1
      %s38 = scalar_select %p35, %s36, %s37
      %p41 = pneg %p35
      %p42 = scmp.eq.s32.totalorder %s26, 1
      %p43 = por %p41, %p42
      %p44 = scmp.ne.s32.totalorder %s36, %s39
      %p45 = scmp.eq.s32.totalorder %s26, 0
      %p46 = por %p44, %p45
      %p47 = scmp.ne.s32.totalorder %s36, %s39
      %p48 = scmp.eq.s32.totalorder %s31, 1
      %p49 = por %p47, %p48
      %p50 = scmp.ne.s32.totalorder %s39, %s40
      %p51 = scmp.eq.s32.totalorder %s31, 0
      %p52 = por %p50, %p51
      %p53 = scmp.ne.s32.totalorder %s39, %s40
      %p54 = scmp.eq.s32.totalorder %s32, 1
      %p55 = por %p53, %p54
      %p57 = scmp.ne.s32.totalorder %s40, %s56
      %p58 = scmp.eq.s32.totalorder %s32, 0
      %p59 = por %p57, %p58
      %s61 = sadd.s32 %s60, 1
      %p64 = scmp.eq.s32.totalorder %s26, 1
      %p65 = scmp.ne.s32.totalorder %s60, %s62
      %p66 = scmp.eq.s32.totalorder %s26, 0
      %p67 = por %p65, %p66
      %p68 = scmp.ne.s32.totalorder %s60, %s62
      %p69 = scmp.eq.s32.totalorder %s31, 1
      %p70 = por %p68, %p69
      %p71 = scmp.ne.s32.totalorder %s62, %s63
      %p72 = scmp.eq.s32.totalorder %s31, 0
      %p73 = por %p71, %p72
      %p74 = scmp.ne.s32.totalorder %s62, %s63
      %p75 = scmp.eq.s32.totalorder %s32, 1
      %p76 = por %p74, %p75
      %p78 = scmp.ne.s32.totalorder %s63, %s77
      %p79 = scmp.eq.s32.totalorder %s32, 0
      %p80 = por %p78, %p79
      %s82 = sadd.s32 %s81, 1
      %p85 = scmp.eq.s32.totalorder %s26, 1
      %p86 = scmp.ne.s32.totalorder %s81, %s83
      %p87 = scmp.eq.s32.totalorder %s26, 0
      %p88 = por %p86, %p87
      %p89 = scmp.ne.s32.totalorder %s81, %s83
      %p90 = scmp.eq.s32.totalorder %s31, 1
      %p91 = por %p89, %p90
      %p92 = scmp.ne.s32.totalorder %s83, %s84
      %p93 = scmp.eq.s32.totalorder %s31, 0
      %p94 = por %p92, %p93
      %p95 = scmp.ne.s32.totalorder %s83, %s84
      %p96 = scmp.eq.s32.totalorder %s32, 1
      %p97 = por %p95, %p96
      %p99 = scmp.ne.s32.totalorder %s84, %s98
      %p100 = scmp.eq.s32.totalorder %s32, 0
      %p101 = por %p99, %p100
      %s103 = sadd.s32 %s102, 1
      %p106 = scmp.eq.s32.totalorder %s26, 1
      %p107 = scmp.ne.s32.totalorder %s102, %s104
      %p108 = scmp.eq.s32.totalorder %s26, 0
      %p109 = por %p107, %p108
      %p110 = scmp.ne.s32.totalorder %s102, %s104
      %p111 = scmp.eq.s32.totalorder %s31, 1
      %p112 = por %p110, %p111
      %p113 = scmp.ne.s32.totalorder %s104, %s105
      %p114 = scmp.eq.s32.totalorder %s31, 0
      %p115 = por %p113, %p114
      %p116 = scmp.ne.s32.totalorder %s104, %s105
      %p117 = scmp.eq.s32.totalorder %s32, 1
      %p118 = por %p116, %p117
      %p120 = scmp.ne.s32.totalorder %s105, %s119
      %p121 = scmp.eq.s32.totalorder %s32, 0
      %p122 = por %p120, %p121
      %s124 = sadd.s32 %s123, 1
      %p127 = scmp.eq.s32.totalorder %s26, 1
      %p128 = scmp.ne.s32.totalorder %s123, %s125
      %p129 = scmp.eq.s32.totalorder %s26, 0
      %p130 = por %p128, %p129
      %p131 = scmp.ne.s32.totalorder %s123, %s125
      %p132 = scmp.eq.s32.totalorder %s31, 1
      %p133 = por %p131, %p132
      %p134 = scmp.ne.s32.totalorder %s125, %s126
      %p135 = scmp.eq.s32.totalorder %s31, 0
      %p136 = por %p134, %p135
      %p137 = scmp.ne.s32.totalorder %s125, %s126
      %p138 = scmp.eq.s32.totalorder %s32, 1
      %p139 = por %p137, %p138
      %p141 = scmp.ne.s32.totalorder %s126, %s140
      %p142 = scmp.eq.s32.totalorder %s32, 0
      %p143 = por %p141, %p142
      %s145 = sadd.s32 %s144, 1
      %p148 = scmp.eq.s32.totalorder %s26, 1
      %p149 = scmp.ne.s32.totalorder %s144, %s146
      %p150 = scmp.eq.s32.totalorder %s26, 0
      %p151 = por %p149, %p150
      %p152 = scmp.ne.s32.totalorder %s144, %s146
      %p153 = scmp.eq.s32.totalorder %s31, 1
      %p154 = por %p152, %p153
      %p155 = scmp.ne.s32.totalorder %s146, %s147
      %p156 = scmp.eq.s32.totalorder %s31, 0
      %p157 = por %p155, %p156
      %p158 = scmp.ne.s32.totalorder %s146, %s147
      %p159 = scmp.eq.s32.totalorder %s32, 1
      %p160 = por %p158, %p159
      %p162 = scmp.ne.s32.totalorder %s147, %s161
      %p163 = scmp.eq.s32.totalorder %s32, 0
      %p164 = por %p162, %p163
      %s166 = sadd.s32 %s165, 1
      %p169 = scmp.eq.s32.totalorder %s26, 1
      %p170 = scmp.ne.s32.totalorder %s165, %s167
      %p171 = scmp.eq.s32.totalorder %s26, 0
      %p172 = por %p170, %p171
      %p173 = scmp.ne.s32.totalorder %s165, %s167
      %p174 = scmp.eq.s32.totalorder %s31, 1
      %p175 = por %p173, %p174
      %p176 = scmp.ne.s32.totalorder %s167, %s168
      %p177 = scmp.eq.s32.totalorder %s31, 0
      %p178 = por %p176, %p177
      %p179 = scmp.ne.s32.totalorder %s167, %s168
      %p180 = scmp.eq.s32.totalorder %s32, 1
      %p181 = por %p179, %p180
      %p183 = scmp.ne.s32.totalorder %s168, %s182
      %p184 = scmp.eq.s32.totalorder %s32, 0
      %p185 = por %p183, %p184
      %s187 = sadd.s32 %s186, 1
      %p190 = scmp.eq.s32.totalorder %s26, 1
      %p191 = scmp.ne.s32.totalorder %s186, %s188
      %p192 = scmp.eq.s32.totalorder %s26, 0
      %p193 = por %p191, %p192
      %p194 = scmp.ne.s32.totalorder %s186, %s188
      %p195 = scmp.eq.s32.totalorder %s31, 1
      %p196 = por %p194, %p195
      %p197 = scmp.ne.s32.totalorder %s188, %s189
      %p198 = scmp.eq.s32.totalorder %s31, 0
      %p199 = por %p197, %p198
      %p200 = scmp.ne.s32.totalorder %s188, %s189
      %p201 = scmp.eq.s32.totalorder %s32, 1
      %p202 = por %p200, %p201
      %p204 = scmp.ne.s32.totalorder %s189, %s203
      %p205 = scmp.eq.s32.totalorder %s32, 0
      %p206 = por %p204, %p205
      %s208 = sadd.s32 %s207, 1
      %p211 = scmp.eq.s32.totalorder %s26, 1
      %p212 = scmp.ne.s32.totalorder %s207, %s209
      %p213 = scmp.eq.s32.totalorder %s26, 0
      %p214 = por %p212, %p213
      %p215 = scmp.ne.s32.totalorder %s207, %s209
      %p216 = scmp.eq.s32.totalorder %s31, 1
      %p217 = por %p215, %p216
      %p218 = scmp.ne.s32.totalorder %s209, %s210
      %p219 = scmp.eq.s32.totalorder %s31, 0
      %p220 = por %p218, %p219
      %p221 = scmp.ne.s32.totalorder %s209, %s210
      %p222 = scmp.eq.s32.totalorder %s32, 1
      %p223 = por %p221, %p222
      %p225 = scmp.ne.s32.totalorder %s210, %s224
      %p226 = scmp.eq.s32.totalorder %s32, 0
      %p227 = por %p225, %p226
      %s229 = sadd.s32 %s228, 1
      %p232 = scmp.eq.s32.totalorder %s26, 1
      %p233 = scmp.ne.s32.totalorder %s228, %s230
      %p234 = scmp.eq.s32.totalorder %s26, 0
      %p235 = por %p233, %p234
      %p236 = scmp.ne.s32.totalorder %s228, %s230
      %p237 = scmp.eq.s32.totalorder %s31, 1
      %p238 = por %p236, %p237
      %p239 = scmp.ne.s32.totalorder %s230, %s231
      %p240 = scmp.eq.s32.totalorder %s31, 0
      %p241 = por %p239, %p240
      %p242 = scmp.ne.s32.totalorder %s230, %s231
      %p243 = scmp.eq.s32.totalorder %s32, 1
      %p244 = por %p242, %p243
      %p246 = scmp.ne.s32.totalorder %s231, %s245
      %p247 = scmp.eq.s32.totalorder %s32, 0
      %p248 = por %p246, %p247
      %s250 = sadd.s32 %s249, 1
      %p253 = scmp.eq.s32.totalorder %s26, 1
      %p254 = scmp.ne.s32.totalorder %s249, %s251
      %p255 = scmp.eq.s32.totalorder %s26, 0
      %p256 = por %p254, %p255
      %p257 = scmp.ne.s32.totalorder %s249, %s251
      %p258 = scmp.eq.s32.totalorder %s31, 1
      %p259 = por %p257, %p258
      %p260 = scmp.ne.s32.totalorder %s251, %s252
      %p261 = scmp.eq.s32.totalorder %s31, 0
      %p262 = por %p260, %p261
      %p263 = scmp.ne.s32.totalorder %s251, %s252
      %p264 = scmp.eq.s32.totalorder %s32, 1
      %p265 = por %p263, %p264
      %p267 = scmp.ne.s32.totalorder %s252, %s266
      %p268 = scmp.eq.s32.totalorder %s32, 0
      %p269 = por %p267, %p268
      %s271 = sadd.s32 %s270, 1
      %p274 = scmp.eq.s32.totalorder %s26, 1
      %p275 = scmp.ne.s32.totalorder %s270, %s272
      %p276 = scmp.eq.s32.totalorder %s26, 0
      %p277 = por %p275, %p276
      %p278 = scmp.ne.s32.totalorder %s270, %s272
      %p279 = scmp.eq.s32.totalorder %s31, 1
      %p280 = por %p278, %p279
      %p281 = scmp.ne.s32.totalorder %s272, %s273
      %p282 = scmp.eq.s32.totalorder %s31, 0
      %p283 = por %p281, %p282
      %p284 = scmp.ne.s32.totalorder %s272, %s273
      %p285 = scmp.eq.s32.totalorder %s32, 1
      %p286 = por %p284, %p285
      %p288 = scmp.ne.s32.totalorder %s273, %s287
      %p289 = scmp.eq.s32.totalorder %s32, 0
      %p290 = por %p288, %p289
      %s292 = sadd.s32 %s291, 1
      %p295 = scmp.eq.s32.totalorder %s26, 1
      %p296 = scmp.ne.s32.totalorder %s291, %s293
      %p297 = scmp.eq.s32.totalorder %s26, 0
      %p298 = por %p296, %p297
      %p299 = scmp.ne.s32.totalorder %s291, %s293
      %p300 = scmp.eq.s32.totalorder %s31, 1
      %p301 = por %p299, %p300
      %p302 = scmp.ne.s32.totalorder %s293, %s294
      %p303 = scmp.eq.s32.totalorder %s31, 0
      %p304 = por %p302, %p303
      %p305 = scmp.ne.s32.totalorder %s293, %s294
      %p306 = scmp.eq.s32.totalorder %s32, 1
      %p307 = por %p305, %p306
      %p309 = scmp.ne.s32.totalorder %s294, %s308
      %p310 = scmp.eq.s32.totalorder %s32, 0
      %p311 = por %p309, %p310
      %s313 = sadd.s32 %s312, 1
      %p316 = scmp.eq.s32.totalorder %s26, 1
      %p317 = scmp.ne.s32.totalorder %s312, %s314
      %p318 = scmp.eq.s32.totalorder %s26, 0
      %p319 = por %p317, %p318
      %p320 = scmp.ne.s32.totalorder %s312, %s314
      %p321 = scmp.eq.s32.totalorder %s31, 1
      %p322 = por %p320, %p321
      %p323 = scmp.ne.s32.totalorder %s314, %s315
      %p324 = scmp.eq.s32.totalorder %s31, 0
      %p325 = por %p323, %p324
      %p326 = scmp.ne.s32.totalorder %s314, %s315
      %p327 = scmp.eq.s32.totalorder %s32, 1
      %p328 = por %p326, %p327
      %p330 = scmp.ne.s32.totalorder %s315, %s329
      %p331 = scmp.eq.s32.totalorder %s32, 0
      %p332 = por %p330, %p331
      %s334 = sadd.s32 %s333, 1
      %p337 = scmp.eq.s32.totalorder %s26, 1
      %p338 = scmp.ne.s32.totalorder %s333, %s335
      %p339 = scmp.eq.s32.totalorder %s26, 0
      %p340 = por %p338, %p339
      %p341 = scmp.ne.s32.totalorder %s333, %s335
      %p342 = scmp.eq.s32.totalorder %s31, 1
      %p343 = por %p341, %p342
      %p344 = scmp.ne.s32.totalorder %s335, %s336
      %p345 = scmp.eq.s32.totalorder %s31, 0
      %p346 = por %p344, %p345
      %p347 = scmp.ne.s32.totalorder %s335, %s336
      %p348 = scmp.eq.s32.totalorder %s32, 1
      %p349 = por %p347, %p348
      %p351 = scmp.ne.s32.totalorder %s336, %s350
      %p352 = scmp.eq.s32.totalorder %s32, 0
      %p353 = por %p351, %p352
      %s355 = sadd.s32 %s354, 1
      %p358 = scmp.eq.s32.totalorder %s26, 1
      %p359 = scmp.ne.s32.totalorder %s354, %s356
      %p360 = scmp.eq.s32.totalorder %s26, 0
      %p361 = por %p359, %p360
      %p362 = scmp.ne.s32.totalorder %s354, %s356
      %p363 = scmp.eq.s32.totalorder %s31, 1
      %p364 = por %p362, %p363
      %p365 = scmp.ne.s32.totalorder %s356, %s357
      %p366 = scmp.eq.s32.totalorder %s31, 0
      %p367 = por %p365, %p366
      %p368 = scmp.ne.s32.totalorder %s356, %s357
      %p369 = scmp.eq.s32.totalorder %s32, 1
      %p370 = por %p368, %p369
      %p372 = scmp.ne.s32.totalorder %s357, %s371
      %p373 = scmp.eq.s32.totalorder %s32, 0
      %p374 = por %p372, %p373
      %s376 = sadd.s32 %s375, 1
      %p379 = scmp.eq.s32.totalorder %s26, 1
      %p380 = scmp.ne.s32.totalorder %s375, %s377
      %p381 = scmp.eq.s32.totalorder %s26, 0
      %p382 = por %p380, %p381
      %p383 = scmp.ne.s32.totalorder %s375, %s377
      %p384 = scmp.eq.s32.totalorder %s31, 1
      %p385 = por %p383, %p384
      %p386 = scmp.ne.s32.totalorder %s377, %s378
      %p387 = scmp.eq.s32.totalorder %s31, 0
      %p388 = por %p386, %p387
      %p389 = scmp.ne.s32.totalorder %s377, %s378
      %p390 = scmp.eq.s32.totalorder %s32, 1
      %p391 = por %p389, %p390
      %p393 = scmp.ne.s32.totalorder %s378, %s392
      %p394 = scmp.eq.s32.totalorder %s32, 0
      %p395 = por %p393, %p394
      %s396 = ssub.s32 %s26, %s33
      %p397 = scmp.eq.s32.totalorder %s396, 0
      %s399 = sadd.s32 %s398, 1
      %s400 = scalar_select %p397, %s398, %s399
      %p403 = pneg %p397
      %p404 = scmp.eq.s32.totalorder %s26, 1
      %p405 = por %p403, %p404
      %p406 = scmp.ne.s32.totalorder %s398, %s401
      %p407 = scmp.eq.s32.totalorder %s26, 0
      %p408 = por %p406, %p407
      %p409 = scmp.ne.s32.totalorder %s398, %s401
      %p410 = scmp.eq.s32.totalorder %s31, 1
      %p411 = por %p409, %p410
      %p412 = scmp.ne.s32.totalorder %s401, %s402
      %p413 = scmp.eq.s32.totalorder %s31, 0
      %p414 = por %p412, %p413
      %p415 = scmp.ne.s32.totalorder %s401, %s402
      %p416 = scmp.eq.s32.totalorder %s32, 1
      %p417 = por %p415, %p416
      %p419 = scmp.ne.s32.totalorder %s402, %s418
      %p420 = scmp.eq.s32.totalorder %s32, 0
      %p421 = por %p419, %p420
      %p422 = scmp.le.s32.totalorder 1, %s26
      %p423 = scmp.lt.s32.totalorder %s26, 3
      %p424 = pnand %p422, %p423
      %p425 = pneg %p424
      // Predicated region
      $region9: #{siglip_vision_forward.1} parent=5 // pred_check
        _
      $region10: #{siglip_vision_forward.1} parent=5 // pred_check_branch
        %427 = sbr.rel (%p424) target = $region12
      $region11: #{siglip_vision_forward.1} parent=5 // pred_region
        %s428 = ssub.s32 %s26, 1
        // Predicated region
        $region13: #{siglip_vision_forward.1} parent=11 // pred_check
          %p429 = pneg %p73
        $region14: #{siglip_vision_forward.1} parent=11 // pred_check_branch
          %431 = sbr.rel (%p429) target = $region16
        $region15: #{siglip_vision_forward.1} parent=11 // pred_region
          _
        $region16: #{siglip_vision_forward.1} parent=11 // pred_fallthru
          _
        // Predicated region
        $region17: #{siglip_vision_forward.1} parent=11 // pred_check
          %p432 = pneg %p94
        $region18: #{siglip_vision_forward.1} parent=11 // pred_check_branch
          %434 = sbr.rel (%p432) target = $region20
        $region19: #{siglip_vision_forward.1} parent=11 // pred_region
          _
        $region20: #{siglip_vision_forward.1} parent=11 // pred_fallthru
          _
        // Predicated region
        $region21: #{siglip_vision_forward.1} parent=11 // pred_check
          %p435 = pneg %p115
        $region22: #{siglip_vision_forward.1} parent=11 // pred_check_branch
          %437 = sbr.rel (%p435) target = $region24
        $region23: #{siglip_vision_forward.1} parent=11 // pred_region
          _
        $region24: #{siglip_vision_forward.1} parent=11 // pred_fallthru
          _
        // Predicated region
        $region25: #{siglip_vision_forward.1} parent=11 // pred_check
          %p438 = pneg %p136
        $region26: #{siglip_vision_forward.1} parent=11 // pred_check_branch
          %440 = sbr.rel (%p438) target = $region28
        $region27: #{siglip_vision_forward.1} parent=11 // pred_region
          _
        $region28: #{siglip_vision_forward.1} parent=11 // pred_fallthru
          _
        // Predicated region
        $region29: #{siglip_vision_forward.1} parent=11 // pred_check
          %p441 = pneg %p157
        $region30: #{siglip_vision_forward.1} parent=11 // pred_check_branch
          %443 = sbr.rel (%p441) target = $region32
        $region31: #{siglip_vision_forward.1} parent=11 // pred_region
          _
        $region32: #{siglip_vision_forward.1} parent=11 // pred_fallthru
          _
        // Predicated region
        $region33: #{siglip_vision_forward.1} parent=11 // pred_check
          %p444 = pneg %p178
        $region34: #{siglip_vision_forward.1} parent=11 // pred_check_branch
          %446 = sbr.rel (%p444) target = $region36
        $region35: #{siglip_vision_forward.1} parent=11 // pred_region
          _
        $region36: #{siglip_vision_forward.1} parent=11 // pred_fallthru
          _
        // Predicated region
        $region37: #{siglip_vision_forward.1} parent=11 // pred_check
          %p447 = pneg %p199
        $region38: #{siglip_vision_forward.1} parent=11 // pred_check_branch
          %449 = sbr.rel (%p447) target = $region40
        $region39: #{siglip_vision_forward.1} parent=11 // pred_region
          _
        $region40: #{siglip_vision_forward.1} parent=11 // pred_fallthru
          _
        // Predicated region
        $region41: #{siglip_vision_forward.1} parent=11 // pred_check
          %p450 = pneg %p220
        $region42: #{siglip_vision_forward.1} parent=11 // pred_check_branch
          %452 = sbr.rel (%p450) target = $region44
        $region43: #{siglip_vision_forward.1} parent=11 // pred_region
          _
        $region44: #{siglip_vision_forward.1} parent=11 // pred_fallthru
          _
        // Predicated region
        $region45: #{siglip_vision_forward.1} parent=11 // pred_check
          %p453 = pneg %p241
        $region46: #{siglip_vision_forward.1} parent=11 // pred_check_branch
          %455 = sbr.rel (%p453) target = $region48
        $region47: #{siglip_vision_forward.1} parent=11 // pred_region
          _
        $region48: #{siglip_vision_forward.1} parent=11 // pred_fallthru
          _
        // Predicated region
        $region49: #{siglip_vision_forward.1} parent=11 // pred_check
          %p456 = pneg %p262
        $region50: #{siglip_vision_forward.1} parent=11 // pred_check_branch
          %458 = sbr.rel (%p456) target = $region52
        $region51: #{siglip_vision_forward.1} parent=11 // pred_region
          _
        $region52: #{siglip_vision_forward.1} parent=11 // pred_fallthru
          _
        // Predicated region
        $region53: #{siglip_vision_forward.1} parent=11 // pred_check
          %p459 = pneg %p283
        $region54: #{siglip_vision_forward.1} parent=11 // pred_check_branch
          %461 = sbr.rel (%p459) target = $region56
        $region55: #{siglip_vision_forward.1} parent=11 // pred_region
          _
        $region56: #{siglip_vision_forward.1} parent=11 // pred_fallthru
          _
        // Predicated region
        $region57: #{siglip_vision_forward.1} parent=11 // pred_check
          %p462 = pneg %p304
        $region58: #{siglip_vision_forward.1} parent=11 // pred_check_branch
          %464 = sbr.rel (%p462) target = $region60
        $region59: #{siglip_vision_forward.1} parent=11 // pred_region
          _
        $region60: #{siglip_vision_forward.1} parent=11 // pred_fallthru
          _
        // Predicated region
        $region61: #{siglip_vision_forward.1} parent=11 // pred_check
          %p465 = pneg %p325
        $region62: #{siglip_vision_forward.1} parent=11 // pred_check_branch
          %467 = sbr.rel (%p465) target = $region64
        $region63: #{siglip_vision_forward.1} parent=11 // pred_region
          _
        $region64: #{siglip_vision_forward.1} parent=11 // pred_fallthru
          _
        // Predicated region
        $region65: #{siglip_vision_forward.1} parent=11 // pred_check
          %p468 = pneg %p346
        $region66: #{siglip_vision_forward.1} parent=11 // pred_check_branch
          %470 = sbr.rel (%p468) target = $region68
        $region67: #{siglip_vision_forward.1} parent=11 // pred_region
          _
        $region68: #{siglip_vision_forward.1} parent=11 // pred_fallthru
          _
        // Predicated region
        $region69: #{siglip_vision_forward.1} parent=11 // pred_check
          %p471 = pneg %p367
        $region70: #{siglip_vision_forward.1} parent=11 // pred_check_branch
          %473 = sbr.rel (%p471) target = $region72
        $region71: #{siglip_vision_forward.1} parent=11 // pred_region
          _
        $region72: #{siglip_vision_forward.1} parent=11 // pred_fallthru
          _
        // Predicated region
        $region73: #{siglip_vision_forward.1} parent=11 // pred_check
          %p474 = pneg %p388
        $region74: #{siglip_vision_forward.1} parent=11 // pred_check_branch
          %476 = sbr.rel (%p474) target = $region76
        $region75: #{siglip_vision_forward.1} parent=11 // pred_region
          _
        $region76: #{siglip_vision_forward.1} parent=11 // pred_fallthru
          _
      $region12: #{siglip_vision_forward.1} parent=5 // pred_fallthru
        _
      %p477 = scmp.lt.s32.totalorder %s26, 2
      // Predicated region
      $region77: #{siglip_vision_forward.1} parent=5 // pred_check
        %p478 = pneg %p477
      $region78: #{siglip_vision_forward.1} parent=5 // pred_check_branch
        %480 = sbr.rel (%p478) target = $region80
      $region79: #{siglip_vision_forward.1} parent=5 // pred_region
        // Predicated region
        $region81: #{siglip_vision_forward.1} parent=79 // pred_check
          %p481 = pneg %p46
        $region82: #{siglip_vision_forward.1} parent=79 // pred_check_branch
          %483 = sbr.rel (%p481) target = $region84
        $region83: #{siglip_vision_forward.1} parent=79 // pred_region
          %s484 = smul.u32 4, %s26
          %p485 = scmp.lt.s32.totalorder %s484, 7
          %s486 = scalar_select %p485, %s484, 7
          %s487 = smul.addr %s486, 2
          %s488 = smul.addr %s487, 4
          %s489 = scalar_lea.vmem %s0, %s488
          %s490 = smul.u32 4, %s26
        $region84: #{siglip_vision_forward.1} parent=79 // pred_fallthru
          _
      $region80: #{siglip_vision_forward.1} parent=5 // pred_fallthru
        _
      %p491 = scmp.le.s32.totalorder 1, %s26
      %p492 = scmp.lt.s32.totalorder %s26, 3
      %p493 = pnand %p491, %p492
      %p494 = pneg %p493
      // Predicated region
      $region85: #{siglip_vision_forward.1} parent=5 // pred_check
        _
      $region86: #{siglip_vision_forward.1} parent=5 // pred_check_branch
        %496 = sbr.rel (%p493) target = $region88
      $region87: #{siglip_vision_forward.1} parent=5 // pred_region
        %s497 = ssub.s32 %s26, 1
        %s498 = smul.u32 4, %s31
        %p499 = scmp.lt.s32.totalorder %s498, 7
        %s500 = scalar_select %p499, %s498, 7
        %s501 = smul.addr %s500, 2
        %s502 = smul.addr %s501, 4
        %s503 = scalar_lea.vmem %s0, %s502
        %p504 = pneg %p52
        %p505 = pneg %p49
        %p506 = pneg %p73
        %p507 = pneg %p70
        %p508 = pneg %p94
        %p509 = pneg %p91
        %p510 = pneg %p115
        %p511 = pneg %p112
        %p512 = pneg %p136
        %p513 = pneg %p133
        %p514 = pneg %p157
        %p515 = pneg %p154
        %p516 = pneg %p178
        %p517 = pneg %p175
        %p518 = pneg %p199
        %p519 = pneg %p196
        %p520 = pneg %p220
        %p521 = pneg %p217
        %p522 = pneg %p241
        %p523 = pneg %p238
        %p524 = pneg %p262
        %p525 = pneg %p259
        %p526 = pneg %p283
        %p527 = pneg %p280
        %p528 = pneg %p304
        %p529 = pneg %p301
        %p530 = pneg %p325
        %p531 = pneg %p322
        %p532 = pneg %p346
        %p533 = pneg %p343
        %p534 = pneg %p367
        %p535 = pneg %p364
        %p536 = pneg %p388
        %p537 = pneg %p385
        %p538 = pneg %p414
        %p539 = pneg %p411
        %s540 = sand.u32 %s401, 1
        %s541 = scalar_lea.sflag [#allocation3], %s540
        %s542 = sand.u32 %s401, 1
        %s543 = smul.addr %s542, 32
        %s544 = scalar_lea.vmem [#allocation2], %s543
        %s545 = smul.u32 4, %s31
        %p546 = scmp.lt.s32.totalorder %s545, 7
        %s547 = scalar_select %p546, %s545, 7
        %s548 = smul.addr %s547, 2
        %s549 = smul.addr %s548, 4
        %s550 = scalar_lea.vmem %s0, %s549
        %s551 = smul.u32 4, %s31
        %s552 = smul.u32 4, %s31
        %v554 = vld [vmem:[%s550] sm:$0xff]
        %v555 = vld [vmem:[%s550 + $0x8] sm:$0xff]
        %v556 = vld [vmem:[%s550 + $0x10] sm:$0xff]
        %v557 = vld [vmem:[%s550 + $0x18] sm:$0xff]
        %v558 = vld [vmem:[%s1] sm:$0xf]
        %v559 = vld [vmem:[%s1 + $0x4] sm:$0xf]
        %v560 = vld [vmem:[%s1 + $0x8] sm:$0xf]
        %v561 = vld [vmem:[%s1 + $0xc] sm:$0xf]
        %v562 = vld [vmem:[%s1 + $0x10] sm:$0xf]
        %v563 = vld [vmem:[%s1 + $0x14] sm:$0xf]
        %v564 = vld [vmem:[%s1 + $0x18] sm:$0xf]
        %v565 = vld [vmem:[%s1 + $0x1c] sm:$0xf]
        %v566 = vld [vmem:[%s1 + $0x20] sm:$0xf]
        %v567 = vld [vmem:[%s1 + $0x24] sm:$0xf]
        %v568 = vld [vmem:[%s1 + $0x28] sm:$0xf]
        %v569 = vld [vmem:[%s1 + $0x2c] sm:$0xf]
        %v570 = vld [vmem:[%s1 + $0x30] sm:$0xf]
        %v571 = vld [vmem:[%s1 + $0x34] sm:$0xf]
        %v572 = vld [vmem:[%s1 + $0x38] sm:$0xf]
        %v573 = vld [vmem:[%s1 + $0x3c] sm:$0xf]
        %v574 = vld [vmem:[%s1 + $0x40] sm:$0xf]
        %v575 = vld [vmem:[%s1 + $0x44] sm:$0xf]
        %v576 = vld [vmem:[%s1 + $0x48] sm:$0xf]
        %v577 = vld [vmem:[%s1 + $0x4c] sm:$0xf]
        %v578 = vld [vmem:[%s1 + $0x50] sm:$0xf]
        %v579 = vld [vmem:[%s1 + $0x54] sm:$0xf]
        %v580 = vld [vmem:[%s1 + $0x58] sm:$0xf]
        %v581 = vld [vmem:[%s1 + $0x5c] sm:$0xf]
        %v582 = vld [vmem:[%s1 + $0x60] sm:$0xf]
        %v583 = vld [vmem:[%s1 + $0x64] sm:$0xf]
        %v584 = vld [vmem:[%s1 + $0x68] sm:$0xf]
        %v585 = vld [vmem:[%s1 + $0x6c] sm:$0xf]
        %v586 = vld [vmem:[%s1 + $0x70] sm:$0xf]
        %v587 = vld [vmem:[%s1 + $0x74] sm:$0xf]
        %v588 = vld [vmem:[%s1 + $0x78] sm:$0xf]
        %v589 = vld [vmem:[%s1 + $0x7c] sm:$0xf]
        %v590 = vld [vmem:[%s2] sm:$0xff]
        %v591 = vld [vmem:[%s2 + $0x8] sm:$0xff]
        %v592 = vld [vmem:[%s2 + $0x10] sm:$0xff]
        %v593 = vld [vmem:[%s2 + $0x18] sm:$0xff]
        %v598 = vunpack.c.l.b16 %v554
        %v599 = vunpack.c.h.b16 %v554
        %v600 = vunpack.c.l.b16 %v555
        %v601 = vunpack.c.h.b16 %v555
        %v602 = vunpack.c.l.b16 %v556
        %v603 = vunpack.c.h.b16 %v556
        %v604 = vunpack.c.l.b16 %v557
        %v605 = vunpack.c.h.b16 %v557
        %v606 = vpack.c.b16 %v600, %v598
        %v607 = vpack.c.b16 %v601, %v599
        %v608 = vpack.c.b16 %v604, %v602
        %v609 = vpack.c.b16 %v605, %v603
        %v646 = vunpack.c.l.b16 %v558
        %v647 = vunpack.c.l.b16 %v559
        %v648 = vunpack.c.l.b16 %v560
        %v649 = vunpack.c.l.b16 %v561
        %v650 = vunpack.c.l.b16 %v562
        %v651 = vunpack.c.l.b16 %v563
        %v652 = vunpack.c.l.b16 %v564
        %v653 = vunpack.c.l.b16 %v565
        %v654 = vunpack.c.l.b16 %v566
        %v655 = vunpack.c.l.b16 %v567
        %v656 = vunpack.c.l.b16 %v568
        %v657 = vunpack.c.l.b16 %v569
        %v658 = vunpack.c.l.b16 %v570
        %v659 = vunpack.c.l.b16 %v571
        %v660 = vunpack.c.l.b16 %v572
        %v661 = vunpack.c.l.b16 %v573
        %v662 = vunpack.c.l.b16 %v574
        %v663 = vunpack.c.l.b16 %v575
        %v664 = vunpack.c.l.b16 %v576
        %v665 = vunpack.c.l.b16 %v577
        %v666 = vunpack.c.l.b16 %v578
        %v667 = vunpack.c.l.b16 %v579
        %v668 = vunpack.c.l.b16 %v580
        %v669 = vunpack.c.l.b16 %v581
        %v670 = vunpack.c.l.b16 %v582
        %v671 = vunpack.c.l.b16 %v583
        %v672 = vunpack.c.l.b16 %v584
        %v673 = vunpack.c.l.b16 %v585
        %v674 = vunpack.c.l.b16 %v586
        %v675 = vunpack.c.l.b16 %v587
        %v676 = vunpack.c.l.b16 %v588
        %v677 = vunpack.c.l.b16 %v589
        %v678 = vpack.c.b16 %v647, %v646
        %v679 = vpack.c.b16 %v649, %v648
        %v680 = vpack.c.b16 %v651, %v650
        %v681 = vpack.c.b16 %v653, %v652
        %v682 = vpack.c.b16 %v655, %v654
        %v683 = vpack.c.b16 %v657, %v656
        %v684 = vpack.c.b16 %v659, %v658
        %v685 = vpack.c.b16 %v661, %v660
        %v686 = vpack.c.b16 %v663, %v662
        %v687 = vpack.c.b16 %v665, %v664
        %v688 = vpack.c.b16 %v667, %v666
        %v689 = vpack.c.b16 %v669, %v668
        %v690 = vpack.c.b16 %v671, %v670
        %v691 = vpack.c.b16 %v673, %v672
        %v692 = vpack.c.b16 %v675, %v674
        %v693 = vpack.c.b16 %v677, %v676
        %710 = vmatprep.subr.bf16.mxu0 0
        %711 = vmatpush1.bf16.msra.mxu0 %v678
        %712 = vmatprep.subr.bf16.mxu0 0
        %713 = vmatpush1.bf16.msra.mxu0 %v679
        %714 = vmatprep.subr.bf16.mxu0 0
        %715 = vmatpush1.bf16.msra.mxu0 %v680
        %716 = vmatprep.subr.bf16.mxu0 0
        %717 = vmatpush1.bf16.msra.mxu0 %v681
        %718 = vmatprep.subr.bf16.mxu0 0
        %719 = vmatpush1.bf16.msra.mxu0 %v682
        %720 = vmatprep.subr.bf16.mxu0 0
        %721 = vmatpush1.bf16.msra.mxu0 %v683
        %722 = vmatprep.subr.bf16.mxu0 0
        %723 = vmatpush1.bf16.msra.mxu0 %v684
        %724 = vmatprep.subr.bf16.mxu0 0
        %725 = vmatpush1.bf16.msra.mxu0 %v685
        %726 = vmatprep.subr.bf16.mxu0 0
        %727 = vmatpush1.bf16.msra.mxu0 %v686
        %728 = vmatprep.subr.bf16.mxu0 0
        %729 = vmatpush1.bf16.msra.mxu0 %v687
        %730 = vmatprep.subr.bf16.mxu0 0
        %731 = vmatpush1.bf16.msra.mxu0 %v688
        %732 = vmatprep.subr.bf16.mxu0 0
        %733 = vmatpush1.bf16.msra.mxu0 %v689
        %734 = vmatprep.subr.bf16.mxu0 0
        %735 = vmatpush1.bf16.msra.mxu0 %v690
        %736 = vmatprep.subr.bf16.mxu0 0
        %737 = vmatpush1.bf16.msra.mxu0 %v691
        %738 = vmatprep.subr.bf16.mxu0 0
        %739 = vmatpush1.bf16.msra.mxu0 %v692
        %740 = vmatprep.subr.bf16.mxu0 0
        %741 = vmatpush1.bf16.msra.mxu0 %v693
        %742 = vmatprep.mubr.bf16.mxu0 %v607
        %743 = vmatmul.mubr.bf16.gmra.mrb[0].mxu0 %v606
        %v744 = vpop.f32.mrb[0].mxu0
        %v745 = vadd.f32 %v590, %v744
        %v746 = vpop.f32.mrb[0].mxu0
        %v747 = vpop.f32.mrb[0].mxu0
        %v748 = vadd.f32 %v591, %v747
        %v749 = vpop.f32.mrb[0].mxu0
        %750 = vmatprep.mubr.bf16.mxu0 %v609
        %751 = vmatmul.mubr.bf16.gmra.mrb[0].mxu0 %v608
        %v752 = vpop.f32.mrb[0].mxu0
        %v753 = vadd.f32 %v592, %v752
        %v754 = vpop.f32.mrb[0].mxu0
        %v755 = vpop.f32.mrb[0].mxu0
        %v756 = vadd.f32 %v593, %v755
        %v757 = vpop.f32.mrb[0].mxu0
        %758 = vdwg.mxu0
        %v759 = vld [vmem:[%s3] sm:$0x1]
        %v760 = vld [vmem:[%s4] sm:$0x1]
        %761 = vadd.xlane.f32.xlu0 %v745
        %v762 = vpop.xlane.xlu0 %761
        %763 = vadd.xlane.f32.xlu0 %v748
        %v764 = vpop.xlane.xlu0 %763
        %765 = vadd.xlane.f32.xlu0 %v753
        %v766 = vpop.xlane.xlu0 %765
        %767 = vadd.xlane.f32.xlu0 %v756
        %v768 = vpop.xlane.xlu0 %767
        %v769 = vrcp.pop 128.0
        %v770 = vmul.f32 %v762, %v769
        %v771 = vmul.f32 %v764, %v769
        %v772 = vmul.f32 %v766, %v769
        %v773 = vmul.f32 %v768, %v769
        %v774 = vsub.f32 %v745, %v770
        %v775 = vsub.f32 %v748, %v771
        %v776 = vsub.f32 %v753, %v772
        %v777 = vsub.f32 %v756, %v773
        %v778 = vmul.f32 %v774, %v774
        %v779 = vmul.f32 %v775, %v775
        %v780 = vmul.f32 %v776, %v776
        %v781 = vmul.f32 %v777, %v777
        %782 = vadd.xlane.f32.xlu0 %v778
        %v783 = vpop.xlane.xlu0 %782
        %784 = vadd.xlane.f32.xlu0 %v779
        %v785 = vpop.xlane.xlu0 %784
        %786 = vadd.xlane.f32.xlu0 %v780
        %v787 = vpop.xlane.xlu0 %786
        %788 = vadd.xlane.f32.xlu0 %v781
        %v789 = vpop.xlane.xlu0 %788
        %v790 = vmul.f32 %v783, %v769
        %v791 = vmul.f32 %v785, %v769
        %v792 = vmul.f32 %v787, %v769
        %v793 = vmul.f32 %v789, %v769
        %v794 = vadd.f32 %v790, 1e-06
        %v795 = vadd.f32 %v791, 1e-06
        %v796 = vadd.f32 %v792, 1e-06
        %v797 = vadd.f32 %v793, 1e-06
        %v798 = vrsqrt.pop %v794
        %v799 = vrsqrt.pop %v795
        %v800 = vrsqrt.pop %v796
        %v801 = vrsqrt.pop %v797
        %v802 = vmul.f32 %v774, %v798
        %v803 = vmul.f32 %v775, %v799
        %v804 = vmul.f32 %v776, %v800
        %v805 = vmul.f32 %v777, %v801
        %v807 = vlaneseq
        %v808 = vshrl.u32 %v807, 7
        %v809 = vsub.s32 0, %v808
        %v810 = vrot.slane %v759, %v809
        %v812 = vmul.f32 %v802, %v810
        %v813 = vmul.f32 %v803, %v810
        %v814 = vmul.f32 %v804, %v810
        %v815 = vmul.f32 %v805, %v810
        %v817 = vlaneseq
        %v818 = vshrl.u32 %v817, 7
        %v819 = vsub.s32 0, %v818
        %v820 = vrot.slane %v760, %v819
        %v822 = vadd.f32 %v812, %v820
        %v823 = vadd.f32 %v813, %v820
        %v824 = vadd.f32 %v814, %v820
        %v825 = vadd.f32 %v815, %v820
        %v826 = vpack.c.bf16 %v823, %v822
        %v827 = vpack.c.bf16 %v825, %v824
        %v828 = vld [vmem:[%s5] sm:$0xff]
        %v829 = vld [vmem:[%s5 + $0x8] sm:$0xf]
        %v830 = vld [vmem:[%s5 + $0xc] sm:$0xff]
        %v831 = vld [vmem:[%s5 + $0x14] sm:$0xf]
        %v832 = vld [vmem:[%s5 + $0x18] sm:$0xff]
        %v833 = vld [vmem:[%s5 + $0x20] sm:$0xf]
        %v834 = vld [vmem:[%s5 + $0x24] sm:$0xff]
        %v835 = vld [vmem:[%s5 + $0x2c] sm:$0xf]
        %v836 = vld [vmem:[%s5 + $0x30] sm:$0xff]
        %v837 = vld [vmem:[%s5 + $0x38] sm:$0xf]
        %v838 = vld [vmem:[%s5 + $0x3c] sm:$0xff]
        %v839 = vld [vmem:[%s5 + $0x44] sm:$0xf]
        %v840 = vld [vmem:[%s5 + $0x48] sm:$0xff]
        %v841 = vld [vmem:[%s5 + $0x50] sm:$0xf]
        %v842 = vld [vmem:[%s5 + $0x54] sm:$0xff]
        %v843 = vld [vmem:[%s5 + $0x5c] sm:$0xf]
        %v844 = vld [vmem:[%s5 + $0x60] sm:$0xff]
        %v845 = vld [vmem:[%s5 + $0x68] sm:$0xf]
        %v846 = vld [vmem:[%s5 + $0x6c] sm:$0xff]
        %v847 = vld [vmem:[%s5 + $0x74] sm:$0xf]
        %v848 = vld [vmem:[%s5 + $0x78] sm:$0xff]
        %v849 = vld [vmem:[%s5 + $0x80] sm:$0xf]
        %v850 = vld [vmem:[%s5 + $0x84] sm:$0xff]
        %v851 = vld [vmem:[%s5 + $0x8c] sm:$0xf]
        %v852 = vld [vmem:[%s5 + $0x90] sm:$0xff]
        %v853 = vld [vmem:[%s5 + $0x98] sm:$0xf]
        %v854 = vld [vmem:[%s5 + $0x9c] sm:$0xff]
        %v855 = vld [vmem:[%s5 + $0xa4] sm:$0xf]
        %v856 = vld [vmem:[%s5 + $0xa8] sm:$0xff]
        %v857 = vld [vmem:[%s5 + $0xb0] sm:$0xf]
        %v858 = vld [vmem:[%s5 + $0xb4] sm:$0xff]
        %v859 = vld [vmem:[%s5 + $0xbc] sm:$0xf]
        %v860 = vld [vmem:[%s6] sm:$0x7]
        %v862 = vlaneseq
        %v863 = vshrl.u32 %v862, 7
        %v864 = vsub.s32 0, %v863
        %v865 = vrot.slane %v860, %v864
        %v866 = vlaneseq
        %v867 = vshrl.u32 %v866, 7
        %v868 = vsub.s32 1, %v867
        %v869 = vrot.slane %v860, %v868
        %v870 = vlaneseq
        %v871 = vshrl.u32 %v870, 7
        %v872 = vsub.s32 2, %v871
        %v873 = vrot.slane %v860, %v872
        %v909 = vunpack.c.l.b16 %v828
        %v910 = vunpack.c.h.b16 %v828
        %v911 = vunpack.c.l.b16 %v829
        %v912 = vunpack.c.l.b16 %v830
        %v913 = vunpack.c.h.b16 %v830
        %v914 = vunpack.c.l.b16 %v831
        %v915 = vunpack.c.l.b16 %v832
        %v916 = vunpack.c.h.b16 %v832
        %v917 = vunpack.c.l.b16 %v833
        %v918 = vunpack.c.l.b16 %v834
        %v919 = vunpack.c.h.b16 %v834
        %v920 = vunpack.c.l.b16 %v835
        %v921 = vunpack.c.l.b16 %v836
        %v922 = vunpack.c.h.b16 %v836
        %v923 = vunpack.c.l.b16 %v837
        %v924 = vunpack.c.l.b16 %v838
        %v925 = vunpack.c.h.b16 %v838
        %v926 = vunpack.c.l.b16 %v839
        %v927 = vunpack.c.l.b16 %v840
        %v928 = vunpack.c.h.b16 %v840
        %v929 = vunpack.c.l.b16 %v841
        %v930 = vunpack.c.l.b16 %v842
        %v931 = vunpack.c.h.b16 %v842
        %v932 = vunpack.c.l.b16 %v843
        %v933 = vunpack.c.l.b16 %v844
        %v934 = vunpack.c.h.b16 %v844
        %v935 = vunpack.c.l.b16 %v845
        %v936 = vunpack.c.l.b16 %v846
        %v937 = vunpack.c.h.b16 %v846
        %v938 = vunpack.c.l.b16 %v847
        %v939 = vunpack.c.l.b16 %v848
        %v940 = vunpack.c.h.b16 %v848
        %v941 = vunpack.c.l.b16 %v849
        %v942 = vunpack.c.l.b16 %v850
        %v943 = vunpack.c.h.b16 %v850
        %v944 = vunpack.c.l.b16 %v851
        %v945 = vunpack.c.l.b16 %v852
        %v946 = vunpack.c.h.b16 %v852
        %v947 = vunpack.c.l.b16 %v853
        %v948 = vunpack.c.l.b16 %v854
        %v949 = vunpack.c.h.b16 %v854
        %v950 = vunpack.c.l.b16 %v855
        %v951 = vunpack.c.l.b16 %v856
        %v952 = vunpack.c.h.b16 %v856
        %v953 = vunpack.c.l.b16 %v857
        %v954 = vunpack.c.l.b16 %v858
        %v955 = vunpack.c.h.b16 %v858
        %v956 = vunpack.c.l.b16 %v859
        %v957 = vpack.c.b16 %v912, %v909
        %v958 = vpack.c.b16 %v913, %v910
        %v959 = vpack.c.b16 %v914, %v911
        %v960 = vpack.c.b16 %v918, %v915
        %v961 = vpack.c.b16 %v919, %v916
        %v962 = vpack.c.b16 %v920, %v917
        %v963 = vpack.c.b16 %v924, %v921
        %v964 = vpack.c.b16 %v925, %v922
        %v965 = vpack.c.b16 %v926, %v923
        %v966 = vpack.c.b16 %v930, %v927
        %v967 = vpack.c.b16 %v931, %v928
        %v968 = vpack.c.b16 %v932, %v929
        %v969 = vpack.c.b16 %v936, %v933
        %v970 = vpack.c.b16 %v937, %v934
        %v971 = vpack.c.b16 %v938, %v935
        %v972 = vpack.c.b16 %v942, %v939
        %v973 = vpack.c.b16 %v943, %v940
        %v974 = vpack.c.b16 %v944, %v941
        %v975 = vpack.c.b16 %v948, %v945
        %v976 = vpack.c.b16 %v949, %v946
        %v977 = vpack.c.b16 %v950, %v947
        %v978 = vpack.c.b16 %v954, %v951
        %v979 = vpack.c.b16 %v955, %v952
        %v980 = vpack.c.b16 %v956, %v953
        %1005 = vmatprep.subr.bf16.mxu0 %v958
        %1006 = vmatpush1.bf16.msra.mxu0 %v957
        %1007 = vmatprep.subr.bf16.mxu0 %v961
        %1008 = vmatpush1.bf16.msra.mxu0 %v960
        %1009 = vmatprep.subr.bf16.mxu0 %v964
        %1010 = vmatpush1.bf16.msra.mxu0 %v963
        %1011 = vmatprep.subr.bf16.mxu0 %v967
        %1012 = vmatpush1.bf16.msra.mxu0 %v966
        %1013 = vmatprep.subr.bf16.mxu0 %v970
        %1014 = vmatpush1.bf16.msra.mxu0 %v969
        %1015 = vmatprep.subr.bf16.mxu0 %v973
        %1016 = vmatpush1.bf16.msra.mxu0 %v972
        %1017 = vmatprep.subr.bf16.mxu0 %v976
        %1018 = vmatpush1.bf16.msra.mxu0 %v975
        %1019 = vmatprep.subr.bf16.mxu0 %v979
        %1020 = vmatpush1.bf16.msra.mxu0 %v978
        %1021 = vmatprep.subr.bf16.mxu0 0
        %1022 = vmatpush1.bf16.msra.mxu0 0
        %1023 = vmatprep.subr.bf16.mxu0 0
        %1024 = vmatpush1.bf16.msra.mxu0 0
        %1025 = vmatprep.subr.bf16.mxu0 0
        %1026 = vmatpush1.bf16.msra.mxu0 0
        %1027 = vmatprep.subr.bf16.mxu0 0
        %1028 = vmatpush1.bf16.msra.mxu0 0
        %1029 = vmatprep.subr.bf16.mxu0 0
        %1030 = vmatpush1.bf16.msra.mxu0 0
        %1031 = vmatprep.subr.bf16.mxu0 0
        %1032 = vmatpush1.bf16.msra.mxu0 0
        %1033 = vmatprep.subr.bf16.mxu0 0
        %1034 = vmatpush1.bf16.msra.mxu0 0
        %1035 = vmatprep.subr.bf16.mxu0 0
        %1036 = vmatpush1.bf16.msra.mxu0 0
        %1037 = vmatprep.mubr.bf16.mxu0 0
        %1038 = vmatmul.mubr.bf16.gmra.mrb[0].mxu0 %v826
        %v1039 = vpop.f32.mrb[0].mxu0
        %v1040 = vadd.f32 %v865, %v1039
        %v1041 = vpop.f32.mrb[0].mxu0
        %v1042 = vadd.f32 %v869, %v1041
        %v1043 = vpop.f32.mrb[0].mxu0
        %v1044 = vadd.f32 %v865, %v1043
        %v1045 = vpop.f32.mrb[0].mxu0
        %v1046 = vadd.f32 %v869, %v1045
        %1047 = vmatprep.mubr.bf16.mxu0 0
        %1048 = vmatmul.mubr.bf16.gmra.mrb[0].mxu0 %v827
        %v1049 = vpop.f32.mrb[0].mxu0
        %v1050 = vadd.f32 %v865, %v1049
        %v1051 = vpop.f32.mrb[0].mxu0
        %v1052 = vadd.f32 %v869, %v1051
        %v1053 = vpop.f32.mrb[0].mxu0
        %v1054 = vadd.f32 %v865, %v1053
        %v1055 = vpop.f32.mrb[0].mxu0
        %v1056 = vadd.f32 %v869, %v1055
        %1057 = vdwg.mxu0
        %1058 = vmatprep.subr.bf16.mxu0 0
        %1059 = vmatpush1.bf16.msra.mxu0 %v959
        %1060 = vmatprep.subr.bf16.mxu0 0
        %1061 = vmatpush1.bf16.msra.mxu0 %v962
        %1062 = vmatprep.subr.bf16.mxu0 0
        %1063 = vmatpush1.bf16.msra.mxu0 %v965
        %1064 = vmatprep.subr.bf16.mxu0 0
        %1065 = vmatpush1.bf16.msra.mxu0 %v968
        %1066 = vmatprep.subr.bf16.mxu0 0
        %1067 = vmatpush1.bf16.msra.mxu0 %v971
        %1068 = vmatprep.subr.bf16.mxu0 0
        %1069 = vmatpush1.bf16.msra.mxu0 %v974
        %1070 = vmatprep.subr.bf16.mxu0 0
        %1071 = vmatpush1.bf16.msra.mxu0 %v977
        %1072 = vmatprep.subr.bf16.mxu0 0
        %1073 = vmatpush1.bf16.msra.mxu0 %v980
        %1074 = vmatprep.subr.bf16.mxu0 0
        %1075 = vmatpush1.bf16.msra.mxu0 0
        %1076 = vmatprep.subr.bf16.mxu0 0
        %1077 = vmatpush1.bf16.msra.mxu0 0
        %1078 = vmatprep.subr.bf16.mxu0 0
        %1079 = vmatpush1.bf16.msra.mxu0 0
        %1080 = vmatprep.subr.bf16.mxu0 0
        %1081 = vmatpush1.bf16.msra.mxu0 0
        %1082 = vmatprep.subr.bf16.mxu0 0
        %1083 = vmatpush1.bf16.msra.mxu0 0
        %1084 = vmatprep.subr.bf16.mxu0 0
        %1085 = vmatpush1.bf16.msra.mxu0 0
        %1086 = vmatprep.subr.bf16.mxu0 0
        %1087 = vmatpush1.bf16.msra.mxu0 0
        %1088 = vmatprep.subr.bf16.mxu0 0
        %1089 = vmatpush1.bf16.msra.mxu0 0
        %1090 = vmatprep.mubr.bf16.mxu0 0
        %1091 = vmatmul.mubr.bf16.gmra.mrb[0].mxu0 %v826
        %v1092 = vpop.f32.mrb[0].mxu0
        %v1093 = vadd.f32 %v873, %v1092
        %v1094 = vpop.f32.mrb[0].mxu0
        %v1095 = vpop.f32.mrb[0].mxu0
        %v1096 = vadd.f32 %v873, %v1095
        %v1097 = vpop.f32.mrb[0].mxu0
        %1098 = vmatprep.mubr.bf16.mxu0 0
        %1099 = vmatmul.mubr.bf16.gmra.mrb[0].mxu0 %v827
        %v1100 = vpop.f32.mrb[0].mxu0
        %v1101 = vadd.f32 %v873, %v1100
        %v1102 = vpop.f32.mrb[0].mxu0
        %v1103 = vpop.f32.mrb[0].mxu0
        %v1104 = vadd.f32 %v873, %v1103
        %v1105 = vpop.f32.mrb[0].mxu0
        %1106 = vdwg.mxu0
        %v1107 = vpack.c.bf16 %v1044, %v1040
        %v1108 = vpack.c.bf16 %v1046, %v1042
        %v1109 = vpack.c.bf16 %v1096, %v1093
        %v1110 = vpack.c.bf16 %v1054, %v1050
        %v1111 = vpack.c.bf16 %v1056, %v1052
        %v1112 = vpack.c.bf16 %v1104, %v1101
        %vm1113 = vcmask 261120
        %v1115 = vsel %vm1113, %v1107, 0
        %v1118 = vsel %vm1113, %v1108, 0
        %1120 = vmatprep.subr.bf16.mxu0 0
        %1121 = vmatpush1.bf16.xpose.msra.mxu0 %v1118
        %1122 = vmatprep.subr.bf16.mxu0 0
        %1123 = vmatpush1.bf16.xpose.msra.mxu0 0
        %1124 = vmatprep.subr.bf16.mxu0 0
        %1125 = vmatpush1.bf16.xpose.msra.mxu0 0
        %1126 = vmatprep.subr.bf16.mxu0 0
        %1127 = vmatpush1.bf16.xpose.msra.mxu0 0
        %1128 = vmatprep.subr.bf16.mxu0 0
        %1129 = vmatpush1.bf16.xpose.msra.mxu0 0
        %1130 = vmatprep.subr.bf16.mxu0 0
        %1131 = vmatpush1.bf16.xpose.msra.mxu0 0
        %1132 = vmatprep.subr.bf16.mxu0 0
        %1133 = vmatpush1.bf16.xpose.msra.mxu0 0
        %1134 = vmatprep.subr.bf16.mxu0 0
        %1135 = vmatpush1.bf16.xpose.msra.mxu0 0
        %1136 = vmatprep.subr.bf16.mxu0 0
        %1137 = vmatpush1.bf16.xpose.msra.mxu0 0
        %1138 = vmatprep.subr.bf16.mxu0 0
        %1139 = vmatpush1.bf16.xpose.msra.mxu0 0
        %1140 = vmatprep.subr.bf16.mxu0 0
        %1141 = vmatpush1.bf16.xpose.msra.mxu0 0
        %1142 = vmatprep.subr.bf16.mxu0 0
        %1143 = vmatpush1.bf16.xpose.msra.mxu0 0
        %1144 = vmatprep.subr.bf16.mxu0 0
        %1145 = vmatpush1.bf16.xpose.msra.mxu0 0
        %1146 = vmatprep.subr.bf16.mxu0 0
        %1147 = vmatpush1.bf16.xpose.msra.mxu0 0
        %1148 = vmatprep.subr.bf16.mxu0 0
        %1149 = vmatpush1.bf16.xpose.msra.mxu0 0
        %1150 = vmatprep.subr.bf16.mxu0 0
        %1151 = vmatpush1.bf16.xpose.msra.mxu0 0
        %1152 = vmatprep.mubr.bf16.mxu0 0
        %1153 = vmatmul.mubr.bf16.gmra.mrb[0].mxu0 %v1115
        %v1154 = vpop.f32.mrb[0].mxu0
        %v1155 = vadd.f32 0.0, %v1154
        %v1156 = vpop.f32.mrb[0].mxu0
        %v1157 = vpop.f32.mrb[0].mxu0
        %v1158 = vadd.f32 0.0, %v1157
        %v1159 = vpop.f32.mrb[0].mxu0
        %1160 = vdwg.mxu0
        %v1161 = vmul.f32 %v1155, 0.17677669
        %v1162 = vmul.f32 %v1158, 0.17677669
        %vm1163 = vcmask 130048
        %v1164 = vsel %vm1163, %v1161, -inf
        %1165 = vmax.xlane.f32.xlu0 %v1164
        %v1166 = vpop.xlane.xlu0 %1165
        %v1167 = vsel %vm1163, %v1162, -inf
        %1168 = vmax.xlane.f32.xlu0 %v1167
        %v1169 = vpop.xlane.xlu0 %1168
        %v1170 = vsub.f32 %v1161, %v1166
        %v1171 = vsub.f32 %v1162, %v1169
        %v1172 = vmul.f32 %v1170, 1.442695
        %v1173 = vpow.pop %v1172
        %v1174 = vmul.f32 %v1171, 1.442695
        %v1175 = vpow.pop %v1174
        %v1176 = vsel %vm1163, %v1173, 0.0
        %1177 = vadd.xlane.f32.xlu0 %v1176
        %v1178 = vpop.xlane.xlu0 %1177
        %v1179 = vsel %vm1163, %v1175, 0.0
        %1180 = vadd.xlane.f32.xlu0 %v1179
        %v1181 = vpop.xlane.xlu0 %1180
        %v1182 = vrcp.pop %v1178
        %v1183 = vmul.f32 %v1173, %v1182
        %v1184 = vrcp.pop %v1181
        %v1185 = vmul.f32 %v1175, %v1184
        %v1186 = vpack.c.bf16 %v1185, %v1183
        %v1188 = vsel %vm1163, %v1186, 0
        %1190 = vmatprep.subr.bf16.mxu0 0
        %1191 = vmatpush1.bf16.msra.mxu0 %v1109
        %1192 = vmatprep.subr.bf16.mxu0 0
        %1193 = vmatpush1.bf16.msra.mxu0 0
        %1194 = vmatprep.subr.bf16.mxu0 0
        %1195 = vmatpush1.bf16.msra.mxu0 0
        %1196 = vmatprep.subr.bf16.mxu0 0
        %1197 = vmatpush1.bf16.msra.mxu0 0
        %1198 = vmatprep.subr.bf16.mxu0 0
        %1199 = vmatpush1.bf16.msra.mxu0 0
        %1200 = vmatprep.subr.bf16.mxu0 0
        %1201 = vmatpush1.bf16.msra.mxu0 0
        %1202 = vmatprep.subr.bf16.mxu0 0
        %1203 = vmatpush1.bf16.msra.mxu0 0
        %1204 = vmatprep.subr.bf16.mxu0 0
        %1205 = vmatpush1.bf16.msra.mxu0 0
        %1206 = vmatprep.subr.bf16.mxu0 0
        %1207 = vmatpush1.bf16.msra.mxu0 0
        %1208 = vmatprep.subr.bf16.mxu0 0
        %1209 = vmatpush1.bf16.msra.mxu0 0
        %1210 = vmatprep.subr.bf16.mxu0 0
        %1211 = vmatpush1.bf16.msra.mxu0 0
        %1212 = vmatprep.subr.bf16.mxu0 0
        %1213 = vmatpush1.bf16.msra.mxu0 0
        %1214 = vmatprep.subr.bf16.mxu0 0
        %1215 = vmatpush1.bf16.msra.mxu0 0
        %1216 = vmatprep.subr.bf16.mxu0 0
        %1217 = vmatpush1.bf16.msra.mxu0 0
        %1218 = vmatprep.subr.bf16.mxu0 0
        %1219 = vmatpush1.bf16.msra.mxu0 0
        %1220 = vmatprep.subr.bf16.mxu0 0
        %1221 = vmatpush1.bf16.msra.mxu0 0
        %1222 = vmatprep.mubr.bf16.mxu0 0
        %1223 = vmatmul.mubr.bf16.gmra.mrb[0].mxu0 %v1188
        %v1224 = vpop.f32.mrb[0].mxu0
        %v1225 = vadd.f32 0.0, %v1224
        %v1226 = vpop.f32.mrb[0].mxu0
        %v1227 = vpop.f32.mrb[0].mxu0
        %v1228 = vadd.f32 0.0, %v1227
        %v1229 = vpop.f32.mrb[0].mxu0
        %1230 = vdwg.mxu0
        %v1232 = vsel %vm1113, %v1110, 0
        %v1235 = vsel %vm1113, %v1111, 0
        %1237 = vmatprep.subr.bf16.mxu0 0
        %1238 = vmatpush1.bf16.xpose.msra.mxu0 %v1235
        %1239 = vmatprep.subr.bf16.mxu0 0
        %1240 = vmatpush1.bf16.xpose.msra.mxu0 0
        %1241 = vmatprep.subr.bf16.mxu0 0
        %1242 = vmatpush1.bf16.xpose.msra.mxu0 0
        %1243 = vmatprep.subr.bf16.mxu0 0
        %1244 = vmatpush1.bf16.xpose.msra.mxu0 0
        %1245 = vmatprep.subr.bf16.mxu0 0
        %1246 = vmatpush1.bf16.xpose.msra.mxu0 0
        %1247 = vmatprep.subr.bf16.mxu0 0
        %1248 = vmatpush1.bf16.xpose.msra.mxu0 0
        %1249 = vmatprep.subr.bf16.mxu0 0
        %1250 = vmatpush1.bf16.xpose.msra.mxu0 0
        %1251 = vmatprep.subr.bf16.mxu0 0
        %1252 = vmatpush1.bf16.xpose.msra.mxu0 0
        %1253 = vmatprep.subr.bf16.mxu0 0
        %1254 = vmatpush1.bf16.xpose.msra.mxu0 0
        %1255 = vmatprep.subr.bf16.mxu0 0
        %1256 = vmatpush1.bf16.xpose.msra.mxu0 0
        %1257 = vmatprep.subr.bf16.mxu0 0
        %1258 = vmatpush1.bf16.xpose.msra.mxu0 0
        %1259 = vmatprep.subr.bf16.mxu0 0
        %1260 = vmatpush1.bf16.xpose.msra.mxu0 0
        %1261 = vmatprep.subr.bf16.mxu0 0
        %1262 = vmatpush1.bf16.xpose.msra.mxu0 0
        %1263 = vmatprep.subr.bf16.mxu0 0
        %1264 = vmatpush1.bf16.xpose.msra.mxu0 0
        %1265 = vmatprep.subr.bf16.mxu0 0
        %1266 = vmatpush1.bf16.xpose.msra.mxu0 0
        %1267 = vmatprep.subr.bf16.mxu0 0
        %1268 = vmatpush1.bf16.xpose.msra.mxu0 0
        %1269 = vmatprep.mubr.bf16.mxu0 0
        %1270 = vmatmul.mubr.bf16.gmra.mrb[0].mxu0 %v1232
        %v1271 = vpop.f32.mrb[0].mxu0
        %v1272 = vadd.f32 0.0, %v1271
        %v1273 = vpop.f32.mrb[0].mxu0
        %v1274 = vpop.f32.mrb[0].mxu0
        %v1275 = vadd.f32 0.0, %v1274
        %v1276 = vpop.f32.mrb[0].mxu0
        %1277 = vdwg.mxu0
        %v1278 = vmul.f32 %v1272, 0.17677669
        %v1279 = vmul.f32 %v1275, 0.17677669
        %v1280 = vsel %vm1163, %v1278, -inf
        %1281 = vmax.xlane.f32.xlu0 %v1280
        %v1282 = vpop.xlane.xlu0 %1281
        %v1283 = vsel %vm1163, %v1279, -inf
        %1284 = vmax.xlane.f32.xlu0 %v1283
        %v1285 = vpop.xlane.xlu0 %1284
        %v1286 = vsub.f32 %v1278, %v1282
        %v1287 = vsub.f32 %v1279, %v1285
        %v1288 = vmul.f32 %v1286, 1.442695
        %v1289 = vpow.pop %v1288
        %v1290 = vmul.f32 %v1287, 1.442695
        %v1291 = vpow.pop %v1290
        %v1292 = vsel %vm1163, %v1289, 0.0
        %1293 = vadd.xlane.f32.xlu0 %v1292
        %v1294 = vpop.xlane.xlu0 %1293
        %v1295 = vsel %vm1163, %v1291, 0.0
        %1296 = vadd.xlane.f32.xlu0 %v1295
        %v1297 = vpop.xlane.xlu0 %1296
        %v1298 = vrcp.pop %v1294
        %v1299 = vmul.f32 %v1289, %v1298
        %v1300 = vrcp.pop %v1297
        %v1301 = vmul.f32 %v1291, %v1300
        %v1302 = vpack.c.bf16 %v1301, %v1299
        %v1304 = vsel %vm1163, %v1302, 0
        %1306 = vmatprep.subr.bf16.mxu0 0
        %1307 = vmatpush1.bf16.msra.mxu0 %v1112
        %1308 = vmatprep.subr.bf16.mxu0 0
        %1309 = vmatpush1.bf16.msra.mxu0 0
        %1310 = vmatprep.subr.bf16.mxu0 0
        %1311 = vmatpush1.bf16.msra.mxu0 0
        %1312 = vmatprep.subr.bf16.mxu0 0
        %1313 = vmatpush1.bf16.msra.mxu0 0
        %1314 = vmatprep.subr.bf16.mxu0 0
        %1315 = vmatpush1.bf16.msra.mxu0 0
        %1316 = vmatprep.subr.bf16.mxu0 0
        %1317 = vmatpush1.bf16.msra.mxu0 0
        %1318 = vmatprep.subr.bf16.mxu0 0
        %1319 = vmatpush1.bf16.msra.mxu0 0
        %1320 = vmatprep.subr.bf16.mxu0 0
        %1321 = vmatpush1.bf16.msra.mxu0 0
        %1322 = vmatprep.subr.bf16.mxu0 0
        %1323 = vmatpush1.bf16.msra.mxu0 0
        %1324 = vmatprep.subr.bf16.mxu0 0
        %1325 = vmatpush1.bf16.msra.mxu0 0
        %1326 = vmatprep.subr.bf16.mxu0 0
        %1327 = vmatpush1.bf16.msra.mxu0 0
        %1328 = vmatprep.subr.bf16.mxu0 0
        %1329 = vmatpush1.bf16.msra.mxu0 0
        %1330 = vmatprep.subr.bf16.mxu0 0
        %1331 = vmatpush1.bf16.msra.mxu0 0
        %1332 = vmatprep.subr.bf16.mxu0 0
        %1333 = vmatpush1.bf16.msra.mxu0 0
        %1334 = vmatprep.subr.bf16.mxu0 0
        %1335 = vmatpush1.bf16.msra.mxu0 0
        %1336 = vmatprep.subr.bf16.mxu0 0
        %1337 = vmatpush1.bf16.msra.mxu0 0
        %1338 = vmatprep.mubr.bf16.mxu0 0
        %1339 = vmatmul.mubr.bf16.gmra.mrb[0].mxu0 %v1304
        %v1340 = vpop.f32.mrb[0].mxu0
        %v1341 = vadd.f32 0.0, %v1340
        %v1342 = vpop.f32.mrb[0].mxu0
        %v1343 = vpop.f32.mrb[0].mxu0
        %v1344 = vadd.f32 0.0, %v1343
        %v1345 = vpop.f32.mrb[0].mxu0
        %1346 = vdwg.mxu0
        %1348 = vrot.lane.b32.xlu0 %v1107, 96
        %v1349 = vpop.permute.xlu0 %1348
        %1351 = vrot.lane.b32.xlu0 %v1108, 96
        %v1352 = vpop.permute.xlu0 %1351
        %v1354 = vsel %vm1113, %v1349, 0
        %v1357 = vsel %vm1113, %v1352, 0
        %1359 = vmatprep.subr.bf16.mxu0 0
        %1360 = vmatpush1.bf16.xpose.msra.mxu0 %v1357
        %1361 = vmatprep.subr.bf16.mxu0 0
        %1362 = vmatpush1.bf16.xpose.msra.mxu0 0
        %1363 = vmatprep.subr.bf16.mxu0 0
        %1364 = vmatpush1.bf16.xpose.msra.mxu0 0
        %1365 = vmatprep.subr.bf16.mxu0 0
        %1366 = vmatpush1.bf16.xpose.msra.mxu0 0
        %1367 = vmatprep.subr.bf16.mxu0 0
        %1368 = vmatpush1.bf16.xpose.msra.mxu0 0
        %1369 = vmatprep.subr.bf16.mxu0 0
        %1370 = vmatpush1.bf16.xpose.msra.mxu0 0
        %1371 = vmatprep.subr.bf16.mxu0 0
        %1372 = vmatpush1.bf16.xpose.msra.mxu0 0
        %1373 = vmatprep.subr.bf16.mxu0 0
        %1374 = vmatpush1.bf16.xpose.msra.mxu0 0
        %1375 = vmatprep.subr.bf16.mxu0 0
        %1376 = vmatpush1.bf16.xpose.msra.mxu0 0
        %1377 = vmatprep.subr.bf16.mxu0 0
        %1378 = vmatpush1.bf16.xpose.msra.mxu0 0
        %1379 = vmatprep.subr.bf16.mxu0 0
        %1380 = vmatpush1.bf16.xpose.msra.mxu0 0
        %1381 = vmatprep.subr.bf16.mxu0 0
        %1382 = vmatpush1.bf16.xpose.msra.mxu0 0
        %1383 = vmatprep.subr.bf16.mxu0 0
        %1384 = vmatpush1.bf16.xpose.msra.mxu0 0
        %1385 = vmatprep.subr.bf16.mxu0 0
        %1386 = vmatpush1.bf16.xpose.msra.mxu0 0
        %1387 = vmatprep.subr.bf16.mxu0 0
        %1388 = vmatpush1.bf16.xpose.msra.mxu0 0
        %1389 = vmatprep.subr.bf16.mxu0 0
        %1390 = vmatpush1.bf16.xpose.msra.mxu0 0
        %1391 = vmatprep.mubr.bf16.mxu0 0
        %1392 = vmatmul.mubr.bf16.gmra.mrb[0].mxu0 %v1354
        %v1393 = vpop.f32.mrb[0].mxu0
        %v1394 = vadd.f32 0.0, %v1393
        %v1395 = vpop.f32.mrb[0].mxu0
        %v1396 = vpop.f32.mrb[0].mxu0
        %v1397 = vadd.f32 0.0, %v1396
        %v1398 = vpop.f32.mrb[0].mxu0
        %1399 = vdwg.mxu0
        %v1400 = vmul.f32 %v1394, 0.17677669
        %v1401 = vmul.f32 %v1397, 0.17677669
        %v1402 = vsel %vm1163, %v1400, -inf
        %1403 = vmax.xlane.f32.xlu0 %v1402
        %v1404 = vpop.xlane.xlu0 %1403
        %v1405 = vsel %vm1163, %v1401, -inf
        %1406 = vmax.xlane.f32.xlu0 %v1405
        %v1407 = vpop.xlane.xlu0 %1406
        %v1408 = vsub.f32 %v1400, %v1404
        %v1409 = vsub.f32 %v1401, %v1407
        %v1410 = vmul.f32 %v1408, 1.442695
        %v1411 = vpow.pop %v1410
        %v1412 = vmul.f32 %v1409, 1.442695
        %v1413 = vpow.pop %v1412
        %v1414 = vsel %vm1163, %v1411, 0.0
        %1415 = vadd.xlane.f32.xlu0 %v1414
        %v1416 = vpop.xlane.xlu0 %1415
        %v1417 = vsel %vm1163, %v1413, 0.0
        %1418 = vadd.xlane.f32.xlu0 %v1417
        %v1419 = vpop.xlane.xlu0 %1418
        %v1420 = vrcp.pop %v1416
        %v1421 = vmul.f32 %v1411, %v1420
        %v1422 = vrcp.pop %v1419
        %v1423 = vmul.f32 %v1413, %v1422
        %v1424 = vpack.c.bf16 %v1423, %v1421
        %1426 = vrot.lane.b32.xlu0 %v1109, 96
        %v1427 = vpop.permute.xlu0 %1426
        %v1430 = vsel %vm1163, %v1424, 0
        %1432 = vmatprep.subr.bf16.mxu0 0
        %1433 = vmatpush1.bf16.msra.mxu0 %v1427
        %1434 = vmatprep.subr.bf16.mxu0 0
        %1435 = vmatpush1.bf16.msra.mxu0 0
        %1436 = vmatprep.subr.bf16.mxu0 0
        %1437 = vmatpush1.bf16.msra.mxu0 0
        %1438 = vmatprep.subr.bf16.mxu0 0
        %1439 = vmatpush1.bf16.msra.mxu0 0
        %1440 = vmatprep.subr.bf16.mxu0 0
        %1441 = vmatpush1.bf16.msra.mxu0 0
        %1442 = vmatprep.subr.bf16.mxu0 0
        %1443 = vmatpush1.bf16.msra.mxu0 0
        %1444 = vmatprep.subr.bf16.mxu0 0
        %1445 = vmatpush1.bf16.msra.mxu0 0
        %1446 = vmatprep.subr.bf16.mxu0 0
        %1447 = vmatpush1.bf16.msra.mxu0 0
        %1448 = vmatprep.subr.bf16.mxu0 0
        %1449 = vmatpush1.bf16.msra.mxu0 0
        %1450 = vmatprep.subr.bf16.mxu0 0
        %1451 = vmatpush1.bf16.msra.mxu0 0
        %1452 = vmatprep.subr.bf16.mxu0 0
        %1453 = vmatpush1.bf16.msra.mxu0 0
        %1454 = vmatprep.subr.bf16.mxu0 0
        %1455 = vmatpush1.bf16.msra.mxu0 0
        %1456 = vmatprep.subr.bf16.mxu0 0
        %1457 = vmatpush1.bf16.msra.mxu0 0
        %1458 = vmatprep.subr.bf16.mxu0 0
        %1459 = vmatpush1.bf16.msra.mxu0 0
        %1460 = vmatprep.subr.bf16.mxu0 0
        %1461 = vmatpush1.bf16.msra.mxu0 0
        %1462 = vmatprep.subr.bf16.mxu0 0
        %1463 = vmatpush1.bf16.msra.mxu0 0
        %1464 = vmatprep.mubr.bf16.mxu0 0
        %1465 = vmatmul.mubr.bf16.gmra.mrb[0].mxu0 %v1430
        %v1466 = vpop.f32.mrb[0].mxu0
        %v1467 = vadd.f32 0.0, %v1466
        %v1468 = vpop.f32.mrb[0].mxu0
        %v1469 = vpop.f32.mrb[0].mxu0
        %v1470 = vadd.f32 0.0, %v1469
        %v1471 = vpop.f32.mrb[0].mxu0
        %1472 = vdwg.mxu0
        %1474 = vrot.lane.b32.xlu0 %v1110, 96
        %v1475 = vpop.permute.xlu0 %1474
        %1477 = vrot.lane.b32.xlu0 %v1111, 96
        %v1478 = vpop.permute.xlu0 %1477
        %v1480 = vsel %vm1113, %v1475, 0
        %v1483 = vsel %vm1113, %v1478, 0
        %1485 = vmatprep.subr.bf16.mxu0 0
        %1486 = vmatpush1.bf16.xpose.msra.mxu0 %v1483
        %1487 = vmatprep.subr.bf16.mxu0 0
        %1488 = vmatpush1.bf16.xpose.msra.mxu0 0
        %1489 = vmatprep.subr.bf16.mxu0 0
        %1490 = vmatpush1.bf16.xpose.msra.mxu0 0
        %1491 = vmatprep.subr.bf16.mxu0 0
        %1492 = vmatpush1.bf16.xpose.msra.mxu0 0
        %1493 = vmatprep.subr.bf16.mxu0 0
        %1494 = vmatpush1.bf16.xpose.msra.mxu0 0
        %1495 = vmatprep.subr.bf16.mxu0 0
        %1496 = vmatpush1.bf16.xpose.msra.mxu0 0
        %1497 = vmatprep.subr.bf16.mxu0 0
        %1498 = vmatpush1.bf16.xpose.msra.mxu0 0
        %1499 = vmatprep.subr.bf16.mxu0 0
        %1500 = vmatpush1.bf16.xpose.msra.mxu0 0
        %1501 = vmatprep.subr.bf16.mxu0 0
        %1502 = vmatpush1.bf16.xpose.msra.mxu0 0
        %1503 = vmatprep.subr.bf16.mxu0 0
        %1504 = vmatpush1.bf16.xpose.msra.mxu0 0
        %1505 = vmatprep.subr.bf16.mxu0 0
        %1506 = vmatpush1.bf16.xpose.msra.mxu0 0
        %1507 = vmatprep.subr.bf16.mxu0 0
        %1508 = vmatpush1.bf16.xpose.msra.mxu0 0
        %1509 = vmatprep.subr.bf16.mxu0 0
        %1510 = vmatpush1.bf16.xpose.msra.mxu0 0
        %1511 = vmatprep.subr.bf16.mxu0 0
        %1512 = vmatpush1.bf16.xpose.msra.mxu0 0
        %1513 = vmatprep.subr.bf16.mxu0 0
        %1514 = vmatpush1.bf16.xpose.msra.mxu0 0
        %1515 = vmatprep.subr.bf16.mxu0 0
        %1516 = vmatpush1.bf16.xpose.msra.mxu0 0
        %1517 = vmatprep.mubr.bf16.mxu0 0
        %1518 = vmatmul.mubr.bf16.gmra.mrb[0].mxu0 %v1480
        %v1519 = vpop.f32.mrb[0].mxu0
        %v1520 = vadd.f32 0.0, %v1519
        %v1521 = vpop.f32.mrb[0].mxu0
        %v1522 = vpop.f32.mrb[0].mxu0
        %v1523 = vadd.f32 0.0, %v1522
        %v1524 = vpop.f32.mrb[0].mxu0
        %1525 = vdwg.mxu0
        %v1526 = vmul.f32 %v1520, 0.17677669
        %v1527 = vmul.f32 %v1523, 0.17677669
        %v1528 = vsel %vm1163, %v1526, -inf
        %1529 = vmax.xlane.f32.xlu0 %v1528
        %v1530 = vpop.xlane.xlu0 %1529
        %v1531 = vsel %vm1163, %v1527, -inf
        %1532 = vmax.xlane.f32.xlu0 %v1531
        %v1533 = vpop.xlane.xlu0 %1532
        %v1534 = vsub.f32 %v1526, %v1530
        %v1535 = vsub.f32 %v1527, %v1533
        %v1536 = vmul.f32 %v1534, 1.442695
        %v1537 = vpow.pop %v1536
        %v1538 = vmul.f32 %v1535, 1.442695
        %v1539 = vpow.pop %v1538
        %v1540 = vsel %vm1163, %v1537, 0.0
        %1541 = vadd.xlane.f32.xlu0 %v1540
        %v1542 = vpop.xlane.xlu0 %1541
        %v1543 = vsel %vm1163, %v1539, 0.0
        %1544 = vadd.xlane.f32.xlu0 %v1543
        %v1545 = vpop.xlane.xlu0 %1544
        %v1546 = vrcp.pop %v1542
        %v1547 = vmul.f32 %v1537, %v1546
        %v1548 = vrcp.pop %v1545
        %v1549 = vmul.f32 %v1539, %v1548
        %v1550 = vpack.c.bf16 %v1549, %v1547
        %1552 = vrot.lane.b32.xlu0 %v1112, 96
        %v1553 = vpop.permute.xlu0 %1552
        %v1556 = vsel %vm1163, %v1550, 0
        %1558 = vmatprep.subr.bf16.mxu0 0
        %1559 = vmatpush1.bf16.msra.mxu0 %v1553
        %1560 = vmatprep.subr.bf16.mxu0 0
        %1561 = vmatpush1.bf16.msra.mxu0 0
        %1562 = vmatprep.subr.bf16.mxu0 0
        %1563 = vmatpush1.bf16.msra.mxu0 0
        %1564 = vmatprep.subr.bf16.mxu0 0
        %1565 = vmatpush1.bf16.msra.mxu0 0
        %1566 = vmatprep.subr.bf16.mxu0 0
        %1567 = vmatpush1.bf16.msra.mxu0 0
        %1568 = vmatprep.subr.bf16.mxu0 0
        %1569 = vmatpush1.bf16.msra.mxu0 0
        %1570 = vmatprep.subr.bf16.mxu0 0
        %1571 = vmatpush1.bf16.msra.mxu0 0
        %1572 = vmatprep.subr.bf16.mxu0 0
        %1573 = vmatpush1.bf16.msra.mxu0 0
        %1574 = vmatprep.subr.bf16.mxu0 0
        %1575 = vmatpush1.bf16.msra.mxu0 0
        %1576 = vmatprep.subr.bf16.mxu0 0
        %1577 = vmatpush1.bf16.msra.mxu0 0
        %1578 = vmatprep.subr.bf16.mxu0 0
        %1579 = vmatpush1.bf16.msra.mxu0 0
        %1580 = vmatprep.subr.bf16.mxu0 0
        %1581 = vmatpush1.bf16.msra.mxu0 0
        %1582 = vmatprep.subr.bf16.mxu0 0
        %1583 = vmatpush1.bf16.msra.mxu0 0
        %1584 = vmatprep.subr.bf16.mxu0 0
        %1585 = vmatpush1.bf16.msra.mxu0 0
        %1586 = vmatprep.subr.bf16.mxu0 0
        %1587 = vmatpush1.bf16.msra.mxu0 0
        %1588 = vmatprep.subr.bf16.mxu0 0
        %1589 = vmatpush1.bf16.msra.mxu0 0
        %1590 = vmatprep.mubr.bf16.mxu0 0
        %1591 = vmatmul.mubr.bf16.gmra.mrb[0].mxu0 %v1556
        %v1592 = vpop.f32.mrb[0].mxu0
        %v1593 = vadd.f32 0.0, %v1592
        %v1594 = vpop.f32.mrb[0].mxu0
        %v1595 = vpop.f32.mrb[0].mxu0
        %v1596 = vadd.f32 0.0, %v1595
        %v1597 = vpop.f32.mrb[0].mxu0
        %1598 = vdwg.mxu0
        %1599 = vrot.lane.b32.xlu0 %v1107, 64
        %v1600 = vpop.permute.xlu0 %1599
        %1601 = vrot.lane.b32.xlu0 %v1108, 64
        %v1602 = vpop.permute.xlu0 %1601
        %v1604 = vsel %vm1113, %v1600, 0
        %v1607 = vsel %vm1113, %v1602, 0
        %1609 = vmatprep.subr.bf16.mxu0 0
        %1610 = vmatpush1.bf16.xpose.msra.mxu0 %v1607
        %1611 = vmatprep.subr.bf16.mxu0 0
        %1612 = vmatpush1.bf16.xpose.msra.mxu0 0
        %1613 = vmatprep.subr.bf16.mxu0 0
        %1614 = vmatpush1.bf16.xpose.msra.mxu0 0
        %1615 = vmatprep.subr.bf16.mxu0 0
        %1616 = vmatpush1.bf16.xpose.msra.mxu0 0
        %1617 = vmatprep.subr.bf16.mxu0 0
        %1618 = vmatpush1.bf16.xpose.msra.mxu0 0
        %1619 = vmatprep.subr.bf16.mxu0 0
        %1620 = vmatpush1.bf16.xpose.msra.mxu0 0
        %1621 = vmatprep.subr.bf16.mxu0 0
        %1622 = vmatpush1.bf16.xpose.msra.mxu0 0
        %1623 = vmatprep.subr.bf16.mxu0 0
        %1624 = vmatpush1.bf16.xpose.msra.mxu0 0
        %1625 = vmatprep.subr.bf16.mxu0 0
        %1626 = vmatpush1.bf16.xpose.msra.mxu0 0
        %1627 = vmatprep.subr.bf16.mxu0 0
        %1628 = vmatpush1.bf16.xpose.msra.mxu0 0
        %1629 = vmatprep.subr.bf16.mxu0 0
        %1630 = vmatpush1.bf16.xpose.msra.mxu0 0
        %1631 = vmatprep.subr.bf16.mxu0 0
        %1632 = vmatpush1.bf16.xpose.msra.mxu0 0
        %1633 = vmatprep.subr.bf16.mxu0 0
        %1634 = vmatpush1.bf16.xpose.msra.mxu0 0
        %1635 = vmatprep.subr.bf16.mxu0 0
        %1636 = vmatpush1.bf16.xpose.msra.mxu0 0
        %1637 = vmatprep.subr.bf16.mxu0 0
        %1638 = vmatpush1.bf16.xpose.msra.mxu0 0
        %1639 = vmatprep.subr.bf16.mxu0 0
        %1640 = vmatpush1.bf16.xpose.msra.mxu0 0
        %1641 = vmatprep.mubr.bf16.mxu0 0
        %1642 = vmatmul.mubr.bf16.gmra.mrb[0].mxu0 %v1604
        %v1643 = vpop.f32.mrb[0].mxu0
        %v1644 = vadd.f32 0.0, %v1643
        %v1645 = vpop.f32.mrb[0].mxu0
        %v1646 = vpop.f32.mrb[0].mxu0
        %v1647 = vadd.f32 0.0, %v1646
        %v1648 = vpop.f32.mrb[0].mxu0
        %1649 = vdwg.mxu0
        %v1650 = vmul.f32 %v1644, 0.17677669
        %v1651 = vmul.f32 %v1647, 0.17677669
        %v1652 = vsel %vm1163, %v1650, -inf
        %1653 = vmax.xlane.f32.xlu0 %v1652
        %v1654 = vpop.xlane.xlu0 %1653
        %v1655 = vsel %vm1163, %v1651, -inf
        %1656 = vmax.xlane.f32.xlu0 %v1655
        %v1657 = vpop.xlane.xlu0 %1656
        %v1658 = vsub.f32 %v1650, %v1654
        %v1659 = vsub.f32 %v1651, %v1657
        %v1660 = vmul.f32 %v1658, 1.442695
        %v1661 = vpow.pop %v1660
        %v1662 = vmul.f32 %v1659, 1.442695
        %v1663 = vpow.pop %v1662
        %v1664 = vsel %vm1163, %v1661, 0.0
        %1665 = vadd.xlane.f32.xlu0 %v1664
        %v1666 = vpop.xlane.xlu0 %1665
        %v1667 = vsel %vm1163, %v1663, 0.0
        %1668 = vadd.xlane.f32.xlu0 %v1667
        %v1669 = vpop.xlane.xlu0 %1668
        %v1670 = vrcp.pop %v1666
        %v1671 = vmul.f32 %v1661, %v1670
        %v1672 = vrcp.pop %v1669
        %v1673 = vmul.f32 %v1663, %v1672
        %v1674 = vpack.c.bf16 %v1673, %v1671
        %1675 = vrot.lane.b32.xlu0 %v1109, 64
        %v1676 = vpop.permute.xlu0 %1675
        %v1679 = vsel %vm1163, %v1674, 0
        %1681 = vmatprep.subr.bf16.mxu0 0
        %1682 = vmatpush1.bf16.msra.mxu0 %v1676
        %1683 = vmatprep.subr.bf16.mxu0 0
        %1684 = vmatpush1.bf16.msra.mxu0 0
        %1685 = vmatprep.subr.bf16.mxu0 0
        %1686 = vmatpush1.bf16.msra.mxu0 0
        %1687 = vmatprep.subr.bf16.mxu0 0
        %1688 = vmatpush1.bf16.msra.mxu0 0
        %1689 = vmatprep.subr.bf16.mxu0 0
        %1690 = vmatpush1.bf16.msra.mxu0 0
        %1691 = vmatprep.subr.bf16.mxu0 0
        %1692 = vmatpush1.bf16.msra.mxu0 0
        %1693 = vmatprep.subr.bf16.mxu0 0
        %1694 = vmatpush1.bf16.msra.mxu0 0
        %1695 = vmatprep.subr.bf16.mxu0 0
        %1696 = vmatpush1.bf16.msra.mxu0 0
        %1697 = vmatprep.subr.bf16.mxu0 0
        %1698 = vmatpush1.bf16.msra.mxu0 0
        %1699 = vmatprep.subr.bf16.mxu0 0
        %1700 = vmatpush1.bf16.msra.mxu0 0
        %1701 = vmatprep.subr.bf16.mxu0 0
        %1702 = vmatpush1.bf16.msra.mxu0 0
        %1703 = vmatprep.subr.bf16.mxu0 0
        %1704 = vmatpush1.bf16.msra.mxu0 0
        %1705 = vmatprep.subr.bf16.mxu0 0
        %1706 = vmatpush1.bf16.msra.mxu0 0
        %1707 = vmatprep.subr.bf16.mxu0 0
        %1708 = vmatpush1.bf16.msra.mxu0 0
        %1709 = vmatprep.subr.bf16.mxu0 0
        %1710 = vmatpush1.bf16.msra.mxu0 0
        %1711 = vmatprep.subr.bf16.mxu0 0
        %1712 = vmatpush1.bf16.msra.mxu0 0
        %1713 = vmatprep.mubr.bf16.mxu0 0
        %1714 = vmatmul.mubr.bf16.gmra.mrb[0].mxu0 %v1679
        %v1715 = vpop.f32.mrb[0].mxu0
        %v1716 = vadd.f32 0.0, %v1715
        %v1717 = vpop.f32.mrb[0].mxu0
        %v1718 = vpop.f32.mrb[0].mxu0
        %v1719 = vadd.f32 0.0, %v1718
        %v1720 = vpop.f32.mrb[0].mxu0
        %1721 = vdwg.mxu0
        %1722 = vrot.lane.b32.xlu0 %v1110, 64
        %v1723 = vpop.permute.xlu0 %1722
        %1724 = vrot.lane.b32.xlu0 %v1111, 64
        %v1725 = vpop.permute.xlu0 %1724
        %v1727 = vsel %vm1113, %v1723, 0
        %v1730 = vsel %vm1113, %v1725, 0
        %1732 = vmatprep.subr.bf16.mxu0 0
        %1733 = vmatpush1.bf16.xpose.msra.mxu0 %v1730
        %1734 = vmatprep.subr.bf16.mxu0 0
        %1735 = vmatpush1.bf16.xpose.msra.mxu0 0
        %1736 = vmatprep.subr.bf16.mxu0 0
        %1737 = vmatpush1.bf16.xpose.msra.mxu0 0
        %1738 = vmatprep.subr.bf16.mxu0 0
        %1739 = vmatpush1.bf16.xpose.msra.mxu0 0
        %1740 = vmatprep.subr.bf16.mxu0 0
        %1741 = vmatpush1.bf16.xpose.msra.mxu0 0
        %1742 = vmatprep.subr.bf16.mxu0 0
        %1743 = vmatpush1.bf16.xpose.msra.mxu0 0
        %1744 = vmatprep.subr.bf16.mxu0 0
        %1745 = vmatpush1.bf16.xpose.msra.mxu0 0
        %1746 = vmatprep.subr.bf16.mxu0 0
        %1747 = vmatpush1.bf16.xpose.msra.mxu0 0
        %1748 = vmatprep.subr.bf16.mxu0 0
        %1749 = vmatpush1.bf16.xpose.msra.mxu0 0
        %1750 = vmatprep.subr.bf16.mxu0 0
        %1751 = vmatpush1.bf16.xpose.msra.mxu0 0
        %1752 = vmatprep.subr.bf16.mxu0 0
        %1753 = vmatpush1.bf16.xpose.msra.mxu0 0
        %1754 = vmatprep.subr.bf16.mxu0 0
        %1755 = vmatpush1.bf16.xpose.msra.mxu0 0
        %1756 = vmatprep.subr.bf16.mxu0 0
        %1757 = vmatpush1.bf16.xpose.msra.mxu0 0
        %1758 = vmatprep.subr.bf16.mxu0 0
        %1759 = vmatpush1.bf16.xpose.msra.mxu0 0
        %1760 = vmatprep.subr.bf16.mxu0 0
        %1761 = vmatpush1.bf16.xpose.msra.mxu0 0
        %1762 = vmatprep.subr.bf16.mxu0 0
        %1763 = vmatpush1.bf16.xpose.msra.mxu0 0
        %1764 = vmatprep.mubr.bf16.mxu0 0
        %1765 = vmatmul.mubr.bf16.gmra.mrb[0].mxu0 %v1727
        %v1766 = vpop.f32.mrb[0].mxu0
        %v1767 = vadd.f32 0.0, %v1766
        %v1768 = vpop.f32.mrb[0].mxu0
        %v1769 = vpop.f32.mrb[0].mxu0
        %v1770 = vadd.f32 0.0, %v1769
        %v1771 = vpop.f32.mrb[0].mxu0
        %1772 = vdwg.mxu0
        %v1773 = vmul.f32 %v1767, 0.17677669
        %v1774 = vmul.f32 %v1770, 0.17677669
        %v1775 = vsel %vm1163, %v1773, -inf
        %1776 = vmax.xlane.f32.xlu0 %v1775
        %v1777 = vpop.xlane.xlu0 %1776
        %v1778 = vsel %vm1163, %v1774, -inf
        %1779 = vmax.xlane.f32.xlu0 %v1778
        %v1780 = vpop.xlane.xlu0 %1779
        %v1781 = vsub.f32 %v1773, %v1777
        %v1782 = vsub.f32 %v1774, %v1780
        %v1783 = vmul.f32 %v1781, 1.442695
        %v1784 = vpow.pop %v1783
        %v1785 = vmul.f32 %v1782, 1.442695
        %v1786 = vpow.pop %v1785
        %v1787 = vsel %vm1163, %v1784, 0.0
        %1788 = vadd.xlane.f32.xlu0 %v1787
        %v1789 = vpop.xlane.xlu0 %1788
        %v1790 = vsel %vm1163, %v1786, 0.0
        %1791 = vadd.xlane.f32.xlu0 %v1790
        %v1792 = vpop.xlane.xlu0 %1791
        %v1793 = vrcp.pop %v1789
        %v1794 = vmul.f32 %v1784, %v1793
        %v1795 = vrcp.pop %v1792
        %v1796 = vmul.f32 %v1786, %v1795
        %v1797 = vpack.c.bf16 %v1796, %v1794
        %1798 = vrot.lane.b32.xlu0 %v1112, 64
        %v1799 = vpop.permute.xlu0 %1798
        %v1802 = vsel %vm1163, %v1797, 0
        %1804 = vmatprep.subr.bf16.mxu0 0
        %1805 = vmatpush1.bf16.msra.mxu0 %v1799
        %1806 = vmatprep.subr.bf16.mxu0 0
        %1807 = vmatpush1.bf16.msra.mxu0 0
        %1808 = vmatprep.subr.bf16.mxu0 0
        %1809 = vmatpush1.bf16.msra.mxu0 0
        %1810 = vmatprep.subr.bf16.mxu0 0
        %1811 = vmatpush1.bf16.msra.mxu0 0
        %1812 = vmatprep.subr.bf16.mxu0 0
        %1813 = vmatpush1.bf16.msra.mxu0 0
        %1814 = vmatprep.subr.bf16.mxu0 0
        %1815 = vmatpush1.bf16.msra.mxu0 0
        %1816 = vmatprep.subr.bf16.mxu0 0
        %1817 = vmatpush1.bf16.msra.mxu0 0
        %1818 = vmatprep.subr.bf16.mxu0 0
        %1819 = vmatpush1.bf16.msra.mxu0 0
        %1820 = vmatprep.subr.bf16.mxu0 0
        %1821 = vmatpush1.bf16.msra.mxu0 0
        %1822 = vmatprep.subr.bf16.mxu0 0
        %1823 = vmatpush1.bf16.msra.mxu0 0
        %1824 = vmatprep.subr.bf16.mxu0 0
        %1825 = vmatpush1.bf16.msra.mxu0 0
        %1826 = vmatprep.subr.bf16.mxu0 0
        %1827 = vmatpush1.bf16.msra.mxu0 0
        %1828 = vmatprep.subr.bf16.mxu0 0
        %1829 = vmatpush1.bf16.msra.mxu0 0
        %1830 = vmatprep.subr.bf16.mxu0 0
        %1831 = vmatpush1.bf16.msra.mxu0 0
        %1832 = vmatprep.subr.bf16.mxu0 0
        %1833 = vmatpush1.bf16.msra.mxu0 0
        %1834 = vmatprep.subr.bf16.mxu0 0
        %1835 = vmatpush1.bf16.msra.mxu0 0
        %1836 = vmatprep.mubr.bf16.mxu0 0
        %1837 = vmatmul.mubr.bf16.gmra.mrb[0].mxu0 %v1802
        %v1838 = vpop.f32.mrb[0].mxu0
        %v1839 = vadd.f32 0.0, %v1838
        %v1840 = vpop.f32.mrb[0].mxu0
        %v1841 = vpop.f32.mrb[0].mxu0
        %v1842 = vadd.f32 0.0, %v1841
        %v1843 = vpop.f32.mrb[0].mxu0
        %1844 = vdwg.mxu0
        %1845 = vrot.lane.b32.xlu0 %v1107, 32
        %v1846 = vpop.permute.xlu0 %1845
        %1847 = vrot.lane.b32.xlu0 %v1108, 32
        %v1848 = vpop.permute.xlu0 %1847
        %v1850 = vsel %vm1113, %v1846, 0
        %v1853 = vsel %vm1113, %v1848, 0
        %1855 = vmatprep.subr.bf16.mxu0 0
        %1856 = vmatpush1.bf16.xpose.msra.mxu0 %v1853
        %1857 = vmatprep.subr.bf16.mxu0 0
        %1858 = vmatpush1.bf16.xpose.msra.mxu0 0
        %1859 = vmatprep.subr.bf16.mxu0 0
        %1860 = vmatpush1.bf16.xpose.msra.mxu0 0
        %1861 = vmatprep.subr.bf16.mxu0 0
        %1862 = vmatpush1.bf16.xpose.msra.mxu0 0
        %1863 = vmatprep.subr.bf16.mxu0 0
        %1864 = vmatpush1.bf16.xpose.msra.mxu0 0
        %1865 = vmatprep.subr.bf16.mxu0 0
        %1866 = vmatpush1.bf16.xpose.msra.mxu0 0
        %1867 = vmatprep.subr.bf16.mxu0 0
        %1868 = vmatpush1.bf16.xpose.msra.mxu0 0
        %1869 = vmatprep.subr.bf16.mxu0 0
        %1870 = vmatpush1.bf16.xpose.msra.mxu0 0
        %1871 = vmatprep.subr.bf16.mxu0 0
        %1872 = vmatpush1.bf16.xpose.msra.mxu0 0
        %1873 = vmatprep.subr.bf16.mxu0 0
        %1874 = vmatpush1.bf16.xpose.msra.mxu0 0
        %1875 = vmatprep.subr.bf16.mxu0 0
        %1876 = vmatpush1.bf16.xpose.msra.mxu0 0
        %1877 = vmatprep.subr.bf16.mxu0 0
        %1878 = vmatpush1.bf16.xpose.msra.mxu0 0
        %1879 = vmatprep.subr.bf16.mxu0 0
        %1880 = vmatpush1.bf16.xpose.msra.mxu0 0
        %1881 = vmatprep.subr.bf16.mxu0 0
        %1882 = vmatpush1.bf16.xpose.msra.mxu0 0
        %1883 = vmatprep.subr.bf16.mxu0 0
        %1884 = vmatpush1.bf16.xpose.msra.mxu0 0
        %1885 = vmatprep.subr.bf16.mxu0 0
        %1886 = vmatpush1.bf16.xpose.msra.mxu0 0
        %1887 = vmatprep.mubr.bf16.mxu0 0
        %1888 = vmatmul.mubr.bf16.gmra.mrb[0].mxu0 %v1850
        %v1889 = vpop.f32.mrb[0].mxu0
        %v1890 = vadd.f32 0.0, %v1889
        %v1891 = vpop.f32.mrb[0].mxu0
        %v1892 = vpop.f32.mrb[0].mxu0
        %v1893 = vadd.f32 0.0, %v1892
        %v1894 = vpop.f32.mrb[0].mxu0
        %1895 = vdwg.mxu0
        %v1896 = vmul.f32 %v1890, 0.17677669
        %v1897 = vmul.f32 %v1893, 0.17677669
        %v1898 = vsel %vm1163, %v1896, -inf
        %1899 = vmax.xlane.f32.xlu0 %v1898
        %v1900 = vpop.xlane.xlu0 %1899
        %v1901 = vsel %vm1163, %v1897, -inf
        %1902 = vmax.xlane.f32.xlu0 %v1901
        %v1903 = vpop.xlane.xlu0 %1902
        %v1904 = vsub.f32 %v1896, %v1900
        %v1905 = vsub.f32 %v1897, %v1903
        %v1906 = vmul.f32 %v1904, 1.442695
        %v1907 = vpow.pop %v1906
        %v1908 = vmul.f32 %v1905, 1.442695
        %v1909 = vpow.pop %v1908
        %v1910 = vsel %vm1163, %v1907, 0.0
        %1911 = vadd.xlane.f32.xlu0 %v1910
        %v1912 = vpop.xlane.xlu0 %1911
        %v1913 = vsel %vm1163, %v1909, 0.0
        %1914 = vadd.xlane.f32.xlu0 %v1913
        %v1915 = vpop.xlane.xlu0 %1914
        %v1916 = vrcp.pop %v1912
        %v1917 = vmul.f32 %v1907, %v1916
        %v1918 = vrcp.pop %v1915
        %v1919 = vmul.f32 %v1909, %v1918
        %v1920 = vpack.c.bf16 %v1919, %v1917
        %1921 = vrot.lane.b32.xlu0 %v1109, 32
        %v1922 = vpop.permute.xlu0 %1921
        %v1925 = vsel %vm1163, %v1920, 0
        %1927 = vmatprep.subr.bf16.mxu0 0
        %1928 = vmatpush1.bf16.msra.mxu0 %v1922
        %1929 = vmatprep.subr.bf16.mxu0 0
        %1930 = vmatpush1.bf16.msra.mxu0 0
        %1931 = vmatprep.subr.bf16.mxu0 0
        %1932 = vmatpush1.bf16.msra.mxu0 0
        %1933 = vmatprep.subr.bf16.mxu0 0
        %1934 = vmatpush1.bf16.msra.mxu0 0
        %1935 = vmatprep.subr.bf16.mxu0 0
        %1936 = vmatpush1.bf16.msra.mxu0 0
        %1937 = vmatprep.subr.bf16.mxu0 0
        %1938 = vmatpush1.bf16.msra.mxu0 0
        %1939 = vmatprep.subr.bf16.mxu0 0
        %1940 = vmatpush1.bf16.msra.mxu0 0
        %1941 = vmatprep.subr.bf16.mxu0 0
        %1942 = vmatpush1.bf16.msra.mxu0 0
        %1943 = vmatprep.subr.bf16.mxu0 0
        %1944 = vmatpush1.bf16.msra.mxu0 0
        %1945 = vmatprep.subr.bf16.mxu0 0
        %1946 = vmatpush1.bf16.msra.mxu0 0
        %1947 = vmatprep.subr.bf16.mxu0 0
        %1948 = vmatpush1.bf16.msra.mxu0 0
        %1949 = vmatprep.subr.bf16.mxu0 0
        %1950 = vmatpush1.bf16.msra.mxu0 0
        %1951 = vmatprep.subr.bf16.mxu0 0
        %1952 = vmatpush1.bf16.msra.mxu0 0
        %1953 = vmatprep.subr.bf16.mxu0 0
        %1954 = vmatpush1.bf16.msra.mxu0 0
        %1955 = vmatprep.subr.bf16.mxu0 0
        %1956 = vmatpush1.bf16.msra.mxu0 0
        %1957 = vmatprep.subr.bf16.mxu0 0
        %1958 = vmatpush1.bf16.msra.mxu0 0
        %1959 = vmatprep.mubr.bf16.mxu0 0
        %1960 = vmatmul.mubr.bf16.gmra.mrb[0].mxu0 %v1925
        %v1961 = vpop.f32.mrb[0].mxu0
        %v1962 = vadd.f32 0.0, %v1961
        %v1963 = vpop.f32.mrb[0].mxu0
        %v1964 = vpop.f32.mrb[0].mxu0
        %v1965 = vadd.f32 0.0, %v1964
        %v1966 = vpop.f32.mrb[0].mxu0
        %1967 = vdwg.mxu0
        %1968 = vrot.lane.b32.xlu0 %v1110, 32
        %v1969 = vpop.permute.xlu0 %1968
        %1970 = vrot.lane.b32.xlu0 %v1111, 32
        %v1971 = vpop.permute.xlu0 %1970
        %v1973 = vsel %vm1113, %v1969, 0
        %v1976 = vsel %vm1113, %v1971, 0
        %1978 = vmatprep.subr.bf16.mxu0 0
        %1979 = vmatpush1.bf16.xpose.msra.mxu0 %v1976
        %1980 = vmatprep.subr.bf16.mxu0 0
        %1981 = vmatpush1.bf16.xpose.msra.mxu0 0
        %1982 = vmatprep.subr.bf16.mxu0 0
        %1983 = vmatpush1.bf16.xpose.msra.mxu0 0
        %1984 = vmatprep.subr.bf16.mxu0 0
        %1985 = vmatpush1.bf16.xpose.msra.mxu0 0
        %1986 = vmatprep.subr.bf16.mxu0 0
        %1987 = vmatpush1.bf16.xpose.msra.mxu0 0
        %1988 = vmatprep.subr.bf16.mxu0 0
        %1989 = vmatpush1.bf16.xpose.msra.mxu0 0
        %1990 = vmatprep.subr.bf16.mxu0 0
        %1991 = vmatpush1.bf16.xpose.msra.mxu0 0
        %1992 = vmatprep.subr.bf16.mxu0 0
        %1993 = vmatpush1.bf16.xpose.msra.mxu0 0
        %1994 = vmatprep.subr.bf16.mxu0 0
        %1995 = vmatpush1.bf16.xpose.msra.mxu0 0
        %1996 = vmatprep.subr.bf16.mxu0 0
        %1997 = vmatpush1.bf16.xpose.msra.mxu0 0
        %1998 = vmatprep.subr.bf16.mxu0 0
        %1999 = vmatpush1.bf16.xpose.msra.mxu0 0
        %2000 = vmatprep.subr.bf16.mxu0 0
        %2001 = vmatpush1.bf16.xpose.msra.mxu0 0
        %2002 = vmatprep.subr.bf16.mxu0 0
        %2003 = vmatpush1.bf16.xpose.msra.mxu0 0
        %2004 = vmatprep.subr.bf16.mxu0 0
        %2005 = vmatpush1.bf16.xpose.msra.mxu0 0
        %2006 = vmatprep.subr.bf16.mxu0 0
        %2007 = vmatpush1.bf16.xpose.msra.mxu0 0
        %2008 = vmatprep.subr.bf16.mxu0 0
        %2009 = vmatpush1.bf16.xpose.msra.mxu0 0
        %2010 = vmatprep.mubr.bf16.mxu0 0
        %2011 = vmatmul.mubr.bf16.gmra.mrb[0].mxu0 %v1973
        %v2012 = vpop.f32.mrb[0].mxu0
        %v2013 = vadd.f32 0.0, %v2012
        %v2014 = vpop.f32.mrb[0].mxu0
        %v2015 = vpop.f32.mrb[0].mxu0
        %v2016 = vadd.f32 0.0, %v2015
        %v2017 = vpop.f32.mrb[0].mxu0
        %2018 = vdwg.mxu0
        %v2019 = vmul.f32 %v2013, 0.17677669
        %v2020 = vmul.f32 %v2016, 0.17677669
        %v2021 = vsel %vm1163, %v2019, -inf
        %2022 = vmax.xlane.f32.xlu0 %v2021
        %v2023 = vpop.xlane.xlu0 %2022
        %v2024 = vsel %vm1163, %v2020, -inf
        %2025 = vmax.xlane.f32.xlu0 %v2024
        %v2026 = vpop.xlane.xlu0 %2025
        %v2027 = vsub.f32 %v2019, %v2023
        %v2028 = vsub.f32 %v2020, %v2026
        %v2029 = vmul.f32 %v2027, 1.442695
        %v2030 = vpow.pop %v2029
        %v2031 = vmul.f32 %v2028, 1.442695
        %v2032 = vpow.pop %v2031
        %v2033 = vsel %vm1163, %v2030, 0.0
        %2034 = vadd.xlane.f32.xlu0 %v2033
        %v2035 = vpop.xlane.xlu0 %2034
        %v2036 = vsel %vm1163, %v2032, 0.0
        %2037 = vadd.xlane.f32.xlu0 %v2036
        %v2038 = vpop.xlane.xlu0 %2037
        %v2039 = vrcp.pop %v2035
        %v2040 = vmul.f32 %v2030, %v2039
        %v2041 = vrcp.pop %v2038
        %v2042 = vmul.f32 %v2032, %v2041
        %v2043 = vpack.c.bf16 %v2042, %v2040
        %2044 = vrot.lane.b32.xlu0 %v1112, 32
        %v2045 = vpop.permute.xlu0 %2044
        %v2048 = vsel %vm1163, %v2043, 0
        %2050 = vmatprep.subr.bf16.mxu0 0
        %2051 = vmatpush1.bf16.msra.mxu0 %v2045
        %2052 = vmatprep.subr.bf16.mxu0 0
        %2053 = vmatpush1.bf16.msra.mxu0 0
        %2054 = vmatprep.subr.bf16.mxu0 0
        %2055 = vmatpush1.bf16.msra.mxu0 0
        %2056 = vmatprep.subr.bf16.mxu0 0
        %2057 = vmatpush1.bf16.msra.mxu0 0
        %2058 = vmatprep.subr.bf16.mxu0 0
        %2059 = vmatpush1.bf16.msra.mxu0 0
        %2060 = vmatprep.subr.bf16.mxu0 0
        %2061 = vmatpush1.bf16.msra.mxu0 0
        %2062 = vmatprep.subr.bf16.mxu0 0
        %2063 = vmatpush1.bf16.msra.mxu0 0
        %2064 = vmatprep.subr.bf16.mxu0 0
        %2065 = vmatpush1.bf16.msra.mxu0 0
        %2066 = vmatprep.subr.bf16.mxu0 0
        %2067 = vmatpush1.bf16.msra.mxu0 0
        %2068 = vmatprep.subr.bf16.mxu0 0
        %2069 = vmatpush1.bf16.msra.mxu0 0
        %2070 = vmatprep.subr.bf16.mxu0 0
        %2071 = vmatpush1.bf16.msra.mxu0 0
        %2072 = vmatprep.subr.bf16.mxu0 0
        %2073 = vmatpush1.bf16.msra.mxu0 0
        %2074 = vmatprep.subr.bf16.mxu0 0
        %2075 = vmatpush1.bf16.msra.mxu0 0
        %2076 = vmatprep.subr.bf16.mxu0 0
        %2077 = vmatpush1.bf16.msra.mxu0 0
        %2078 = vmatprep.subr.bf16.mxu0 0
        %2079 = vmatpush1.bf16.msra.mxu0 0
        %2080 = vmatprep.subr.bf16.mxu0 0
        %2081 = vmatpush1.bf16.msra.mxu0 0
        %2082 = vmatprep.mubr.bf16.mxu0 0
        %2083 = vmatmul.mubr.bf16.gmra.mrb[0].mxu0 %v2048
        %v2084 = vpop.f32.mrb[0].mxu0
        %v2085 = vadd.f32 0.0, %v2084
        %v2086 = vpop.f32.mrb[0].mxu0
        %v2087 = vpop.f32.mrb[0].mxu0
        %v2088 = vadd.f32 0.0, %v2087
        %v2089 = vpop.f32.mrb[0].mxu0
        %2090 = vdwg.mxu0
        %2095 = vrot.lane.b32.xlu0 %v1467, 32
        %v2096 = vpop.permute.xlu0 %2095
        %2097 = vrot.lane.b32.xlu0 %v1470, 32
        %v2098 = vpop.permute.xlu0 %2097
        %2099 = vrot.lane.b32.xlu0 %v1593, 32
        %v2100 = vpop.permute.xlu0 %2099
        %2101 = vrot.lane.b32.xlu0 %v1596, 32
        %v2102 = vpop.permute.xlu0 %2101
        %2111 = vrot.lane.b32.xlu0 %v1716, 64
        %v2112 = vpop.permute.xlu0 %2111
        %2113 = vrot.lane.b32.xlu0 %v1719, 64
        %v2114 = vpop.permute.xlu0 %2113
        %2115 = vrot.lane.b32.xlu0 %v1839, 64
        %v2116 = vpop.permute.xlu0 %2115
        %2117 = vrot.lane.b32.xlu0 %v1842, 64
        %v2118 = vpop.permute.xlu0 %2117
        %2127 = vrot.lane.b32.xlu0 %v1962, 96
        %v2128 = vpop.permute.xlu0 %2127
        %2129 = vrot.lane.b32.xlu0 %v1965, 96
        %v2130 = vpop.permute.xlu0 %2129
        %2131 = vrot.lane.b32.xlu0 %v2085, 96
        %v2132 = vpop.permute.xlu0 %2131
        %2133 = vrot.lane.b32.xlu0 %v2088, 96
        %v2134 = vpop.permute.xlu0 %2133
        %v2139 = vsel %vm1113, %v1225, %v2096
        %v2140 = vsel %vm1113, %v1228, %v2098
        %v2141 = vsel %vm1113, %v1341, %v2100
        %v2142 = vsel %vm1113, %v1344, %v2102
        %vm2143 = vcmask 523264
        %v2144 = vsel %vm2143, %v2139, %v2112
        %v2145 = vsel %vm2143, %v2140, %v2114
        %v2146 = vsel %vm2143, %v2141, %v2116
        %v2147 = vsel %vm2143, %v2142, %v2118
        %vm2148 = vcmask 785408
        %v2149 = vsel %vm2148, %v2144, %v2128
        %v2150 = vsel %vm2148, %v2145, %v2130
        %v2151 = vsel %vm2148, %v2146, %v2132
        %v2152 = vsel %vm2148, %v2147, %v2134
        %v2153 = vpack.c.bf16 %v2150, %v2149
        %v2154 = vpack.c.bf16 %v2152, %v2151
        %v2155 = vld [vmem:[%s7] sm:$0xf]
        %v2156 = vld [vmem:[%s7 + $0x4] sm:$0xf]
        %v2157 = vld [vmem:[%s7 + $0x8] sm:$0xf]
        %v2158 = vld [vmem:[%s7 + $0xc] sm:$0xf]
        %v2159 = vld [vmem:[%s7 + $0x10] sm:$0xf]
        %v2160 = vld [vmem:[%s7 + $0x14] sm:$0xf]
        %v2161 = vld [vmem:[%s7 + $0x18] sm:$0xf]
        %v2162 = vld [vmem:[%s7 + $0x1c] sm:$0xf]
        %v2163 = vld [vmem:[%s7 + $0x20] sm:$0xf]
        %v2164 = vld [vmem:[%s7 + $0x24] sm:$0xf]
        %v2165 = vld [vmem:[%s7 + $0x28] sm:$0xf]
        %v2166 = vld [vmem:[%s7 + $0x2c] sm:$0xf]
        %v2167 = vld [vmem:[%s7 + $0x30] sm:$0xf]
        %v2168 = vld [vmem:[%s7 + $0x34] sm:$0xf]
        %v2169 = vld [vmem:[%s7 + $0x38] sm:$0xf]
        %v2170 = vld [vmem:[%s7 + $0x3c] sm:$0xf]
        %v2171 = vld [vmem:[%s8] sm:$0x1]
        %v2173 = vlaneseq
        %v2174 = vshrl.u32 %v2173, 7
        %v2175 = vsub.s32 0, %v2174
        %v2176 = vrot.slane %v2171, %v2175
        %v2194 = vunpack.c.l.b16 %v2155
        %v2195 = vunpack.c.l.b16 %v2156
        %v2196 = vunpack.c.l.b16 %v2157
        %v2197 = vunpack.c.l.b16 %v2158
        %v2198 = vunpack.c.l.b16 %v2159
        %v2199 = vunpack.c.l.b16 %v2160
        %v2200 = vunpack.c.l.b16 %v2161
        %v2201 = vunpack.c.l.b16 %v2162
        %v2202 = vunpack.c.l.b16 %v2163
        %v2203 = vunpack.c.l.b16 %v2164
        %v2204 = vunpack.c.l.b16 %v2165
        %v2205 = vunpack.c.l.b16 %v2166
        %v2206 = vunpack.c.l.b16 %v2167
        %v2207 = vunpack.c.l.b16 %v2168
        %v2208 = vunpack.c.l.b16 %v2169
        %v2209 = vunpack.c.l.b16 %v2170
        %v2210 = vpack.c.b16 %v2195, %v2194
        %v2211 = vpack.c.b16 %v2197, %v2196
        %v2212 = vpack.c.b16 %v2199, %v2198
        %v2213 = vpack.c.b16 %v2201, %v2200
        %v2214 = vpack.c.b16 %v2203, %v2202
        %v2215 = vpack.c.b16 %v2205, %v2204
        %v2216 = vpack.c.b16 %v2207, %v2206
        %v2217 = vpack.c.b16 %v2209, %v2208
        %2226 = vmatprep.subr.bf16.mxu0 0
        %2227 = vmatpush1.bf16.msra.mxu0 %v2210
        %2228 = vmatprep.subr.bf16.mxu0 0
        %2229 = vmatpush1.bf16.msra.mxu0 %v2211
        %2230 = vmatprep.subr.bf16.mxu0 0
        %2231 = vmatpush1.bf16.msra.mxu0 %v2212
        %2232 = vmatprep.subr.bf16.mxu0 0
        %2233 = vmatpush1.bf16.msra.mxu0 %v2213
        %2234 = vmatprep.subr.bf16.mxu0 0
        %2235 = vmatpush1.bf16.msra.mxu0 %v2214
        %2236 = vmatprep.subr.bf16.mxu0 0
        %2237 = vmatpush1.bf16.msra.mxu0 %v2215
        %2238 = vmatprep.subr.bf16.mxu0 0
        %2239 = vmatpush1.bf16.msra.mxu0 %v2216
        %2240 = vmatprep.subr.bf16.mxu0 0
        %2241 = vmatpush1.bf16.msra.mxu0 %v2217
        %2242 = vmatprep.subr.bf16.mxu0 0
        %2243 = vmatpush1.bf16.msra.mxu0 0
        %2244 = vmatprep.subr.bf16.mxu0 0
        %2245 = vmatpush1.bf16.msra.mxu0 0
        %2246 = vmatprep.subr.bf16.mxu0 0
        %2247 = vmatpush1.bf16.msra.mxu0 0
        %2248 = vmatprep.subr.bf16.mxu0 0
        %2249 = vmatpush1.bf16.msra.mxu0 0
        %2250 = vmatprep.subr.bf16.mxu0 0
        %2251 = vmatpush1.bf16.msra.mxu0 0
        %2252 = vmatprep.subr.bf16.mxu0 0
        %2253 = vmatpush1.bf16.msra.mxu0 0
        %2254 = vmatprep.subr.bf16.mxu0 0
        %2255 = vmatpush1.bf16.msra.mxu0 0
        %2256 = vmatprep.subr.bf16.mxu0 0
        %2257 = vmatpush1.bf16.msra.mxu0 0
        %2258 = vmatprep.mubr.bf16.mxu0 0
        %2259 = vmatmul.mubr.bf16.gmra.mrb[0].mxu0 %v2153
        %v2260 = vpop.f32.mrb[0].mxu0
        %v2261 = vadd.f32 %v2176, %v2260
        %v2262 = vpop.f32.mrb[0].mxu0
        %v2263 = vpop.f32.mrb[0].mxu0
        %v2264 = vadd.f32 %v2176, %v2263
        %v2265 = vpop.f32.mrb[0].mxu0
        %2266 = vmatprep.mubr.bf16.mxu0 0
        %2267 = vmatmul.mubr.bf16.gmra.mrb[0].mxu0 %v2154
        %v2268 = vpop.f32.mrb[0].mxu0
        %v2269 = vadd.f32 %v2176, %v2268
        %v2270 = vpop.f32.mrb[0].mxu0
        %v2271 = vpop.f32.mrb[0].mxu0
        %v2272 = vadd.f32 %v2176, %v2271
        %v2273 = vpop.f32.mrb[0].mxu0
        %2274 = vdwg.mxu0
        %v2275 = vadd.f32 %v745, %v2261
        %v2276 = vadd.f32 %v748, %v2264
        %v2277 = vadd.f32 %v753, %v2269
        %v2278 = vadd.f32 %v756, %v2272
        %v2279 = vld [vmem:[%s9] sm:$0x1]
        %v2280 = vld [vmem:[%s10] sm:$0x1]
        %2281 = vadd.xlane.f32.xlu0 %v2275
        %v2282 = vpop.xlane.xlu0 %2281
        %2283 = vadd.xlane.f32.xlu0 %v2276
        %v2284 = vpop.xlane.xlu0 %2283
        %2285 = vadd.xlane.f32.xlu0 %v2277
        %v2286 = vpop.xlane.xlu0 %2285
        %2287 = vadd.xlane.f32.xlu0 %v2278
        %v2288 = vpop.xlane.xlu0 %2287
        %v2289 = vmul.f32 %v2282, %v769
        %v2290 = vmul.f32 %v2284, %v769
        %v2291 = vmul.f32 %v2286, %v769
        %v2292 = vmul.f32 %v2288, %v769
        %v2293 = vsub.f32 %v2275, %v2289
        %v2294 = vsub.f32 %v2276, %v2290
        %v2295 = vsub.f32 %v2277, %v2291
        %v2296 = vsub.f32 %v2278, %v2292
        %v2297 = vmul.f32 %v2293, %v2293
        %v2298 = vmul.f32 %v2294, %v2294
        %v2299 = vmul.f32 %v2295, %v2295
        %v2300 = vmul.f32 %v2296, %v2296
        %2301 = vadd.xlane.f32.xlu0 %v2297
        %v2302 = vpop.xlane.xlu0 %2301
        %2303 = vadd.xlane.f32.xlu0 %v2298
        %v2304 = vpop.xlane.xlu0 %2303
        %2305 = vadd.xlane.f32.xlu0 %v2299
        %v2306 = vpop.xlane.xlu0 %2305
        %2307 = vadd.xlane.f32.xlu0 %v2300
        %v2308 = vpop.xlane.xlu0 %2307
        %v2309 = vmul.f32 %v2302, %v769
        %v2310 = vmul.f32 %v2304, %v769
        %v2311 = vmul.f32 %v2306, %v769
        %v2312 = vmul.f32 %v2308, %v769
        %v2313 = vadd.f32 %v2309, 1e-06
        %v2314 = vadd.f32 %v2310, 1e-06
        %v2315 = vadd.f32 %v2311, 1e-06
        %v2316 = vadd.f32 %v2312, 1e-06
        %v2317 = vrsqrt.pop %v2313
        %v2318 = vrsqrt.pop %v2314
        %v2319 = vrsqrt.pop %v2315
        %v2320 = vrsqrt.pop %v2316
        %v2321 = vmul.f32 %v2293, %v2317
        %v2322 = vmul.f32 %v2294, %v2318
        %v2323 = vmul.f32 %v2295, %v2319
        %v2324 = vmul.f32 %v2296, %v2320
        %v2326 = vlaneseq
        %v2327 = vshrl.u32 %v2326, 7
        %v2328 = vsub.s32 0, %v2327
        %v2329 = vrot.slane %v2279, %v2328
        %v2331 = vmul.f32 %v2321, %v2329
        %v2332 = vmul.f32 %v2322, %v2329
        %v2333 = vmul.f32 %v2323, %v2329
        %v2334 = vmul.f32 %v2324, %v2329
        %v2336 = vlaneseq
        %v2337 = vshrl.u32 %v2336, 7
        %v2338 = vsub.s32 0, %v2337
        %v2339 = vrot.slane %v2280, %v2338
        %v2341 = vadd.f32 %v2331, %v2339
        %v2342 = vadd.f32 %v2332, %v2339
        %v2343 = vadd.f32 %v2333, %v2339
        %v2344 = vadd.f32 %v2334, %v2339
        %v2345 = vpack.c.bf16 %v2342, %v2341
        %v2346 = vpack.c.bf16 %v2344, %v2343
        %v2347 = vld [vmem:[%s11] sm:$0xff]
        %v2348 = vld [vmem:[%s11 + $0x8] sm:$0xff]
        %v2349 = vld [vmem:[%s11 + $0x10] sm:$0xff]
        %v2350 = vld [vmem:[%s11 + $0x18] sm:$0xff]
        %v2351 = vld [vmem:[%s11 + $0x20] sm:$0xff]
        %v2352 = vld [vmem:[%s11 + $0x28] sm:$0xff]
        %v2353 = vld [vmem:[%s11 + $0x30] sm:$0xff]
        %v2354 = vld [vmem:[%s11 + $0x38] sm:$0xff]
        %v2355 = vld [vmem:[%s11 + $0x40] sm:$0xff]
        %v2356 = vld [vmem:[%s11 + $0x48] sm:$0xff]
        %v2357 = vld [vmem:[%s11 + $0x50] sm:$0xff]
        %v2358 = vld [vmem:[%s11 + $0x58] sm:$0xff]
        %v2359 = vld [vmem:[%s11 + $0x60] sm:$0xff]
        %v2360 = vld [vmem:[%s11 + $0x68] sm:$0xff]
        %v2361 = vld [vmem:[%s11 + $0x70] sm:$0xff]
        %v2362 = vld [vmem:[%s11 + $0x78] sm:$0xff]
        %v2363 = vld [vmem:[%s12] sm:$0x3]
        %v2365 = vlaneseq
        %v2366 = vshrl.u32 %v2365, 7
        %v2367 = vsub.s32 0, %v2366
        %v2368 = vrot.slane %v2363, %v2367
        %v2369 = vlaneseq
        %v2370 = vshrl.u32 %v2369, 7
        %v2371 = vsub.s32 1, %v2370
        %v2372 = vrot.slane %v2363, %v2371
        %v2391 = vunpack.c.l.b16 %v2347
        %v2392 = vunpack.c.h.b16 %v2347
        %v2393 = vunpack.c.l.b16 %v2348
        %v2394 = vunpack.c.h.b16 %v2348
        %v2395 = vunpack.c.l.b16 %v2349
        %v2396 = vunpack.c.h.b16 %v2349
        %v2397 = vunpack.c.l.b16 %v2350
        %v2398 = vunpack.c.h.b16 %v2350
        %v2399 = vunpack.c.l.b16 %v2351
        %v2400 = vunpack.c.h.b16 %v2351
        %v2401 = vunpack.c.l.b16 %v2352
        %v2402 = vunpack.c.h.b16 %v2352
        %v2403 = vunpack.c.l.b16 %v2353
        %v2404 = vunpack.c.h.b16 %v2353
        %v2405 = vunpack.c.l.b16 %v2354
        %v2406 = vunpack.c.h.b16 %v2354
        %v2407 = vunpack.c.l.b16 %v2355
        %v2408 = vunpack.c.h.b16 %v2355
        %v2409 = vunpack.c.l.b16 %v2356
        %v2410 = vunpack.c.h.b16 %v2356
        %v2411 = vunpack.c.l.b16 %v2357
        %v2412 = vunpack.c.h.b16 %v2357
        %v2413 = vunpack.c.l.b16 %v2358
        %v2414 = vunpack.c.h.b16 %v2358
        %v2415 = vunpack.c.l.b16 %v2359
        %v2416 = vunpack.c.h.b16 %v2359
        %v2417 = vunpack.c.l.b16 %v2360
        %v2418 = vunpack.c.h.b16 %v2360
        %v2419 = vunpack.c.l.b16 %v2361
        %v2420 = vunpack.c.h.b16 %v2361
        %v2421 = vunpack.c.l.b16 %v2362
        %v2422 = vunpack.c.h.b16 %v2362
        %v2423 = vpack.c.b16 %v2393, %v2391
        %v2424 = vpack.c.b16 %v2394, %v2392
        %v2425 = vpack.c.b16 %v2397, %v2395
        %v2426 = vpack.c.b16 %v2398, %v2396
        %v2427 = vpack.c.b16 %v2401, %v2399
        %v2428 = vpack.c.b16 %v2402, %v2400
        %v2429 = vpack.c.b16 %v2405, %v2403
        %v2430 = vpack.c.b16 %v2406, %v2404
        %v2431 = vpack.c.b16 %v2409, %v2407
        %v2432 = vpack.c.b16 %v2410, %v2408
        %v2433 = vpack.c.b16 %v2413, %v2411
        %v2434 = vpack.c.b16 %v2414, %v2412
        %v2435 = vpack.c.b16 %v2417, %v2415
        %v2436 = vpack.c.b16 %v2418, %v2416
        %v2437 = vpack.c.b16 %v2421, %v2419
        %v2438 = vpack.c.b16 %v2422, %v2420
        %2455 = vmatprep.subr.bf16.mxu0 %v2424
        %2456 = vmatpush1.bf16.msra.mxu0 %v2423
        %2457 = vmatprep.subr.bf16.mxu0 %v2426
        %2458 = vmatpush1.bf16.msra.mxu0 %v2425
        %2459 = vmatprep.subr.bf16.mxu0 %v2428
        %2460 = vmatpush1.bf16.msra.mxu0 %v2427
        %2461 = vmatprep.subr.bf16.mxu0 %v2430
        %2462 = vmatpush1.bf16.msra.mxu0 %v2429
        %2463 = vmatprep.subr.bf16.mxu0 %v2432
        %2464 = vmatpush1.bf16.msra.mxu0 %v2431
        %2465 = vmatprep.subr.bf16.mxu0 %v2434
        %2466 = vmatpush1.bf16.msra.mxu0 %v2433
        %2467 = vmatprep.subr.bf16.mxu0 %v2436
        %2468 = vmatpush1.bf16.msra.mxu0 %v2435
        %2469 = vmatprep.subr.bf16.mxu0 %v2438
        %2470 = vmatpush1.bf16.msra.mxu0 %v2437
        %2471 = vmatprep.subr.bf16.mxu0 0
        %2472 = vmatpush1.bf16.msra.mxu0 0
        %2473 = vmatprep.subr.bf16.mxu0 0
        %2474 = vmatpush1.bf16.msra.mxu0 0
        %2475 = vmatprep.subr.bf16.mxu0 0
        %2476 = vmatpush1.bf16.msra.mxu0 0
        %2477 = vmatprep.subr.bf16.mxu0 0
        %2478 = vmatpush1.bf16.msra.mxu0 0
        %2479 = vmatprep.subr.bf16.mxu0 0
        %2480 = vmatpush1.bf16.msra.mxu0 0
        %2481 = vmatprep.subr.bf16.mxu0 0
        %2482 = vmatpush1.bf16.msra.mxu0 0
        %2483 = vmatprep.subr.bf16.mxu0 0
        %2484 = vmatpush1.bf16.msra.mxu0 0
        %2485 = vmatprep.subr.bf16.mxu0 0
        %2486 = vmatpush1.bf16.msra.mxu0 0
        %2487 = vmatprep.mubr.bf16.mxu0 0
        %2488 = vmatmul.mubr.bf16.gmra.mrb[0].mxu0 %v2345
        %v2489 = vpop.f32.mrb[0].mxu0
        %v2490 = vadd.f32 %v2368, %v2489
        %v2491 = vpop.f32.mrb[0].mxu0
        %v2492 = vadd.f32 %v2372, %v2491
        %v2493 = vpop.f32.mrb[0].mxu0
        %v2494 = vadd.f32 %v2368, %v2493
        %v2495 = vpop.f32.mrb[0].mxu0
        %v2496 = vadd.f32 %v2372, %v2495
        %2497 = vmatprep.mubr.bf16.mxu0 0
        %2498 = vmatmul.mubr.bf16.gmra.mrb[0].mxu0 %v2346
        %v2499 = vpop.f32.mrb[0].mxu0
        %v2500 = vadd.f32 %v2368, %v2499
        %v2501 = vpop.f32.mrb[0].mxu0
        %v2502 = vadd.f32 %v2372, %v2501
        %v2503 = vpop.f32.mrb[0].mxu0
        %v2504 = vadd.f32 %v2368, %v2503
        %v2505 = vpop.f32.mrb[0].mxu0
        %v2506 = vadd.f32 %v2372, %v2505
        %2507 = vdwg.mxu0
        %v2508 = vmul.f32 %v2490, 0.5
        %v2509 = vmul.f32 %v2492, 0.5
        %v2510 = vmul.f32 %v2494, 0.5
        %v2511 = vmul.f32 %v2496, 0.5
        %v2512 = vmul.f32 %v2500, 0.5
        %v2513 = vmul.f32 %v2502, 0.5
        %v2514 = vmul.f32 %v2504, 0.5
        %v2515 = vmul.f32 %v2506, 0.5
        %v2516 = vmul.f32 %v2490, 0.044715
        %v2517 = vmul.f32 %v2492, 0.044715
        %v2518 = vmul.f32 %v2494, 0.044715
        %v2519 = vmul.f32 %v2496, 0.044715
        %v2520 = vmul.f32 %v2500, 0.044715
        %v2521 = vmul.f32 %v2502, 0.044715
        %v2522 = vmul.f32 %v2504, 0.044715
        %v2523 = vmul.f32 %v2506, 0.044715
        %v2524 = vmul.f32 %v2516, %v2490
        %v2525 = vmul.f32 %v2517, %v2492
        %v2526 = vmul.f32 %v2518, %v2494
        %v2527 = vmul.f32 %v2519, %v2496
        %v2528 = vmul.f32 %v2520, %v2500
        %v2529 = vmul.f32 %v2521, %v2502
        %v2530 = vmul.f32 %v2522, %v2504
        %v2531 = vmul.f32 %v2523, %v2506
        %v2532 = vmul.f32 %v2524, %v2490
        %v2533 = vmul.f32 %v2525, %v2492
        %v2534 = vmul.f32 %v2526, %v2494
        %v2535 = vmul.f32 %v2527, %v2496
        %v2536 = vmul.f32 %v2528, %v2500
        %v2537 = vmul.f32 %v2529, %v2502
        %v2538 = vmul.f32 %v2530, %v2504
        %v2539 = vmul.f32 %v2531, %v2506
        %v2540 = vadd.f32 %v2490, %v2532
        %v2541 = vadd.f32 %v2492, %v2533
        %v2542 = vadd.f32 %v2494, %v2534
        %v2543 = vadd.f32 %v2496, %v2535
        %v2544 = vadd.f32 %v2500, %v2536
        %v2545 = vadd.f32 %v2502, %v2537
        %v2546 = vadd.f32 %v2504, %v2538
        %v2547 = vadd.f32 %v2506, %v2539
        %v2548 = vmul.f32 %v2540, 0.7978846
        %v2549 = vmul.f32 %v2541, 0.7978846
        %v2550 = vmul.f32 %v2542, 0.7978846
        %v2551 = vmul.f32 %v2543, 0.7978846
        %v2552 = vmul.f32 %v2544, 0.7978846
        %v2553 = vmul.f32 %v2545, 0.7978846
        %v2554 = vmul.f32 %v2546, 0.7978846
        %v2555 = vmul.f32 %v2547, 0.7978846
        %v2556 = vtanh.pop %v2548
        %v2557 = vtanh.pop %v2549
        %v2558 = vtanh.pop %v2550
        %v2559 = vtanh.pop %v2551
        %v2560 = vtanh.pop %v2552
        %v2561 = vtanh.pop %v2553
        %v2562 = vtanh.pop %v2554
        %v2563 = vtanh.pop %v2555
        %v2564 = vadd.f32 %v2556, 1.0
        %v2565 = vadd.f32 %v2557, 1.0
        %v2566 = vadd.f32 %v2558, 1.0
        %v2567 = vadd.f32 %v2559, 1.0
        %v2568 = vadd.f32 %v2560, 1.0
        %v2569 = vadd.f32 %v2561, 1.0
        %v2570 = vadd.f32 %v2562, 1.0
        %v2571 = vadd.f32 %v2563, 1.0
        %v2572 = vmul.f32 %v2508, %v2564
        %v2573 = vmul.f32 %v2509, %v2565
        %v2574 = vmul.f32 %v2510, %v2566
        %v2575 = vmul.f32 %v2511, %v2567
        %v2576 = vmul.f32 %v2512, %v2568
        %v2577 = vmul.f32 %v2513, %v2569
        %v2578 = vmul.f32 %v2514, %v2570
        %v2579 = vmul.f32 %v2515, %v2571
        %v2580 = vpack.c.bf16 %v2574, %v2572
        %v2581 = vpack.c.bf16 %v2575, %v2573
        %v2582 = vpack.c.bf16 %v2578, %v2576
        %v2583 = vpack.c.bf16 %v2579, %v2577
        %v2584 = vld [vmem:[%s13] sm:$0xf]
        %v2585 = vld [vmem:[%s13 + $0x4] sm:$0xf]
        %v2586 = vld [vmem:[%s13 + $0x8] sm:$0xf]
        %v2587 = vld [vmem:[%s13 + $0xc] sm:$0xf]
        %v2588 = vld [vmem:[%s13 + $0x10] sm:$0xf]
        %v2589 = vld [vmem:[%s13 + $0x14] sm:$0xf]
        %v2590 = vld [vmem:[%s13 + $0x18] sm:$0xf]
        %v2591 = vld [vmem:[%s13 + $0x1c] sm:$0xf]
        %v2592 = vld [vmem:[%s13 + $0x20] sm:$0xf]
        %v2593 = vld [vmem:[%s13 + $0x24] sm:$0xf]
        %v2594 = vld [vmem:[%s13 + $0x28] sm:$0xf]
        %v2595 = vld [vmem:[%s13 + $0x2c] sm:$0xf]
        %v2596 = vld [vmem:[%s13 + $0x30] sm:$0xf]
        %v2597 = vld [vmem:[%s13 + $0x34] sm:$0xf]
        %v2598 = vld [vmem:[%s13 + $0x38] sm:$0xf]
        %v2599 = vld [vmem:[%s13 + $0x3c] sm:$0xf]
        %v2600 = vld [vmem:[%s13 + $0x40] sm:$0xf]
        %v2601 = vld [vmem:[%s13 + $0x44] sm:$0xf]
        %v2602 = vld [vmem:[%s13 + $0x48] sm:$0xf]
        %v2603 = vld [vmem:[%s13 + $0x4c] sm:$0xf]
        %v2604 = vld [vmem:[%s13 + $0x50] sm:$0xf]
        %v2605 = vld [vmem:[%s13 + $0x54] sm:$0xf]
        %v2606 = vld [vmem:[%s13 + $0x58] sm:$0xf]
        %v2607 = vld [vmem:[%s13 + $0x5c] sm:$0xf]
        %v2608 = vld [vmem:[%s13 + $0x60] sm:$0xf]
        %v2609 = vld [vmem:[%s13 + $0x64] sm:$0xf]
        %v2610 = vld [vmem:[%s13 + $0x68] sm:$0xf]
        %v2611 = vld [vmem:[%s13 + $0x6c] sm:$0xf]
        %v2612 = vld [vmem:[%s13 + $0x70] sm:$0xf]
        %v2613 = vld [vmem:[%s13 + $0x74] sm:$0xf]
        %v2614 = vld [vmem:[%s13 + $0x78] sm:$0xf]
        %v2615 = vld [vmem:[%s13 + $0x7c] sm:$0xf]
        %v2616 = vld [vmem:[%s14] sm:$0x1]
        %v2618 = vlaneseq
        %v2619 = vshrl.u32 %v2618, 7
        %v2620 = vsub.s32 0, %v2619
        %v2621 = vrot.slane %v2616, %v2620
        %v2655 = vunpack.c.l.b16 %v2584
        %v2656 = vunpack.c.l.b16 %v2585
        %v2657 = vunpack.c.l.b16 %v2586
        %v2658 = vunpack.c.l.b16 %v2587
        %v2659 = vunpack.c.l.b16 %v2588
        %v2660 = vunpack.c.l.b16 %v2589
        %v2661 = vunpack.c.l.b16 %v2590
        %v2662 = vunpack.c.l.b16 %v2591
        %v2663 = vunpack.c.l.b16 %v2592
        %v2664 = vunpack.c.l.b16 %v2593
        %v2665 = vunpack.c.l.b16 %v2594
        %v2666 = vunpack.c.l.b16 %v2595
        %v2667 = vunpack.c.l.b16 %v2596
        %v2668 = vunpack.c.l.b16 %v2597
        %v2669 = vunpack.c.l.b16 %v2598
        %v2670 = vunpack.c.l.b16 %v2599
        %v2671 = vunpack.c.l.b16 %v2600
        %v2672 = vunpack.c.l.b16 %v2601
        %v2673 = vunpack.c.l.b16 %v2602
        %v2674 = vunpack.c.l.b16 %v2603
        %v2675 = vunpack.c.l.b16 %v2604
        %v2676 = vunpack.c.l.b16 %v2605
        %v2677 = vunpack.c.l.b16 %v2606
        %v2678 = vunpack.c.l.b16 %v2607
        %v2679 = vunpack.c.l.b16 %v2608
        %v2680 = vunpack.c.l.b16 %v2609
        %v2681 = vunpack.c.l.b16 %v2610
        %v2682 = vunpack.c.l.b16 %v2611
        %v2683 = vunpack.c.l.b16 %v2612
        %v2684 = vunpack.c.l.b16 %v2613
        %v2685 = vunpack.c.l.b16 %v2614
        %v2686 = vunpack.c.l.b16 %v2615
        %v2687 = vpack.c.b16 %v2656, %v2655
        %v2688 = vpack.c.b16 %v2658, %v2657
        %v2689 = vpack.c.b16 %v2660, %v2659
        %v2690 = vpack.c.b16 %v2662, %v2661
        %v2691 = vpack.c.b16 %v2664, %v2663
        %v2692 = vpack.c.b16 %v2666, %v2665
        %v2693 = vpack.c.b16 %v2668, %v2667
        %v2694 = vpack.c.b16 %v2670, %v2669
        %v2695 = vpack.c.b16 %v2672, %v2671
        %v2696 = vpack.c.b16 %v2674, %v2673
        %v2697 = vpack.c.b16 %v2676, %v2675
        %v2698 = vpack.c.b16 %v2678, %v2677
        %v2699 = vpack.c.b16 %v2680, %v2679
        %v2700 = vpack.c.b16 %v2682, %v2681
        %v2701 = vpack.c.b16 %v2684, %v2683
        %v2702 = vpack.c.b16 %v2686, %v2685
        %2719 = vmatprep.subr.bf16.mxu0 0
        %2720 = vmatpush1.bf16.msra.mxu0 %v2687
        %2721 = vmatprep.subr.bf16.mxu0 0
        %2722 = vmatpush1.bf16.msra.mxu0 %v2688
        %2723 = vmatprep.subr.bf16.mxu0 0
        %2724 = vmatpush1.bf16.msra.mxu0 %v2689
        %2725 = vmatprep.subr.bf16.mxu0 0
        %2726 = vmatpush1.bf16.msra.mxu0 %v2690
        %2727 = vmatprep.subr.bf16.mxu0 0
        %2728 = vmatpush1.bf16.msra.mxu0 %v2691
        %2729 = vmatprep.subr.bf16.mxu0 0
        %2730 = vmatpush1.bf16.msra.mxu0 %v2692
        %2731 = vmatprep.subr.bf16.mxu0 0
        %2732 = vmatpush1.bf16.msra.mxu0 %v2693
        %2733 = vmatprep.subr.bf16.mxu0 0
        %2734 = vmatpush1.bf16.msra.mxu0 %v2694
        %2735 = vmatprep.subr.bf16.mxu0 0
        %2736 = vmatpush1.bf16.msra.mxu0 %v2695
        %2737 = vmatprep.subr.bf16.mxu0 0
        %2738 = vmatpush1.bf16.msra.mxu0 %v2696
        %2739 = vmatprep.subr.bf16.mxu0 0
        %2740 = vmatpush1.bf16.msra.mxu0 %v2697
        %2741 = vmatprep.subr.bf16.mxu0 0
        %2742 = vmatpush1.bf16.msra.mxu0 %v2698
        %2743 = vmatprep.subr.bf16.mxu0 0
        %2744 = vmatpush1.bf16.msra.mxu0 %v2699
        %2745 = vmatprep.subr.bf16.mxu0 0
        %2746 = vmatpush1.bf16.msra.mxu0 %v2700
        %2747 = vmatprep.subr.bf16.mxu0 0
        %2748 = vmatpush1.bf16.msra.mxu0 %v2701
        %2749 = vmatprep.subr.bf16.mxu0 0
        %2750 = vmatpush1.bf16.msra.mxu0 %v2702
        %2751 = vmatprep.mubr.bf16.mxu0 %v2581
        %2752 = vmatmul.mubr.bf16.gmra.mrb[0].mxu0 %v2580
        %v2753 = vpop.f32.mrb[0].mxu0
        %v2754 = vadd.f32 %v2621, %v2753
        %v2755 = vpop.f32.mrb[0].mxu0
        %v2756 = vpop.f32.mrb[0].mxu0
        %v2757 = vadd.f32 %v2621, %v2756
        %v2758 = vpop.f32.mrb[0].mxu0
        %2759 = vmatprep.mubr.bf16.mxu0 %v2583
        %2760 = vmatmul.mubr.bf16.gmra.mrb[0].mxu0 %v2582
        %v2761 = vpop.f32.mrb[0].mxu0
        %v2762 = vadd.f32 %v2621, %v2761
        %v2763 = vpop.f32.mrb[0].mxu0
        %v2764 = vpop.f32.mrb[0].mxu0
        %v2765 = vadd.f32 %v2621, %v2764
        %v2766 = vpop.f32.mrb[0].mxu0
        %2767 = vdwg.mxu0
        %v2768 = vadd.f32 %v2275, %v2754
        %v2769 = vadd.f32 %v2276, %v2757
        %v2770 = vadd.f32 %v2277, %v2762
        %v2771 = vadd.f32 %v2278, %v2765
        %s2772 = scalar_lea.vmem %s3, 1
        %v2773 = vld [vmem:[%s2772] sm:$0x1]
        %s2774 = scalar_lea.vmem %s4, 1
        %v2775 = vld [vmem:[%s2774] sm:$0x1]
        %2776 = vadd.xlane.f32.xlu0 %v2768
        %v2777 = vpop.xlane.xlu0 %2776
        %2778 = vadd.xlane.f32.xlu0 %v2769
        %v2779 = vpop.xlane.xlu0 %2778
        %2780 = vadd.xlane.f32.xlu0 %v2770
        %v2781 = vpop.xlane.xlu0 %2780
        %2782 = vadd.xlane.f32.xlu0 %v2771
        %v2783 = vpop.xlane.xlu0 %2782
        %v2784 = vmul.f32 %v2777, %v769
        %v2785 = vmul.f32 %v2779, %v769
        %v2786 = vmul.f32 %v2781, %v769
        %v2787 = vmul.f32 %v2783, %v769
        %v2788 = vsub.f32 %v2768, %v2784
        %v2789 = vsub.f32 %v2769, %v2785
        %v2790 = vsub.f32 %v2770, %v2786
        %v2791 = vsub.f32 %v2771, %v2787
        %v2792 = vmul.f32 %v2788, %v2788
        %v2793 = vmul.f32 %v2789, %v2789
        %v2794 = vmul.f32 %v2790, %v2790
        %v2795 = vmul.f32 %v2791, %v2791
        %2796 = vadd.xlane.f32.xlu0 %v2792
        %v2797 = vpop.xlane.xlu0 %2796
        %2798 = vadd.xlane.f32.xlu0 %v2793
        %v2799 = vpop.xlane.xlu0 %2798
        %2800 = vadd.xlane.f32.xlu0 %v2794
        %v2801 = vpop.xlane.xlu0 %2800
        %2802 = vadd.xlane.f32.xlu0 %v2795
        %v2803 = vpop.xlane.xlu0 %2802
        %v2804 = vmul.f32 %v2797, %v769
        %v2805 = vmul.f32 %v2799, %v769
        %v2806 = vmul.f32 %v2801, %v769
        %v2807 = vmul.f32 %v2803, %v769
        %v2808 = vadd.f32 %v2804, 1e-06
        %v2809 = vadd.f32 %v2805, 1e-06
        %v2810 = vadd.f32 %v2806, 1e-06
        %v2811 = vadd.f32 %v2807, 1e-06
        %v2812 = vrsqrt.pop %v2808
        %v2813 = vrsqrt.pop %v2809
        %v2814 = vrsqrt.pop %v2810
        %v2815 = vrsqrt.pop %v2811
        %v2816 = vmul.f32 %v2788, %v2812
        %v2817 = vmul.f32 %v2789, %v2813
        %v2818 = vmul.f32 %v2790, %v2814
        %v2819 = vmul.f32 %v2791, %v2815
        %v2821 = vlaneseq
        %v2822 = vshrl.u32 %v2821, 7
        %v2823 = vsub.s32 0, %v2822
        %v2824 = vrot.slane %v2773, %v2823
        %v2826 = vmul.f32 %v2816, %v2824
        %v2827 = vmul.f32 %v2817, %v2824
        %v2828 = vmul.f32 %v2818, %v2824
        %v2829 = vmul.f32 %v2819, %v2824
        %v2831 = vlaneseq
        %v2832 = vshrl.u32 %v2831, 7
        %v2833 = vsub.s32 0, %v2832
        %v2834 = vrot.slane %v2775, %v2833
        %v2836 = vadd.f32 %v2826, %v2834
        %v2837 = vadd.f32 %v2827, %v2834
        %v2838 = vadd.f32 %v2828, %v2834
        %v2839 = vadd.f32 %v2829, %v2834
        %v2840 = vpack.c.bf16 %v2837, %v2836
        %v2841 = vpack.c.bf16 %v2839, %v2838
        %s2842 = scalar_lea.vmem %s5, 192
        %v2843 = vld [vmem:[%s2842] sm:$0xff]
        %v2844 = vld [vmem:[%s2842 + $0x8] sm:$0xf]
        %v2845 = vld [vmem:[%s2842 + $0xc] sm:$0xff]
        %v2846 = vld [vmem:[%s2842 + $0x14] sm:$0xf]
        %v2847 = vld [vmem:[%s2842 + $0x18] sm:$0xff]
        %v2848 = vld [vmem:[%s2842 + $0x20] sm:$0xf]
        %v2849 = vld [vmem:[%s2842 + $0x24] sm:$0xff]
        %v2850 = vld [vmem:[%s2842 + $0x2c] sm:$0xf]
        %v2851 = vld [vmem:[%s2842 + $0x30] sm:$0xff]
        %v2852 = vld [vmem:[%s2842 + $0x38] sm:$0xf]
        %v2853 = vld [vmem:[%s2842 + $0x3c] sm:$0xff]
        %v2854 = vld [vmem:[%s2842 + $0x44] sm:$0xf]
        %v2855 = vld [vmem:[%s2842 + $0x48] sm:$0xff]
        %v2856 = vld [vmem:[%s2842 + $0x50] sm:$0xf]
        %v2857 = vld [vmem:[%s2842 + $0x54] sm:$0xff]
        %v2858 = vld [vmem:[%s2842 + $0x5c] sm:$0xf]
        %v2859 = vld [vmem:[%s2842 + $0x60] sm:$0xff]
        %v2860 = vld [vmem:[%s2842 + $0x68] sm:$0xf]
        %v2861 = vld [vmem:[%s2842 + $0x6c] sm:$0xff]
        %v2862 = vld [vmem:[%s2842 + $0x74] sm:$0xf]
        %v2863 = vld [vmem:[%s2842 + $0x78] sm:$0xff]
        %v2864 = vld [vmem:[%s2842 + $0x80] sm:$0xf]
        %v2865 = vld [vmem:[%s2842 + $0x84] sm:$0xff]
        %v2866 = vld [vmem:[%s2842 + $0x8c] sm:$0xf]
        %v2867 = vld [vmem:[%s2842 + $0x90] sm:$0xff]
        %v2868 = vld [vmem:[%s2842 + $0x98] sm:$0xf]
        %v2869 = vld [vmem:[%s2842 + $0x9c] sm:$0xff]
        %v2870 = vld [vmem:[%s2842 + $0xa4] sm:$0xf]
        %v2871 = vld [vmem:[%s2842 + $0xa8] sm:$0xff]
        %v2872 = vld [vmem:[%s2842 + $0xb0] sm:$0xf]
        %v2873 = vld [vmem:[%s2842 + $0xb4] sm:$0xff]
        %v2874 = vld [vmem:[%s2842 + $0xbc] sm:$0xf]
        %s2875 = scalar_lea.vmem %s6, 3
        %v2876 = vld [vmem:[%s2875] sm:$0x7]
        %v2878 = vlaneseq
        %v2879 = vshrl.u32 %v2878, 7
        %v2880 = vsub.s32 0, %v2879
        %v2881 = vrot.slane %v2876, %v2880
        %v2882 = vlaneseq
        %v2883 = vshrl.u32 %v2882, 7
        %v2884 = vsub.s32 1, %v2883
        %v2885 = vrot.slane %v2876, %v2884
        %v2886 = vlaneseq
        %v2887 = vshrl.u32 %v2886, 7
        %v2888 = vsub.s32 2, %v2887
        %v2889 = vrot.slane %v2876, %v2888
        %v2925 = vunpack.c.l.b16 %v2843
        %v2926 = vunpack.c.h.b16 %v2843
        %v2927 = vunpack.c.l.b16 %v2844
        %v2928 = vunpack.c.l.b16 %v2845
        %v2929 = vunpack.c.h.b16 %v2845
        %v2930 = vunpack.c.l.b16 %v2846
        %v2931 = vunpack.c.l.b16 %v2847
        %v2932 = vunpack.c.h.b16 %v2847
        %v2933 = vunpack.c.l.b16 %v2848
        %v2934 = vunpack.c.l.b16 %v2849
        %v2935 = vunpack.c.h.b16 %v2849
        %v2936 = vunpack.c.l.b16 %v2850
        %v2937 = vunpack.c.l.b16 %v2851
        %v2938 = vunpack.c.h.b16 %v2851
        %v2939 = vunpack.c.l.b16 %v2852
        %v2940 = vunpack.c.l.b16 %v2853
        %v2941 = vunpack.c.h.b16 %v2853
        %v2942 = vunpack.c.l.b16 %v2854
        %v2943 = vunpack.c.l.b16 %v2855
        %v2944 = vunpack.c.h.b16 %v2855
        %v2945 = vunpack.c.l.b16 %v2856
        %v2946 = vunpack.c.l.b16 %v2857
        %v2947 = vunpack.c.h.b16 %v2857
        %v2948 = vunpack.c.l.b16 %v2858
        %v2949 = vunpack.c.l.b16 %v2859
        %v2950 = vunpack.c.h.b16 %v2859
        %v2951 = vunpack.c.l.b16 %v2860
        %v2952 = vunpack.c.l.b16 %v2861
        %v2953 = vunpack.c.h.b16 %v2861
        %v2954 = vunpack.c.l.b16 %v2862
        %v2955 = vunpack.c.l.b16 %v2863
        %v2956 = vunpack.c.h.b16 %v2863
        %v2957 = vunpack.c.l.b16 %v2864
        %v2958 = vunpack.c.l.b16 %v2865
        %v2959 = vunpack.c.h.b16 %v2865
        %v2960 = vunpack.c.l.b16 %v2866
        %v2961 = vunpack.c.l.b16 %v2867
        %v2962 = vunpack.c.h.b16 %v2867
        %v2963 = vunpack.c.l.b16 %v2868
        %v2964 = vunpack.c.l.b16 %v2869
        %v2965 = vunpack.c.h.b16 %v2869
        %v2966 = vunpack.c.l.b16 %v2870
        %v2967 = vunpack.c.l.b16 %v2871
        %v2968 = vunpack.c.h.b16 %v2871
        %v2969 = vunpack.c.l.b16 %v2872
        %v2970 = vunpack.c.l.b16 %v2873
        %v2971 = vunpack.c.h.b16 %v2873
        %v2972 = vunpack.c.l.b16 %v2874
        %v2973 = vpack.c.b16 %v2928, %v2925
        %v2974 = vpack.c.b16 %v2929, %v2926
        %v2975 = vpack.c.b16 %v2930, %v2927
        %v2976 = vpack.c.b16 %v2934, %v2931
        %v2977 = vpack.c.b16 %v2935, %v2932
        %v2978 = vpack.c.b16 %v2936, %v2933
        %v2979 = vpack.c.b16 %v2940, %v2937
        %v2980 = vpack.c.b16 %v2941, %v2938
        %v2981 = vpack.c.b16 %v2942, %v2939
        %v2982 = vpack.c.b16 %v2946, %v2943
        %v2983 = vpack.c.b16 %v2947, %v2944
        %v2984 = vpack.c.b16 %v2948, %v2945
        %v2985 = vpack.c.b16 %v2952, %v2949
        %v2986 = vpack.c.b16 %v2953, %v2950
        %v2987 = vpack.c.b16 %v2954, %v2951
        %v2988 = vpack.c.b16 %v2958, %v2955
        %v2989 = vpack.c.b16 %v2959, %v2956
        %v2990 = vpack.c.b16 %v2960, %v2957
        %v2991 = vpack.c.b16 %v2964, %v2961
        %v2992 = vpack.c.b16 %v2965, %v2962
        %v2993 = vpack.c.b16 %v2966, %v2963
        %v2994 = vpack.c.b16 %v2970, %v2967
        %v2995 = vpack.c.b16 %v2971, %v2968
        %v2996 = vpack.c.b16 %v2972, %v2969
        %3021 = vmatprep.subr.bf16.mxu0 %v2974
        %3022 = vmatpush1.bf16.msra.mxu0 %v2973
        %3023 = vmatprep.subr.bf16.mxu0 %v2977
        %3024 = vmatpush1.bf16.msra.mxu0 %v2976
        %3025 = vmatprep.subr.bf16.mxu0 %v2980
        %3026 = vmatpush1.bf16.msra.mxu0 %v2979
        %3027 = vmatprep.subr.bf16.mxu0 %v2983
        %3028 = vmatpush1.bf16.msra.mxu0 %v2982
        %3029 = vmatprep.subr.bf16.mxu0 %v2986
        %3030 = vmatpush1.bf16.msra.mxu0 %v2985
        %3031 = vmatprep.subr.bf16.mxu0 %v2989
        %3032 = vmatpush1.bf16.msra.mxu0 %v2988
        %3033 = vmatprep.subr.bf16.mxu0 %v2992
        %3034 = vmatpush1.bf16.msra.mxu0 %v2991
        %3035 = vmatprep.subr.bf16.mxu0 %v2995
        %3036 = vmatpush1.bf16.msra.mxu0 %v2994
        %3037 = vmatprep.subr.bf16.mxu0 0
        %3038 = vmatpush1.bf16.msra.mxu0 0
        %3039 = vmatprep.subr.bf16.mxu0 0
        %3040 = vmatpush1.bf16.msra.mxu0 0
        %3041 = vmatprep.subr.bf16.mxu0 0
        %3042 = vmatpush1.bf16.msra.mxu0 0
        %3043 = vmatprep.subr.bf16.mxu0 0
        %3044 = vmatpush1.bf16.msra.mxu0 0
        %3045 = vmatprep.subr.bf16.mxu0 0
        %3046 = vmatpush1.bf16.msra.mxu0 0
        %3047 = vmatprep.subr.bf16.mxu0 0
        %3048 = vmatpush1.bf16.msra.mxu0 0
        %3049 = vmatprep.subr.bf16.mxu0 0
        %3050 = vmatpush1.bf16.msra.mxu0 0
        %3051 = vmatprep.subr.bf16.mxu0 0
        %3052 = vmatpush1.bf16.msra.mxu0 0
        %3053 = vmatprep.mubr.bf16.mxu0 0
        %3054 = vmatmul.mubr.bf16.gmra.mrb[0].mxu0 %v2840
        %v3055 = vpop.f32.mrb[0].mxu0
        %v3056 = vadd.f32 %v2881, %v3055
        %v3057 = vpop.f32.mrb[0].mxu0
        %v3058 = vadd.f32 %v2885, %v3057
        %v3059 = vpop.f32.mrb[0].mxu0
        %v3060 = vadd.f32 %v2881, %v3059
        %v3061 = vpop.f32.mrb[0].mxu0
        %v3062 = vadd.f32 %v2885, %v3061
        %3063 = vmatprep.mubr.bf16.mxu0 0
        %3064 = vmatmul.mubr.bf16.gmra.mrb[0].mxu0 %v2841
        %v3065 = vpop.f32.mrb[0].mxu0
        %v3066 = vadd.f32 %v2881, %v3065
        %v3067 = vpop.f32.mrb[0].mxu0
        %v3068 = vadd.f32 %v2885, %v3067
        %v3069 = vpop.f32.mrb[0].mxu0
        %v3070 = vadd.f32 %v2881, %v3069
        %v3071 = vpop.f32.mrb[0].mxu0
        %v3072 = vadd.f32 %v2885, %v3071
        %3073 = vdwg.mxu0
        %3074 = vmatprep.subr.bf16.mxu0 0
        %3075 = vmatpush1.bf16.msra.mxu0 %v2975
        %3076 = vmatprep.subr.bf16.mxu0 0
        %3077 = vmatpush1.bf16.msra.mxu0 %v2978
        %3078 = vmatprep.subr.bf16.mxu0 0
        %3079 = vmatpush1.bf16.msra.mxu0 %v2981
        %3080 = vmatprep.subr.bf16.mxu0 0
        %3081 = vmatpush1.bf16.msra.mxu0 %v2984
        %3082 = vmatprep.subr.bf16.mxu0 0
        %3083 = vmatpush1.bf16.msra.mxu0 %v2987
        %3084 = vmatprep.subr.bf16.mxu0 0
        %3085 = vmatpush1.bf16.msra.mxu0 %v2990
        %3086 = vmatprep.subr.bf16.mxu0 0
        %3087 = vmatpush1.bf16.msra.mxu0 %v2993
        %3088 = vmatprep.subr.bf16.mxu0 0
        %3089 = vmatpush1.bf16.msra.mxu0 %v2996
        %3090 = vmatprep.subr.bf16.mxu0 0
        %3091 = vmatpush1.bf16.msra.mxu0 0
        %3092 = vmatprep.subr.bf16.mxu0 0
        %3093 = vmatpush1.bf16.msra.mxu0 0
        %3094 = vmatprep.subr.bf16.mxu0 0
        %3095 = vmatpush1.bf16.msra.mxu0 0
        %3096 = vmatprep.subr.bf16.mxu0 0
        %3097 = vmatpush1.bf16.msra.mxu0 0
        %3098 = vmatprep.subr.bf16.mxu0 0
        %3099 = vmatpush1.bf16.msra.mxu0 0
        %3100 = vmatprep.subr.bf16.mxu0 0
        %3101 = vmatpush1.bf16.msra.mxu0 0
        %3102 = vmatprep.subr.bf16.mxu0 0
        %3103 = vmatpush1.bf16.msra.mxu0 0
        %3104 = vmatprep.subr.bf16.mxu0 0
        %3105 = vmatpush1.bf16.msra.mxu0 0
        %3106 = vmatprep.mubr.bf16.mxu0 0
        %3107 = vmatmul.mubr.bf16.gmra.mrb[0].mxu0 %v2840
        %v3108 = vpop.f32.mrb[0].mxu0
        %v3109 = vadd.f32 %v2889, %v3108
        %v3110 = vpop.f32.mrb[0].mxu0
        %v3111 = vpop.f32.mrb[0].mxu0
        %v3112 = vadd.f32 %v2889, %v3111
        %v3113 = vpop.f32.mrb[0].mxu0
        %3114 = vmatprep.mubr.bf16.mxu0 0
        %3115 = vmatmul.mubr.bf16.gmra.mrb[0].mxu0 %v2841
        %v3116 = vpop.f32.mrb[0].mxu0
        %v3117 = vadd.f32 %v2889, %v3116
        %v3118 = vpop.f32.mrb[0].mxu0
        %v3119 = vpop.f32.mrb[0].mxu0
        %v3120 = vadd.f32 %v2889, %v3119
        %v3121 = vpop.f32.mrb[0].mxu0
        %3122 = vdwg.mxu0
        %v3123 = vpack.c.bf16 %v3060, %v3056
        %v3124 = vpack.c.bf16 %v3062, %v3058
        %v3125 = vpack.c.bf16 %v3112, %v3109
        %v3126 = vpack.c.bf16 %v3070, %v3066
        %v3127 = vpack.c.bf16 %v3072, %v3068
        %v3128 = vpack.c.bf16 %v3120, %v3117
        %v3130 = vsel %vm1113, %v3123, 0
        %v3133 = vsel %vm1113, %v3124, 0
        %3135 = vmatprep.subr.bf16.mxu0 0
        %3136 = vmatpush1.bf16.xpose.msra.mxu0 %v3133
        %3137 = vmatprep.subr.bf16.mxu0 0
        %3138 = vmatpush1.bf16.xpose.msra.mxu0 0
        %3139 = vmatprep.subr.bf16.mxu0 0
        %3140 = vmatpush1.bf16.xpose.msra.mxu0 0
        %3141 = vmatprep.subr.bf16.mxu0 0
        %3142 = vmatpush1.bf16.xpose.msra.mxu0 0
        %3143 = vmatprep.subr.bf16.mxu0 0
        %3144 = vmatpush1.bf16.xpose.msra.mxu0 0
        %3145 = vmatprep.subr.bf16.mxu0 0
        %3146 = vmatpush1.bf16.xpose.msra.mxu0 0
        %3147 = vmatprep.subr.bf16.mxu0 0
        %3148 = vmatpush1.bf16.xpose.msra.mxu0 0
        %3149 = vmatprep.subr.bf16.mxu0 0
        %3150 = vmatpush1.bf16.xpose.msra.mxu0 0
        %3151 = vmatprep.subr.bf16.mxu0 0
        %3152 = vmatpush1.bf16.xpose.msra.mxu0 0
        %3153 = vmatprep.subr.bf16.mxu0 0
        %3154 = vmatpush1.bf16.xpose.msra.mxu0 0
        %3155 = vmatprep.subr.bf16.mxu0 0
        %3156 = vmatpush1.bf16.xpose.msra.mxu0 0
        %3157 = vmatprep.subr.bf16.mxu0 0
        %3158 = vmatpush1.bf16.xpose.msra.mxu0 0
        %3159 = vmatprep.subr.bf16.mxu0 0
        %3160 = vmatpush1.bf16.xpose.msra.mxu0 0
        %3161 = vmatprep.subr.bf16.mxu0 0
        %3162 = vmatpush1.bf16.xpose.msra.mxu0 0
        %3163 = vmatprep.subr.bf16.mxu0 0
        %3164 = vmatpush1.bf16.xpose.msra.mxu0 0
        %3165 = vmatprep.subr.bf16.mxu0 0
        %3166 = vmatpush1.bf16.xpose.msra.mxu0 0
        %3167 = vmatprep.mubr.bf16.mxu0 0
        %3168 = vmatmul.mubr.bf16.gmra.mrb[0].mxu0 %v3130
        %v3169 = vpop.f32.mrb[0].mxu0
        %v3170 = vadd.f32 0.0, %v3169
        %v3171 = vpop.f32.mrb[0].mxu0
        %v3172 = vpop.f32.mrb[0].mxu0
        %v3173 = vadd.f32 0.0, %v3172
        %v3174 = vpop.f32.mrb[0].mxu0
        %3175 = vdwg.mxu0
        %v3176 = vmul.f32 %v3170, 0.17677669
        %v3177 = vmul.f32 %v3173, 0.17677669
        %v3178 = vsel %vm1163, %v3176, -inf
        %3179 = vmax.xlane.f32.xlu0 %v3178
        %v3180 = vpop.xlane.xlu0 %3179
        %v3181 = vsel %vm1163, %v3177, -inf
        %3182 = vmax.xlane.f32.xlu0 %v3181
        %v3183 = vpop.xlane.xlu0 %3182
        %v3184 = vsub.f32 %v3176, %v3180
        %v3185 = vsub.f32 %v3177, %v3183
        %v3186 = vmul.f32 %v3184, 1.442695
        %v3187 = vpow.pop %v3186
        %v3188 = vmul.f32 %v3185, 1.442695
        %v3189 = vpow.pop %v3188
        %v3190 = vsel %vm1163, %v3187, 0.0
        %3191 = vadd.xlane.f32.xlu0 %v3190
        %v3192 = vpop.xlane.xlu0 %3191
        %v3193 = vsel %vm1163, %v3189, 0.0
        %3194 = vadd.xlane.f32.xlu0 %v3193
        %v3195 = vpop.xlane.xlu0 %3194
        %v3196 = vrcp.pop %v3192
        %v3197 = vmul.f32 %v3187, %v3196
        %v3198 = vrcp.pop %v3195
        %v3199 = vmul.f32 %v3189, %v3198
        %v3200 = vpack.c.bf16 %v3199, %v3197
        %v3202 = vsel %vm1163, %v3200, 0
        %3204 = vmatprep.subr.bf16.mxu0 0
        %3205 = vmatpush1.bf16.msra.mxu0 %v3125
        %3206 = vmatprep.subr.bf16.mxu0 0
        %3207 = vmatpush1.bf16.msra.mxu0 0
        %3208 = vmatprep.subr.bf16.mxu0 0
        %3209 = vmatpush1.bf16.msra.mxu0 0
        %3210 = vmatprep.subr.bf16.mxu0 0
        %3211 = vmatpush1.bf16.msra.mxu0 0
        %3212 = vmatprep.subr.bf16.mxu0 0
        %3213 = vmatpush1.bf16.msra.mxu0 0
        %3214 = vmatprep.subr.bf16.mxu0 0
        %3215 = vmatpush1.bf16.msra.mxu0 0
        %3216 = vmatprep.subr.bf16.mxu0 0
        %3217 = vmatpush1.bf16.msra.mxu0 0
        %3218 = vmatprep.subr.bf16.mxu0 0
        %3219 = vmatpush1.bf16.msra.mxu0 0
        %3220 = vmatprep.subr.bf16.mxu0 0
        %3221 = vmatpush1.bf16.msra.mxu0 0
        %3222 = vmatprep.subr.bf16.mxu0 0
        %3223 = vmatpush1.bf16.msra.mxu0 0
        %3224 = vmatprep.subr.bf16.mxu0 0
        %3225 = vmatpush1.bf16.msra.mxu0 0
        %3226 = vmatprep.subr.bf16.mxu0 0
        %3227 = vmatpush1.bf16.msra.mxu0 0
        %3228 = vmatprep.subr.bf16.mxu0 0
        %3229 = vmatpush1.bf16.msra.mxu0 0
        %3230 = vmatprep.subr.bf16.mxu0 0
        %3231 = vmatpush1.bf16.msra.mxu0 0
        %3232 = vmatprep.subr.bf16.mxu0 0
        %3233 = vmatpush1.bf16.msra.mxu0 0
        %3234 = vmatprep.subr.bf16.mxu0 0
        %3235 = vmatpush1.bf16.msra.mxu0 0
        %3236 = vmatprep.mubr.bf16.mxu0 0
        %3237 = vmatmul.mubr.bf16.gmra.mrb[0].mxu0 %v3202
        %v3238 = vpop.f32.mrb[0].mxu0
        %v3239 = vadd.f32 0.0, %v3238
        %v3240 = vpop.f32.mrb[0].mxu0
        %v3241 = vpop.f32.mrb[0].mxu0
        %v3242 = vadd.f32 0.0, %v3241
        %v3243 = vpop.f32.mrb[0].mxu0
        %3244 = vdwg.mxu0
        %v3246 = vsel %vm1113, %v3126, 0
        %v3249 = vsel %vm1113, %v3127, 0
        %3251 = vmatprep.subr.bf16.mxu0 0
        %3252 = vmatpush1.bf16.xpose.msra.mxu0 %v3249
        %3253 = vmatprep.subr.bf16.mxu0 0
        %3254 = vmatpush1.bf16.xpose.msra.mxu0 0
        %3255 = vmatprep.subr.bf16.mxu0 0
        %3256 = vmatpush1.bf16.xpose.msra.mxu0 0
        %3257 = vmatprep.subr.bf16.mxu0 0
        %3258 = vmatpush1.bf16.xpose.msra.mxu0 0
        %3259 = vmatprep.subr.bf16.mxu0 0
        %3260 = vmatpush1.bf16.xpose.msra.mxu0 0
        %3261 = vmatprep.subr.bf16.mxu0 0
        %3262 = vmatpush1.bf16.xpose.msra.mxu0 0
        %3263 = vmatprep.subr.bf16.mxu0 0
        %3264 = vmatpush1.bf16.xpose.msra.mxu0 0
        %3265 = vmatprep.subr.bf16.mxu0 0
        %3266 = vmatpush1.bf16.xpose.msra.mxu0 0
        %3267 = vmatprep.subr.bf16.mxu0 0
        %3268 = vmatpush1.bf16.xpose.msra.mxu0 0
        %3269 = vmatprep.subr.bf16.mxu0 0
        %3270 = vmatpush1.bf16.xpose.msra.mxu0 0
        %3271 = vmatprep.subr.bf16.mxu0 0
        %3272 = vmatpush1.bf16.xpose.msra.mxu0 0
        %3273 = vmatprep.subr.bf16.mxu0 0
        %3274 = vmatpush1.bf16.xpose.msra.mxu0 0
        %3275 = vmatprep.subr.bf16.mxu0 0
        %3276 = vmatpush1.bf16.xpose.msra.mxu0 0
        %3277 = vmatprep.subr.bf16.mxu0 0
        %3278 = vmatpush1.bf16.xpose.msra.mxu0 0
        %3279 = vmatprep.subr.bf16.mxu0 0
        %3280 = vmatpush1.bf16.xpose.msra.mxu0 0
        %3281 = vmatprep.subr.bf16.mxu0 0
        %3282 = vmatpush1.bf16.xpose.msra.mxu0 0
        %3283 = vmatprep.mubr.bf16.mxu0 0
        %3284 = vmatmul.mubr.bf16.gmra.mrb[0].mxu0 %v3246
        %v3285 = vpop.f32.mrb[0].mxu0
        %v3286 = vadd.f32 0.0, %v3285
        %v3287 = vpop.f32.mrb[0].mxu0
        %v3288 = vpop.f32.mrb[0].mxu0
        %v3289 = vadd.f32 0.0, %v3288
        %v3290 = vpop.f32.mrb[0].mxu0
        %3291 = vdwg.mxu0
        %v3292 = vmul.f32 %v3286, 0.17677669
        %v3293 = vmul.f32 %v3289, 0.17677669
        %v3294 = vsel %vm1163, %v3292, -inf
        %3295 = vmax.xlane.f32.xlu0 %v3294
        %v3296 = vpop.xlane.xlu0 %3295
        %v3297 = vsel %vm1163, %v3293, -inf
        %3298 = vmax.xlane.f32.xlu0 %v3297
        %v3299 = vpop.xlane.xlu0 %3298
        %v3300 = vsub.f32 %v3292, %v3296
        %v3301 = vsub.f32 %v3293, %v3299
        %v3302 = vmul.f32 %v3300, 1.442695
        %v3303 = vpow.pop %v3302
        %v3304 = vmul.f32 %v3301, 1.442695
        %v3305 = vpow.pop %v3304
        %v3306 = vsel %vm1163, %v3303, 0.0
        %3307 = vadd.xlane.f32.xlu0 %v3306
        %v3308 = vpop.xlane.xlu0 %3307
        %v3309 = vsel %vm1163, %v3305, 0.0
        %3310 = vadd.xlane.f32.xlu0 %v3309
        %v3311 = vpop.xlane.xlu0 %3310
        %v3312 = vrcp.pop %v3308
        %v3313 = vmul.f32 %v3303, %v3312
        %v3314 = vrcp.pop %v3311
        %v3315 = vmul.f32 %v3305, %v3314
        %v3316 = vpack.c.bf16 %v3315, %v3313
        %v3318 = vsel %vm1163, %v3316, 0
        %3320 = vmatprep.subr.bf16.mxu0 0
        %3321 = vmatpush1.bf16.msra.mxu0 %v3128
        %3322 = vmatprep.subr.bf16.mxu0 0
        %3323 = vmatpush1.bf16.msra.mxu0 0
        %3324 = vmatprep.subr.bf16.mxu0 0
        %3325 = vmatpush1.bf16.msra.mxu0 0
        %3326 = vmatprep.subr.bf16.mxu0 0
        %3327 = vmatpush1.bf16.msra.mxu0 0
        %3328 = vmatprep.subr.bf16.mxu0 0
        %3329 = vmatpush1.bf16.msra.mxu0 0
        %3330 = vmatprep.subr.bf16.mxu0 0
        %3331 = vmatpush1.bf16.msra.mxu0 0
        %3332 = vmatprep.subr.bf16.mxu0 0
        %3333 = vmatpush1.bf16.msra.mxu0 0
        %3334 = vmatprep.subr.bf16.mxu0 0
        %3335 = vmatpush1.bf16.msra.mxu0 0
        %3336 = vmatprep.subr.bf16.mxu0 0
        %3337 = vmatpush1.bf16.msra.mxu0 0
        %3338 = vmatprep.subr.bf16.mxu0 0
        %3339 = vmatpush1.bf16.msra.mxu0 0
        %3340 = vmatprep.subr.bf16.mxu0 0
        %3341 = vmatpush1.bf16.msra.mxu0 0
        %3342 = vmatprep.subr.bf16.mxu0 0
        %3343 = vmatpush1.bf16.msra.mxu0 0
        %3344 = vmatprep.subr.bf16.mxu0 0
        %3345 = vmatpush1.bf16.msra.mxu0 0
        %3346 = vmatprep.subr.bf16.mxu0 0
        %3347 = vmatpush1.bf16.msra.mxu0 0
        %3348 = vmatprep.subr.bf16.mxu0 0
        %3349 = vmatpush1.bf16.msra.mxu0 0
        %3350 = vmatprep.subr.bf16.mxu0 0
        %3351 = vmatpush1.bf16.msra.mxu0 0
        %3352 = vmatprep.mubr.bf16.mxu0 0
        %3353 = vmatmul.mubr.bf16.gmra.mrb[0].mxu0 %v3318
        %v3354 = vpop.f32.mrb[0].mxu0
        %v3355 = vadd.f32 0.0, %v3354
        %v3356 = vpop.f32.mrb[0].mxu0
        %v3357 = vpop.f32.mrb[0].mxu0
        %v3358 = vadd.f32 0.0, %v3357
        %v3359 = vpop.f32.mrb[0].mxu0
        %3360 = vdwg.mxu0
        %3362 = vrot.lane.b32.xlu0 %v3123, 96
        %v3363 = vpop.permute.xlu0 %3362
        %3365 = vrot.lane.b32.xlu0 %v3124, 96
        %v3366 = vpop.permute.xlu0 %3365
        %v3368 = vsel %vm1113, %v3363, 0
        %v3371 = vsel %vm1113, %v3366, 0
        %3373 = vmatprep.subr.bf16.mxu0 0
        %3374 = vmatpush1.bf16.xpose.msra.mxu0 %v3371
        %3375 = vmatprep.subr.bf16.mxu0 0
        %3376 = vmatpush1.bf16.xpose.msra.mxu0 0
        %3377 = vmatprep.subr.bf16.mxu0 0
        %3378 = vmatpush1.bf16.xpose.msra.mxu0 0
        %3379 = vmatprep.subr.bf16.mxu0 0
        %3380 = vmatpush1.bf16.xpose.msra.mxu0 0
        %3381 = vmatprep.subr.bf16.mxu0 0
        %3382 = vmatpush1.bf16.xpose.msra.mxu0 0
        %3383 = vmatprep.subr.bf16.mxu0 0
        %3384 = vmatpush1.bf16.xpose.msra.mxu0 0
        %3385 = vmatprep.subr.bf16.mxu0 0
        %3386 = vmatpush1.bf16.xpose.msra.mxu0 0
        %3387 = vmatprep.subr.bf16.mxu0 0
        %3388 = vmatpush1.bf16.xpose.msra.mxu0 0
        %3389 = vmatprep.subr.bf16.mxu0 0
        %3390 = vmatpush1.bf16.xpose.msra.mxu0 0
        %3391 = vmatprep.subr.bf16.mxu0 0
        %3392 = vmatpush1.bf16.xpose.msra.mxu0 0
        %3393 = vmatprep.subr.bf16.mxu0 0
        %3394 = vmatpush1.bf16.xpose.msra.mxu0 0
        %3395 = vmatprep.subr.bf16.mxu0 0
        %3396 = vmatpush1.bf16.xpose.msra.mxu0 0
        %3397 = vmatprep.subr.bf16.mxu0 0
        %3398 = vmatpush1.bf16.xpose.msra.mxu0 0
        %3399 = vmatprep.subr.bf16.mxu0 0
        %3400 = vmatpush1.bf16.xpose.msra.mxu0 0
        %3401 = vmatprep.subr.bf16.mxu0 0
        %3402 = vmatpush1.bf16.xpose.msra.mxu0 0
        %3403 = vmatprep.subr.bf16.mxu0 0
        %3404 = vmatpush1.bf16.xpose.msra.mxu0 0
        %3405 = vmatprep.mubr.bf16.mxu0 0
        %3406 = vmatmul.mubr.bf16.gmra.mrb[0].mxu0 %v3368
        %v3407 = vpop.f32.mrb[0].mxu0
        %v3408 = vadd.f32 0.0, %v3407
        %v3409 = vpop.f32.mrb[0].mxu0
        %v3410 = vpop.f32.mrb[0].mxu0
        %v3411 = vadd.f32 0.0, %v3410
        %v3412 = vpop.f32.mrb[0].mxu0
        %3413 = vdwg.mxu0
        %v3414 = vmul.f32 %v3408, 0.17677669
        %v3415 = vmul.f32 %v3411, 0.17677669
        %v3416 = vsel %vm1163, %v3414, -inf
        %3417 = vmax.xlane.f32.xlu0 %v3416
        %v3418 = vpop.xlane.xlu0 %3417
        %v3419 = vsel %vm1163, %v3415, -inf
        %3420 = vmax.xlane.f32.xlu0 %v3419
        %v3421 = vpop.xlane.xlu0 %3420
        %v3422 = vsub.f32 %v3414, %v3418
        %v3423 = vsub.f32 %v3415, %v3421
        %v3424 = vmul.f32 %v3422, 1.442695
        %v3425 = vpow.pop %v3424
        %v3426 = vmul.f32 %v3423, 1.442695
        %v3427 = vpow.pop %v3426
        %v3428 = vsel %vm1163, %v3425, 0.0
        %3429 = vadd.xlane.f32.xlu0 %v3428
        %v3430 = vpop.xlane.xlu0 %3429
        %v3431 = vsel %vm1163, %v3427, 0.0
        %3432 = vadd.xlane.f32.xlu0 %v3431
        %v3433 = vpop.xlane.xlu0 %3432
        %v3434 = vrcp.pop %v3430
        %v3435 = vmul.f32 %v3425, %v3434
        %v3436 = vrcp.pop %v3433
        %v3437 = vmul.f32 %v3427, %v3436
        %v3438 = vpack.c.bf16 %v3437, %v3435
        %3440 = vrot.lane.b32.xlu0 %v3125, 96
        %v3441 = vpop.permute.xlu0 %3440
        %v3444 = vsel %vm1163, %v3438, 0
        %3446 = vmatprep.subr.bf16.mxu0 0
        %3447 = vmatpush1.bf16.msra.mxu0 %v3441
        %3448 = vmatprep.subr.bf16.mxu0 0
        %3449 = vmatpush1.bf16.msra.mxu0 0
        %3450 = vmatprep.subr.bf16.mxu0 0
        %3451 = vmatpush1.bf16.msra.mxu0 0
        %3452 = vmatprep.subr.bf16.mxu0 0
        %3453 = vmatpush1.bf16.msra.mxu0 0
        %3454 = vmatprep.subr.bf16.mxu0 0
        %3455 = vmatpush1.bf16.msra.mxu0 0
        %3456 = vmatprep.subr.bf16.mxu0 0
        %3457 = vmatpush1.bf16.msra.mxu0 0
        %3458 = vmatprep.subr.bf16.mxu0 0
        %3459 = vmatpush1.bf16.msra.mxu0 0
        %3460 = vmatprep.subr.bf16.mxu0 0
        %3461 = vmatpush1.bf16.msra.mxu0 0
        %3462 = vmatprep.subr.bf16.mxu0 0
        %3463 = vmatpush1.bf16.msra.mxu0 0
        %3464 = vmatprep.subr.bf16.mxu0 0
        %3465 = vmatpush1.bf16.msra.mxu0 0
        %3466 = vmatprep.subr.bf16.mxu0 0
        %3467 = vmatpush1.bf16.msra.mxu0 0
        %3468 = vmatprep.subr.bf16.mxu0 0
        %3469 = vmatpush1.bf16.msra.mxu0 0
        %3470 = vmatprep.subr.bf16.mxu0 0
        %3471 = vmatpush1.bf16.msra.mxu0 0
        %3472 = vmatprep.subr.bf16.mxu0 0
        %3473 = vmatpush1.bf16.msra.mxu0 0
        %3474 = vmatprep.subr.bf16.mxu0 0
        %3475 = vmatpush1.bf16.msra.mxu0 0
        %3476 = vmatprep.subr.bf16.mxu0 0
        %3477 = vmatpush1.bf16.msra.mxu0 0
        %3478 = vmatprep.mubr.bf16.mxu0 0
        %3479 = vmatmul.mubr.bf16.gmra.mrb[0].mxu0 %v3444
        %v3480 = vpop.f32.mrb[0].mxu0
        %v3481 = vadd.f32 0.0, %v3480
        %v3482 = vpop.f32.mrb[0].mxu0
        %v3483 = vpop.f32.mrb[0].mxu0
        %v3484 = vadd.f32 0.0, %v3483
        %v3485 = vpop.f32.mrb[0].mxu0
        %3486 = vdwg.mxu0
        %3488 = vrot.lane.b32.xlu0 %v3126, 96
        %v3489 = vpop.permute.xlu0 %3488
        %3491 = vrot.lane.b32.xlu0 %v3127, 96
        %v3492 = vpop.permute.xlu0 %3491
        %v3494 = vsel %vm1113, %v3489, 0
        %v3497 = vsel %vm1113, %v3492, 0
        %3499 = vmatprep.subr.bf16.mxu0 0
        %3500 = vmatpush1.bf16.xpose.msra.mxu0 %v3497
        %3501 = vmatprep.subr.bf16.mxu0 0
        %3502 = vmatpush1.bf16.xpose.msra.mxu0 0
        %3503 = vmatprep.subr.bf16.mxu0 0
        %3504 = vmatpush1.bf16.xpose.msra.mxu0 0
        %3505 = vmatprep.subr.bf16.mxu0 0
        %3506 = vmatpush1.bf16.xpose.msra.mxu0 0
        %3507 = vmatprep.subr.bf16.mxu0 0
        %3508 = vmatpush1.bf16.xpose.msra.mxu0 0
        %3509 = vmatprep.subr.bf16.mxu0 0
        %3510 = vmatpush1.bf16.xpose.msra.mxu0 0
        %3511 = vmatprep.subr.bf16.mxu0 0
        %3512 = vmatpush1.bf16.xpose.msra.mxu0 0
        %3513 = vmatprep.subr.bf16.mxu0 0
        %3514 = vmatpush1.bf16.xpose.msra.mxu0 0
        %3515 = vmatprep.subr.bf16.mxu0 0
        %3516 = vmatpush1.bf16.xpose.msra.mxu0 0
        %3517 = vmatprep.subr.bf16.mxu0 0
        %3518 = vmatpush1.bf16.xpose.msra.mxu0 0
        %3519 = vmatprep.subr.bf16.mxu0 0
        %3520 = vmatpush1.bf16.xpose.msra.mxu0 0
        %3521 = vmatprep.subr.bf16.mxu0 0
        %3522 = vmatpush1.bf16.xpose.msra.mxu0 0
        %3523 = vmatprep.subr.bf16.mxu0 0
        %3524 = vmatpush1.bf16.xpose.msra.mxu0 0
        %3525 = vmatprep.subr.bf16.mxu0 0
        %3526 = vmatpush1.bf16.xpose.msra.mxu0 0
        %3527 = vmatprep.subr.bf16.mxu0 0
        %3528 = vmatpush1.bf16.xpose.msra.mxu0 0
        %3529 = vmatprep.subr.bf16.mxu0 0
        %3530 = vmatpush1.bf16.xpose.msra.mxu0 0
        %3531 = vmatprep.mubr.bf16.mxu0 0
        %3532 = vmatmul.mubr.bf16.gmra.mrb[0].mxu0 %v3494
        %v3533 = vpop.f32.mrb[0].mxu0
        %v3534 = vadd.f32 0.0, %v3533
        %v3535 = vpop.f32.mrb[0].mxu0
        %v3536 = vpop.f32.mrb[0].mxu0
        %v3537 = vadd.f32 0.0, %v3536
        %v3538 = vpop.f32.mrb[0].mxu0
        %3539 = vdwg.mxu0
        %v3540 = vmul.f32 %v3534, 0.17677669
        %v3541 = vmul.f32 %v3537, 0.17677669
        %v3542 = vsel %vm1163, %v3540, -inf
        %3543 = vmax.xlane.f32.xlu0 %v3542
        %v3544 = vpop.xlane.xlu0 %3543
        %v3545 = vsel %vm1163, %v3541, -inf
        %3546 = vmax.xlane.f32.xlu0 %v3545
        %v3547 = vpop.xlane.xlu0 %3546
        %v3548 = vsub.f32 %v3540, %v3544
        %v3549 = vsub.f32 %v3541, %v3547
        %v3550 = vmul.f32 %v3548, 1.442695
        %v3551 = vpow.pop %v3550
        %v3552 = vmul.f32 %v3549, 1.442695
        %v3553 = vpow.pop %v3552
        %v3554 = vsel %vm1163, %v3551, 0.0
        %3555 = vadd.xlane.f32.xlu0 %v3554
        %v3556 = vpop.xlane.xlu0 %3555
        %v3557 = vsel %vm1163, %v3553, 0.0
        %3558 = vadd.xlane.f32.xlu0 %v3557
        %v3559 = vpop.xlane.xlu0 %3558
        %v3560 = vrcp.pop %v3556
        %v3561 = vmul.f32 %v3551, %v3560
        %v3562 = vrcp.pop %v3559
        %v3563 = vmul.f32 %v3553, %v3562
        %v3564 = vpack.c.bf16 %v3563, %v3561
        %3566 = vrot.lane.b32.xlu0 %v3128, 96
        %v3567 = vpop.permute.xlu0 %3566
        %v3570 = vsel %vm1163, %v3564, 0
        %3572 = vmatprep.subr.bf16.mxu0 0
        %3573 = vmatpush1.bf16.msra.mxu0 %v3567
        %3574 = vmatprep.subr.bf16.mxu0 0
        %3575 = vmatpush1.bf16.msra.mxu0 0
        %3576 = vmatprep.subr.bf16.mxu0 0
        %3577 = vmatpush1.bf16.msra.mxu0 0
        %3578 = vmatprep.subr.bf16.mxu0 0
        %3579 = vmatpush1.bf16.msra.mxu0 0
        %3580 = vmatprep.subr.bf16.mxu0 0
        %3581 = vmatpush1.bf16.msra.mxu0 0
        %3582 = vmatprep.subr.bf16.mxu0 0
        %3583 = vmatpush1.bf16.msra.mxu0 0
        %3584 = vmatprep.subr.bf16.mxu0 0
        %3585 = vmatpush1.bf16.msra.mxu0 0
        %3586 = vmatprep.subr.bf16.mxu0 0
        %3587 = vmatpush1.bf16.msra.mxu0 0
        %3588 = vmatprep.subr.bf16.mxu0 0
        %3589 = vmatpush1.bf16.msra.mxu0 0
        %3590 = vmatprep.subr.bf16.mxu0 0
        %3591 = vmatpush1.bf16.msra.mxu0 0
        %3592 = vmatprep.subr.bf16.mxu0 0
        %3593 = vmatpush1.bf16.msra.mxu0 0
        %3594 = vmatprep.subr.bf16.mxu0 0
        %3595 = vmatpush1.bf16.msra.mxu0 0
        %3596 = vmatprep.subr.bf16.mxu0 0
        %3597 = vmatpush1.bf16.msra.mxu0 0
        %3598 = vmatprep.subr.bf16.mxu0 0
        %3599 = vmatpush1.bf16.msra.mxu0 0
        %3600 = vmatprep.subr.bf16.mxu0 0
        %3601 = vmatpush1.bf16.msra.mxu0 0
        %3602 = vmatprep.subr.bf16.mxu0 0
        %3603 = vmatpush1.bf16.msra.mxu0 0
        %3604 = vmatprep.mubr.bf16.mxu0 0
        %3605 = vmatmul.mubr.bf16.gmra.mrb[0].mxu0 %v3570
        %v3606 = vpop.f32.mrb[0].mxu0
        %v3607 = vadd.f32 0.0, %v3606
        %v3608 = vpop.f32.mrb[0].mxu0
        %v3609 = vpop.f32.mrb[0].mxu0
        %v3610 = vadd.f32 0.0, %v3609
        %v3611 = vpop.f32.mrb[0].mxu0
        %3612 = vdwg.mxu0
        %3613 = vrot.lane.b32.xlu0 %v3123, 64
        %v3614 = vpop.permute.xlu0 %3613
        %3615 = vrot.lane.b32.xlu0 %v3124, 64
        %v3616 = vpop.permute.xlu0 %3615
        %v3618 = vsel %vm1113, %v3614, 0
        %v3621 = vsel %vm1113, %v3616, 0
        %3623 = vmatprep.subr.bf16.mxu0 0
        %3624 = vmatpush1.bf16.xpose.msra.mxu0 %v3621
        %3625 = vmatprep.subr.bf16.mxu0 0
        %3626 = vmatpush1.bf16.xpose.msra.mxu0 0
        %3627 = vmatprep.subr.bf16.mxu0 0
        %3628 = vmatpush1.bf16.xpose.msra.mxu0 0
        %3629 = vmatprep.subr.bf16.mxu0 0
        %3630 = vmatpush1.bf16.xpose.msra.mxu0 0
        %3631 = vmatprep.subr.bf16.mxu0 0
        %3632 = vmatpush1.bf16.xpose.msra.mxu0 0
        %3633 = vmatprep.subr.bf16.mxu0 0
        %3634 = vmatpush1.bf16.xpose.msra.mxu0 0
        %3635 = vmatprep.subr.bf16.mxu0 0
        %3636 = vmatpush1.bf16.xpose.msra.mxu0 0
        %3637 = vmatprep.subr.bf16.mxu0 0
        %3638 = vmatpush1.bf16.xpose.msra.mxu0 0
        %3639 = vmatprep.subr.bf16.mxu0 0
        %3640 = vmatpush1.bf16.xpose.msra.mxu0 0
        %3641 = vmatprep.subr.bf16.mxu0 0
        %3642 = vmatpush1.bf16.xpose.msra.mxu0 0
        %3643 = vmatprep.subr.bf16.mxu0 0
        %3644 = vmatpush1.bf16.xpose.msra.mxu0 0
        %3645 = vmatprep.subr.bf16.mxu0 0
        %3646 = vmatpush1.bf16.xpose.msra.mxu0 0
        %3647 = vmatprep.subr.bf16.mxu0 0
        %3648 = vmatpush1.bf16.xpose.msra.mxu0 0
        %3649 = vmatprep.subr.bf16.mxu0 0
        %3650 = vmatpush1.bf16.xpose.msra.mxu0 0
        %3651 = vmatprep.subr.bf16.mxu0 0
        %3652 = vmatpush1.bf16.xpose.msra.mxu0 0
        %3653 = vmatprep.subr.bf16.mxu0 0
        %3654 = vmatpush1.bf16.xpose.msra.mxu0 0
        %3655 = vmatprep.mubr.bf16.mxu0 0
        %3656 = vmatmul.mubr.bf16.gmra.mrb[0].mxu0 %v3618
        %v3657 = vpop.f32.mrb[0].mxu0
        %v3658 = vadd.f32 0.0, %v3657
        %v3659 = vpop.f32.mrb[0].mxu0
        %v3660 = vpop.f32.mrb[0].mxu0
        %v3661 = vadd.f32 0.0, %v3660
        %v3662 = vpop.f32.mrb[0].mxu0
        %3663 = vdwg.mxu0
        %v3664 = vmul.f32 %v3658, 0.17677669
        %v3665 = vmul.f32 %v3661, 0.17677669
        %v3666 = vsel %vm1163, %v3664, -inf
        %3667 = vmax.xlane.f32.xlu0 %v3666
        %v3668 = vpop.xlane.xlu0 %3667
        %v3669 = vsel %vm1163, %v3665, -inf
        %3670 = vmax.xlane.f32.xlu0 %v3669
        %v3671 = vpop.xlane.xlu0 %3670
        %v3672 = vsub.f32 %v3664, %v3668
        %v3673 = vsub.f32 %v3665, %v3671
        %v3674 = vmul.f32 %v3672, 1.442695
        %v3675 = vpow.pop %v3674
        %v3676 = vmul.f32 %v3673, 1.442695
        %v3677 = vpow.pop %v3676
        %v3678 = vsel %vm1163, %v3675, 0.0
        %3679 = vadd.xlane.f32.xlu0 %v3678
        %v3680 = vpop.xlane.xlu0 %3679
        %v3681 = vsel %vm1163, %v3677, 0.0
        %3682 = vadd.xlane.f32.xlu0 %v3681
        %v3683 = vpop.xlane.xlu0 %3682
        %v3684 = vrcp.pop %v3680
        %v3685 = vmul.f32 %v3675, %v3684
        %v3686 = vrcp.pop %v3683
        %v3687 = vmul.f32 %v3677, %v3686
        %v3688 = vpack.c.bf16 %v3687, %v3685
        %3689 = vrot.lane.b32.xlu0 %v3125, 64
        %v3690 = vpop.permute.xlu0 %3689
        %v3693 = vsel %vm1163, %v3688, 0
        %3695 = vmatprep.subr.bf16.mxu0 0
        %3696 = vmatpush1.bf16.msra.mxu0 %v3690
        %3697 = vmatprep.subr.bf16.mxu0 0
        %3698 = vmatpush1.bf16.msra.mxu0 0
        %3699 = vmatprep.subr.bf16.mxu0 0
        %3700 = vmatpush1.bf16.msra.mxu0 0
        %3701 = vmatprep.subr.bf16.mxu0 0
        %3702 = vmatpush1.bf16.msra.mxu0 0
        %3703 = vmatprep.subr.bf16.mxu0 0
        %3704 = vmatpush1.bf16.msra.mxu0 0
        %3705 = vmatprep.subr.bf16.mxu0 0
        %3706 = vmatpush1.bf16.msra.mxu0 0
        %3707 = vmatprep.subr.bf16.mxu0 0
        %3708 = vmatpush1.bf16.msra.mxu0 0
        %3709 = vmatprep.subr.bf16.mxu0 0
        %3710 = vmatpush1.bf16.msra.mxu0 0
        %3711 = vmatprep.subr.bf16.mxu0 0
        %3712 = vmatpush1.bf16.msra.mxu0 0
        %3713 = vmatprep.subr.bf16.mxu0 0
        %3714 = vmatpush1.bf16.msra.mxu0 0
        %3715 = vmatprep.subr.bf16.mxu0 0
        %3716 = vmatpush1.bf16.msra.mxu0 0
        %3717 = vmatprep.subr.bf16.mxu0 0
        %3718 = vmatpush1.bf16.msra.mxu0 0
        %3719 = vmatprep.subr.bf16.mxu0 0
        %3720 = vmatpush1.bf16.msra.mxu0 0
        %3721 = vmatprep.subr.bf16.mxu0 0
        %3722 = vmatpush1.bf16.msra.mxu0 0
        %3723 = vmatprep.subr.bf16.mxu0 0
        %3724 = vmatpush1.bf16.msra.mxu0 0
        %3725 = vmatprep.subr.bf16.mxu0 0
        %3726 = vmatpush1.bf16.msra.mxu0 0
        %3727 = vmatprep.mubr.bf16.mxu0 0
        %3728 = vmatmul.mubr.bf16.gmra.mrb[0].mxu0 %v3693
        %v3729 = vpop.f32.mrb[0].mxu0
        %v3730 = vadd.f32 0.0, %v3729
        %v3731 = vpop.f32.mrb[0].mxu0
        %v3732 = vpop.f32.mrb[0].mxu0
        %v3733 = vadd.f32 0.0, %v3732
        %v3734 = vpop.f32.mrb[0].mxu0
        %3735 = vdwg.mxu0
        %3736 = vrot.lane.b32.xlu0 %v3126, 64
        %v3737 = vpop.permute.xlu0 %3736
        %3738 = vrot.lane.b32.xlu0 %v3127, 64
        %v3739 = vpop.permute.xlu0 %3738
        %v3741 = vsel %vm1113, %v3737, 0
        %v3744 = vsel %vm1113, %v3739, 0
        %3746 = vmatprep.subr.bf16.mxu0 0
        %3747 = vmatpush1.bf16.xpose.msra.mxu0 %v3744
        %3748 = vmatprep.subr.bf16.mxu0 0
        %3749 = vmatpush1.bf16.xpose.msra.mxu0 0
        %3750 = vmatprep.subr.bf16.mxu0 0
        %3751 = vmatpush1.bf16.xpose.msra.mxu0 0
        %3752 = vmatprep.subr.bf16.mxu0 0
        %3753 = vmatpush1.bf16.xpose.msra.mxu0 0
        %3754 = vmatprep.subr.bf16.mxu0 0
        %3755 = vmatpush1.bf16.xpose.msra.mxu0 0
        %3756 = vmatprep.subr.bf16.mxu0 0
        %3757 = vmatpush1.bf16.xpose.msra.mxu0 0
        %3758 = vmatprep.subr.bf16.mxu0 0
        %3759 = vmatpush1.bf16.xpose.msra.mxu0 0
        %3760 = vmatprep.subr.bf16.mxu0 0
        %3761 = vmatpush1.bf16.xpose.msra.mxu0 0
        %3762 = vmatprep.subr.bf16.mxu0 0
        %3763 = vmatpush1.bf16.xpose.msra.mxu0 0
        %3764 = vmatprep.subr.bf16.mxu0 0
        %3765 = vmatpush1.bf16.xpose.msra.mxu0 0
        %3766 = vmatprep.subr.bf16.mxu0 0
        %3767 = vmatpush1.bf16.xpose.msra.mxu0 0
        %3768 = vmatprep.subr.bf16.mxu0 0
        %3769 = vmatpush1.bf16.xpose.msra.mxu0 0
        %3770 = vmatprep.subr.bf16.mxu0 0
        %3771 = vmatpush1.bf16.xpose.msra.mxu0 0
        %3772 = vmatprep.subr.bf16.mxu0 0
        %3773 = vmatpush1.bf16.xpose.msra.mxu0 0
        %3774 = vmatprep.subr.bf16.mxu0 0
        %3775 = vmatpush1.bf16.xpose.msra.mxu0 0
        %3776 = vmatprep.subr.bf16.mxu0 0
        %3777 = vmatpush1.bf16.xpose.msra.mxu0 0
        %3778 = vmatprep.mubr.bf16.mxu0 0
        %3779 = vmatmul.mubr.bf16.gmra.mrb[0].mxu0 %v3741
        %v3780 = vpop.f32.mrb[0].mxu0
        %v3781 = vadd.f32 0.0, %v3780
        %v3782 = vpop.f32.mrb[0].mxu0
        %v3783 = vpop.f32.mrb[0].mxu0
        %v3784 = vadd.f32 0.0, %v3783
        %v3785 = vpop.f32.mrb[0].mxu0
        %3786 = vdwg.mxu0
        %v3787 = vmul.f32 %v3781, 0.17677669
        %v3788 = vmul.f32 %v3784, 0.17677669
        %v3789 = vsel %vm1163, %v3787, -inf
        %3790 = vmax.xlane.f32.xlu0 %v3789
        %v3791 = vpop.xlane.xlu0 %3790
        %v3792 = vsel %vm1163, %v3788, -inf
        %3793 = vmax.xlane.f32.xlu0 %v3792
        %v3794 = vpop.xlane.xlu0 %3793
        %v3795 = vsub.f32 %v3787, %v3791
        %v3796 = vsub.f32 %v3788, %v3794
        %v3797 = vmul.f32 %v3795, 1.442695
        %v3798 = vpow.pop %v3797
        %v3799 = vmul.f32 %v3796, 1.442695
        %v3800 = vpow.pop %v3799
        %v3801 = vsel %vm1163, %v3798, 0.0
        %3802 = vadd.xlane.f32.xlu0 %v3801
        %v3803 = vpop.xlane.xlu0 %3802
        %v3804 = vsel %vm1163, %v3800, 0.0
        %3805 = vadd.xlane.f32.xlu0 %v3804
        %v3806 = vpop.xlane.xlu0 %3805
        %v3807 = vrcp.pop %v3803
        %v3808 = vmul.f32 %v3798, %v3807
        %v3809 = vrcp.pop %v3806
        %v3810 = vmul.f32 %v3800, %v3809
        %v3811 = vpack.c.bf16 %v3810, %v3808
        %3812 = vrot.lane.b32.xlu0 %v3128, 64
        %v3813 = vpop.permute.xlu0 %3812
        %v3816 = vsel %vm1163, %v3811, 0
        %3818 = vmatprep.subr.bf16.mxu0 0
        %3819 = vmatpush1.bf16.msra.mxu0 %v3813
        %3820 = vmatprep.subr.bf16.mxu0 0
        %3821 = vmatpush1.bf16.msra.mxu0 0
        %3822 = vmatprep.subr.bf16.mxu0 0
        %3823 = vmatpush1.bf16.msra.mxu0 0
        %3824 = vmatprep.subr.bf16.mxu0 0
        %3825 = vmatpush1.bf16.msra.mxu0 0
        %3826 = vmatprep.subr.bf16.mxu0 0
        %3827 = vmatpush1.bf16.msra.mxu0 0
        %3828 = vmatprep.subr.bf16.mxu0 0
        %3829 = vmatpush1.bf16.msra.mxu0 0
        %3830 = vmatprep.subr.bf16.mxu0 0
        %3831 = vmatpush1.bf16.msra.mxu0 0
        %3832 = vmatprep.subr.bf16.mxu0 0
        %3833 = vmatpush1.bf16.msra.mxu0 0
        %3834 = vmatprep.subr.bf16.mxu0 0
        %3835 = vmatpush1.bf16.msra.mxu0 0
        %3836 = vmatprep.subr.bf16.mxu0 0
        %3837 = vmatpush1.bf16.msra.mxu0 0
        %3838 = vmatprep.subr.bf16.mxu0 0
        %3839 = vmatpush1.bf16.msra.mxu0 0
        %3840 = vmatprep.subr.bf16.mxu0 0
        %3841 = vmatpush1.bf16.msra.mxu0 0
        %3842 = vmatprep.subr.bf16.mxu0 0
        %3843 = vmatpush1.bf16.msra.mxu0 0
        %3844 = vmatprep.subr.bf16.mxu0 0
        %3845 = vmatpush1.bf16.msra.mxu0 0
        %3846 = vmatprep.subr.bf16.mxu0 0
        %3847 = vmatpush1.bf16.msra.mxu0 0
        %3848 = vmatprep.subr.bf16.mxu0 0
        %3849 = vmatpush1.bf16.msra.mxu0 0
        %3850 = vmatprep.mubr.bf16.mxu0 0
        %3851 = vmatmul.mubr.bf16.gmra.mrb[0].mxu0 %v3816
        %v3852 = vpop.f32.mrb[0].mxu0
        %v3853 = vadd.f32 0.0, %v3852
        %v3854 = vpop.f32.mrb[0].mxu0
        %v3855 = vpop.f32.mrb[0].mxu0
        %v3856 = vadd.f32 0.0, %v3855
        %v3857 = vpop.f32.mrb[0].mxu0
        %3858 = vdwg.mxu0
        %3859 = vrot.lane.b32.xlu0 %v3123, 32
        %v3860 = vpop.permute.xlu0 %3859
        %3861 = vrot.lane.b32.xlu0 %v3124, 32
        %v3862 = vpop.permute.xlu0 %3861
        %v3864 = vsel %vm1113, %v3860, 0
        %v3867 = vsel %vm1113, %v3862, 0
        %3869 = vmatprep.subr.bf16.mxu0 0
        %3870 = vmatpush1.bf16.xpose.msra.mxu0 %v3867
        %3871 = vmatprep.subr.bf16.mxu0 0
        %3872 = vmatpush1.bf16.xpose.msra.mxu0 0
        %3873 = vmatprep.subr.bf16.mxu0 0
        %3874 = vmatpush1.bf16.xpose.msra.mxu0 0
        %3875 = vmatprep.subr.bf16.mxu0 0
        %3876 = vmatpush1.bf16.xpose.msra.mxu0 0
        %3877 = vmatprep.subr.bf16.mxu0 0
        %3878 = vmatpush1.bf16.xpose.msra.mxu0 0
        %3879 = vmatprep.subr.bf16.mxu0 0
        %3880 = vmatpush1.bf16.xpose.msra.mxu0 0
        %3881 = vmatprep.subr.bf16.mxu0 0
        %3882 = vmatpush1.bf16.xpose.msra.mxu0 0
        %3883 = vmatprep.subr.bf16.mxu0 0
        %3884 = vmatpush1.bf16.xpose.msra.mxu0 0
        %3885 = vmatprep.subr.bf16.mxu0 0
        %3886 = vmatpush1.bf16.xpose.msra.mxu0 0
        %3887 = vmatprep.subr.bf16.mxu0 0
        %3888 = vmatpush1.bf16.xpose.msra.mxu0 0
        %3889 = vmatprep.subr.bf16.mxu0 0
        %3890 = vmatpush1.bf16.xpose.msra.mxu0 0
        %3891 = vmatprep.subr.bf16.mxu0 0
        %3892 = vmatpush1.bf16.xpose.msra.mxu0 0
        %3893 = vmatprep.subr.bf16.mxu0 0
        %3894 = vmatpush1.bf16.xpose.msra.mxu0 0
        %3895 = vmatprep.subr.bf16.mxu0 0
        %3896 = vmatpush1.bf16.xpose.msra.mxu0 0
        %3897 = vmatprep.subr.bf16.mxu0 0
        %3898 = vmatpush1.bf16.xpose.msra.mxu0 0
        %3899 = vmatprep.subr.bf16.mxu0 0
        %3900 = vmatpush1.bf16.xpose.msra.mxu0 0
        %3901 = vmatprep.mubr.bf16.mxu0 0
        %3902 = vmatmul.mubr.bf16.gmra.mrb[0].mxu0 %v3864
        %v3903 = vpop.f32.mrb[0].mxu0
        %v3904 = vadd.f32 0.0, %v3903
        %v3905 = vpop.f32.mrb[0].mxu0
        %v3906 = vpop.f32.mrb[0].mxu0
        %v3907 = vadd.f32 0.0, %v3906
        %v3908 = vpop.f32.mrb[0].mxu0
        %3909 = vdwg.mxu0
        %v3910 = vmul.f32 %v3904, 0.17677669
        %v3911 = vmul.f32 %v3907, 0.17677669
        %v3912 = vsel %vm1163, %v3910, -inf
        %3913 = vmax.xlane.f32.xlu0 %v3912
        %v3914 = vpop.xlane.xlu0 %3913
        %v3915 = vsel %vm1163, %v3911, -inf
        %3916 = vmax.xlane.f32.xlu0 %v3915
        %v3917 = vpop.xlane.xlu0 %3916
        %v3918 = vsub.f32 %v3910, %v3914
        %v3919 = vsub.f32 %v3911, %v3917
        %v3920 = vmul.f32 %v3918, 1.442695
        %v3921 = vpow.pop %v3920
        %v3922 = vmul.f32 %v3919, 1.442695
        %v3923 = vpow.pop %v3922
        %v3924 = vsel %vm1163, %v3921, 0.0
        %3925 = vadd.xlane.f32.xlu0 %v3924
        %v3926 = vpop.xlane.xlu0 %3925
        %v3927 = vsel %vm1163, %v3923, 0.0
        %3928 = vadd.xlane.f32.xlu0 %v3927
        %v3929 = vpop.xlane.xlu0 %3928
        %v3930 = vrcp.pop %v3926
        %v3931 = vmul.f32 %v3921, %v3930
        %v3932 = vrcp.pop %v3929
        %v3933 = vmul.f32 %v3923, %v3932
        %v3934 = vpack.c.bf16 %v3933, %v3931
        %3935 = vrot.lane.b32.xlu0 %v3125, 32
        %v3936 = vpop.permute.xlu0 %3935
        %v3939 = vsel %vm1163, %v3934, 0
        %3941 = vmatprep.subr.bf16.mxu0 0
        %3942 = vmatpush1.bf16.msra.mxu0 %v3936
        %3943 = vmatprep.subr.bf16.mxu0 0
        %3944 = vmatpush1.bf16.msra.mxu0 0
        %3945 = vmatprep.subr.bf16.mxu0 0
        %3946 = vmatpush1.bf16.msra.mxu0 0
        %3947 = vmatprep.subr.bf16.mxu0 0
        %3948 = vmatpush1.bf16.msra.mxu0 0
        %3949 = vmatprep.subr.bf16.mxu0 0
        %3950 = vmatpush1.bf16.msra.mxu0 0
        %3951 = vmatprep.subr.bf16.mxu0 0
        %3952 = vmatpush1.bf16.msra.mxu0 0
        %3953 = vmatprep.subr.bf16.mxu0 0
        %3954 = vmatpush1.bf16.msra.mxu0 0
        %3955 = vmatprep.subr.bf16.mxu0 0
        %3956 = vmatpush1.bf16.msra.mxu0 0
        %3957 = vmatprep.subr.bf16.mxu0 0
        %3958 = vmatpush1.bf16.msra.mxu0 0
        %3959 = vmatprep.subr.bf16.mxu0 0
        %3960 = vmatpush1.bf16.msra.mxu0 0
        %3961 = vmatprep.subr.bf16.mxu0 0
        %3962 = vmatpush1.bf16.msra.mxu0 0
        %3963 = vmatprep.subr.bf16.mxu0 0
        %3964 = vmatpush1.bf16.msra.mxu0 0
        %3965 = vmatprep.subr.bf16.mxu0 0
        %3966 = vmatpush1.bf16.msra.mxu0 0
        %3967 = vmatprep.subr.bf16.mxu0 0
        %3968 = vmatpush1.bf16.msra.mxu0 0
        %3969 = vmatprep.subr.bf16.mxu0 0
        %3970 = vmatpush1.bf16.msra.mxu0 0
        %3971 = vmatprep.subr.bf16.mxu0 0
        %3972 = vmatpush1.bf16.msra.mxu0 0
        %3973 = vmatprep.mubr.bf16.mxu0 0
        %3974 = vmatmul.mubr.bf16.gmra.mrb[0].mxu0 %v3939
        %v3975 = vpop.f32.mrb[0].mxu0
        %v3976 = vadd.f32 0.0, %v3975
        %v3977 = vpop.f32.mrb[0].mxu0
        %v3978 = vpop.f32.mrb[0].mxu0
        %v3979 = vadd.f32 0.0, %v3978
        %v3980 = vpop.f32.mrb[0].mxu0
        %3981 = vdwg.mxu0
        %3982 = vrot.lane.b32.xlu0 %v3126, 32
        %v3983 = vpop.permute.xlu0 %3982
        %3984 = vrot.lane.b32.xlu0 %v3127, 32
        %v3985 = vpop.permute.xlu0 %3984
        %v3987 = vsel %vm1113, %v3983, 0
        %v3990 = vsel %vm1113, %v3985, 0
        %3992 = vmatprep.subr.bf16.mxu0 0
        %3993 = vmatpush1.bf16.xpose.msra.mxu0 %v3990
        %3994 = vmatprep.subr.bf16.mxu0 0
        %3995 = vmatpush1.bf16.xpose.msra.mxu0 0
        %3996 = vmatprep.subr.bf16.mxu0 0
        %3997 = vmatpush1.bf16.xpose.msra.mxu0 0
        %3998 = vmatprep.subr.bf16.mxu0 0
        %3999 = vmatpush1.bf16.xpose.msra.mxu0 0
        %4000 = vmatprep.subr.bf16.mxu0 0
        %4001 = vmatpush1.bf16.xpose.msra.mxu0 0
        %4002 = vmatprep.subr.bf16.mxu0 0
        %4003 = vmatpush1.bf16.xpose.msra.mxu0 0
        %4004 = vmatprep.subr.bf16.mxu0 0
        %4005 = vmatpush1.bf16.xpose.msra.mxu0 0
        %4006 = vmatprep.subr.bf16.mxu0 0
        %4007 = vmatpush1.bf16.xpose.msra.mxu0 0
        %4008 = vmatprep.subr.bf16.mxu0 0
        %4009 = vmatpush1.bf16.xpose.msra.mxu0 0
        %4010 = vmatprep.subr.bf16.mxu0 0
        %4011 = vmatpush1.bf16.xpose.msra.mxu0 0
        %4012 = vmatprep.subr.bf16.mxu0 0
        %4013 = vmatpush1.bf16.xpose.msra.mxu0 0
        %4014 = vmatprep.subr.bf16.mxu0 0
        %4015 = vmatpush1.bf16.xpose.msra.mxu0 0
        %4016 = vmatprep.subr.bf16.mxu0 0
        %4017 = vmatpush1.bf16.xpose.msra.mxu0 0
        %4018 = vmatprep.subr.bf16.mxu0 0
        %4019 = vmatpush1.bf16.xpose.msra.mxu0 0
        %4020 = vmatprep.subr.bf16.mxu0 0
        %4021 = vmatpush1.bf16.xpose.msra.mxu0 0
        %4022 = vmatprep.subr.bf16.mxu0 0
        %4023 = vmatpush1.bf16.xpose.msra.mxu0 0
        %4024 = vmatprep.mubr.bf16.mxu0 0
        %4025 = vmatmul.mubr.bf16.gmra.mrb[0].mxu0 %v3987
        %v4026 = vpop.f32.mrb[0].mxu0
        %v4027 = vadd.f32 0.0, %v4026
        %v4028 = vpop.f32.mrb[0].mxu0
        %v4029 = vpop.f32.mrb[0].mxu0
        %v4030 = vadd.f32 0.0, %v4029
        %v4031 = vpop.f32.mrb[0].mxu0
        %4032 = vdwg.mxu0
        %v4033 = vmul.f32 %v4027, 0.17677669
        %v4034 = vmul.f32 %v4030, 0.17677669
        %v4035 = vsel %vm1163, %v4033, -inf
        %4036 = vmax.xlane.f32.xlu0 %v4035
        %v4037 = vpop.xlane.xlu0 %4036
        %v4038 = vsel %vm1163, %v4034, -inf
        %4039 = vmax.xlane.f32.xlu0 %v4038
        %v4040 = vpop.xlane.xlu0 %4039
        %v4041 = vsub.f32 %v4033, %v4037
        %v4042 = vsub.f32 %v4034, %v4040
        %v4043 = vmul.f32 %v4041, 1.442695
        %v4044 = vpow.pop %v4043
        %v4045 = vmul.f32 %v4042, 1.442695
        %v4046 = vpow.pop %v4045
        %v4047 = vsel %vm1163, %v4044, 0.0
        %4048 = vadd.xlane.f32.xlu0 %v4047
        %v4049 = vpop.xlane.xlu0 %4048
        %v4050 = vsel %vm1163, %v4046, 0.0
        %4051 = vadd.xlane.f32.xlu0 %v4050
        %v4052 = vpop.xlane.xlu0 %4051
        %v4053 = vrcp.pop %v4049
        %v4054 = vmul.f32 %v4044, %v4053
        %v4055 = vrcp.pop %v4052
        %v4056 = vmul.f32 %v4046, %v4055
        %v4057 = vpack.c.bf16 %v4056, %v4054
        %4058 = vrot.lane.b32.xlu0 %v3128, 32
        %v4059 = vpop.permute.xlu0 %4058
        %v4062 = vsel %vm1163, %v4057, 0
        %4064 = vmatprep.subr.bf16.mxu0 0
        %4065 = vmatpush1.bf16.msra.mxu0 %v4059
        %4066 = vmatprep.subr.bf16.mxu0 0
        %4067 = vmatpush1.bf16.msra.mxu0 0
        %4068 = vmatprep.subr.bf16.mxu0 0
        %4069 = vmatpush1.bf16.msra.mxu0 0
        %4070 = vmatprep.subr.bf16.mxu0 0
        %4071 = vmatpush1.bf16.msra.mxu0 0
        %4072 = vmatprep.subr.bf16.mxu0 0
        %4073 = vmatpush1.bf16.msra.mxu0 0
        %4074 = vmatprep.subr.bf16.mxu0 0
        %4075 = vmatpush1.bf16.msra.mxu0 0
        %4076 = vmatprep.subr.bf16.mxu0 0
        %4077 = vmatpush1.bf16.msra.mxu0 0
        %4078 = vmatprep.subr.bf16.mxu0 0
        %4079 = vmatpush1.bf16.msra.mxu0 0
        %4080 = vmatprep.subr.bf16.mxu0 0
        %4081 = vmatpush1.bf16.msra.mxu0 0
        %4082 = vmatprep.subr.bf16.mxu0 0
        %4083 = vmatpush1.bf16.msra.mxu0 0
        %4084 = vmatprep.subr.bf16.mxu0 0
        %4085 = vmatpush1.bf16.msra.mxu0 0
        %4086 = vmatprep.subr.bf16.mxu0 0
        %4087 = vmatpush1.bf16.msra.mxu0 0
        %4088 = vmatprep.subr.bf16.mxu0 0
        %4089 = vmatpush1.bf16.msra.mxu0 0
        %4090 = vmatprep.subr.bf16.mxu0 0
        %4091 = vmatpush1.bf16.msra.mxu0 0
        %4092 = vmatprep.subr.bf16.mxu0 0
        %4093 = vmatpush1.bf16.msra.mxu0 0
        %4094 = vmatprep.subr.bf16.mxu0 0
        %4095 = vmatpush1.bf16.msra.mxu0 0
        %4096 = vmatprep.mubr.bf16.mxu0 0
        %4097 = vmatmul.mubr.bf16.gmra.mrb[0].mxu0 %v4062
        %v4098 = vpop.f32.mrb[0].mxu0
        %v4099 = vadd.f32 0.0, %v4098
        %v4100 = vpop.f32.mrb[0].mxu0
        %v4101 = vpop.f32.mrb[0].mxu0
        %v4102 = vadd.f32 0.0, %v4101
        %v4103 = vpop.f32.mrb[0].mxu0
        %4104 = vdwg.mxu0
        %4109 = vrot.lane.b32.xlu0 %v3481, 32
        %v4110 = vpop.permute.xlu0 %4109
        %4111 = vrot.lane.b32.xlu0 %v3484, 32
        %v4112 = vpop.permute.xlu0 %4111
        %4113 = vrot.lane.b32.xlu0 %v3607, 32
        %v4114 = vpop.permute.xlu0 %4113
        %4115 = vrot.lane.b32.xlu0 %v3610, 32
        %v4116 = vpop.permute.xlu0 %4115
        %4125 = vrot.lane.b32.xlu0 %v3730, 64
        %v4126 = vpop.permute.xlu0 %4125
        %4127 = vrot.lane.b32.xlu0 %v3733, 64
        %v4128 = vpop.permute.xlu0 %4127
        %4129 = vrot.lane.b32.xlu0 %v3853, 64
        %v4130 = vpop.permute.xlu0 %4129
        %4131 = vrot.lane.b32.xlu0 %v3856, 64
        %v4132 = vpop.permute.xlu0 %4131
        %4141 = vrot.lane.b32.xlu0 %v3976, 96
        %v4142 = vpop.permute.xlu0 %4141
        %4143 = vrot.lane.b32.xlu0 %v3979, 96
        %v4144 = vpop.permute.xlu0 %4143
        %4145 = vrot.lane.b32.xlu0 %v4099, 96
        %v4146 = vpop.permute.xlu0 %4145
        %4147 = vrot.lane.b32.xlu0 %v4102, 96
        %v4148 = vpop.permute.xlu0 %4147
        %v4153 = vsel %vm1113, %v3239, %v4110
        %v4154 = vsel %vm1113, %v3242, %v4112
        %v4155 = vsel %vm1113, %v3355, %v4114
        %v4156 = vsel %vm1113, %v3358, %v4116
        %v4157 = vsel %vm2143, %v4153, %v4126
        %v4158 = vsel %vm2143, %v4154, %v4128
        %v4159 = vsel %vm2143, %v4155, %v4130
        %v4160 = vsel %vm2143, %v4156, %v4132
        %v4161 = vsel %vm2148, %v4157, %v4142
        %v4162 = vsel %vm2148, %v4158, %v4144
        %v4163 = vsel %vm2148, %v4159, %v4146
        %v4164 = vsel %vm2148, %v4160, %v4148
        %v4165 = vpack.c.bf16 %v4162, %v4161
        %v4166 = vpack.c.bf16 %v4164, %v4163
        %s4167 = scalar_lea.vmem %s7, 64
        %v4168 = vld [vmem:[%s4167] sm:$0xf]
        %v4169 = vld [vmem:[%s4167 + $0x4] sm:$0xf]
        %v4170 = vld [vmem:[%s4167 + $0x8] sm:$0xf]
        %v4171 = vld [vmem:[%s4167 + $0xc] sm:$0xf]
        %v4172 = vld [vmem:[%s4167 + $0x10] sm:$0xf]
        %v4173 = vld [vmem:[%s4167 + $0x14] sm:$0xf]
        %v4174 = vld [vmem:[%s4167 + $0x18] sm:$0xf]
        %v4175 = vld [vmem:[%s4167 + $0x1c] sm:$0xf]
        %v4176 = vld [vmem:[%s4167 + $0x20] sm:$0xf]
        %v4177 = vld [vmem:[%s4167 + $0x24] sm:$0xf]
        %v4178 = vld [vmem:[%s4167 + $0x28] sm:$0xf]
        %v4179 = vld [vmem:[%s4167 + $0x2c] sm:$0xf]
        %v4180 = vld [vmem:[%s4167 + $0x30] sm:$0xf]
        %v4181 = vld [vmem:[%s4167 + $0x34] sm:$0xf]
        %v4182 = vld [vmem:[%s4167 + $0x38] sm:$0xf]
        %v4183 = vld [vmem:[%s4167 + $0x3c] sm:$0xf]
        %s4184 = scalar_lea.vmem %s8, 1
        %v4185 = vld [vmem:[%s4184] sm:$0x1]
        %v4187 = vlaneseq
        %v4188 = vshrl.u32 %v4187, 7
        %v4189 = vsub.s32 0, %v4188
        %v4190 = vrot.slane %v4185, %v4189
        %v4208 = vunpack.c.l.b16 %v4168
        %v4209 = vunpack.c.l.b16 %v4169
        %v4210 = vunpack.c.l.b16 %v4170
        %v4211 = vunpack.c.l.b16 %v4171
        %v4212 = vunpack.c.l.b16 %v4172
        %v4213 = vunpack.c.l.b16 %v4173
        %v4214 = vunpack.c.l.b16 %v4174
        %v4215 = vunpack.c.l.b16 %v4175
        %v4216 = vunpack.c.l.b16 %v4176
        %v4217 = vunpack.c.l.b16 %v4177
        %v4218 = vunpack.c.l.b16 %v4178
        %v4219 = vunpack.c.l.b16 %v4179
        %v4220 = vunpack.c.l.b16 %v4180
        %v4221 = vunpack.c.l.b16 %v4181
        %v4222 = vunpack.c.l.b16 %v4182
        %v4223 = vunpack.c.l.b16 %v4183
        %v4224 = vpack.c.b16 %v4209, %v4208
        %v4225 = vpack.c.b16 %v4211, %v4210
        %v4226 = vpack.c.b16 %v4213, %v4212
        %v4227 = vpack.c.b16 %v4215, %v4214
        %v4228 = vpack.c.b16 %v4217, %v4216
        %v4229 = vpack.c.b16 %v4219, %v4218
        %v4230 = vpack.c.b16 %v4221, %v4220
        %v4231 = vpack.c.b16 %v4223, %v4222
        %4240 = vmatprep.subr.bf16.mxu0 0
        %4241 = vmatpush1.bf16.msra.mxu0 %v4224
        %4242 = vmatprep.subr.bf16.mxu0 0
        %4243 = vmatpush1.bf16.msra.mxu0 %v4225
        %4244 = vmatprep.subr.bf16.mxu0 0
        %4245 = vmatpush1.bf16.msra.mxu0 %v4226
        %4246 = vmatprep.subr.bf16.mxu0 0
        %4247 = vmatpush1.bf16.msra.mxu0 %v4227
        %4248 = vmatprep.subr.bf16.mxu0 0
        %4249 = vmatpush1.bf16.msra.mxu0 %v4228
        %4250 = vmatprep.subr.bf16.mxu0 0
        %4251 = vmatpush1.bf16.msra.mxu0 %v4229
        %4252 = vmatprep.subr.bf16.mxu0 0
        %4253 = vmatpush1.bf16.msra.mxu0 %v4230
        %4254 = vmatprep.subr.bf16.mxu0 0
        %4255 = vmatpush1.bf16.msra.mxu0 %v4231
        %4256 = vmatprep.subr.bf16.mxu0 0
        %4257 = vmatpush1.bf16.msra.mxu0 0
        %4258 = vmatprep.subr.bf16.mxu0 0
        %4259 = vmatpush1.bf16.msra.mxu0 0
        %4260 = vmatprep.subr.bf16.mxu0 0
        %4261 = vmatpush1.bf16.msra.mxu0 0
        %4262 = vmatprep.subr.bf16.mxu0 0
        %4263 = vmatpush1.bf16.msra.mxu0 0
        %4264 = vmatprep.subr.bf16.mxu0 0
        %4265 = vmatpush1.bf16.msra.mxu0 0
        %4266 = vmatprep.subr.bf16.mxu0 0
        %4267 = vmatpush1.bf16.msra.mxu0 0
        %4268 = vmatprep.subr.bf16.mxu0 0
        %4269 = vmatpush1.bf16.msra.mxu0 0
        %4270 = vmatprep.subr.bf16.mxu0 0
        %4271 = vmatpush1.bf16.msra.mxu0 0
        %4272 = vmatprep.mubr.bf16.mxu0 0
        %4273 = vmatmul.mubr.bf16.gmra.mrb[0].mxu0 %v4165
        %v4274 = vpop.f32.mrb[0].mxu0
        %v4275 = vadd.f32 %v4190, %v4274
        %v4276 = vpop.f32.mrb[0].mxu0
        %v4277 = vpop.f32.mrb[0].mxu0
        %v4278 = vadd.f32 %v4190, %v4277
        %v4279 = vpop.f32.mrb[0].mxu0
        %4280 = vmatprep.mubr.bf16.mxu0 0
        %4281 = vmatmul.mubr.bf16.gmra.mrb[0].mxu0 %v4166
        %v4282 = vpop.f32.mrb[0].mxu0
        %v4283 = vadd.f32 %v4190, %v4282
        %v4284 = vpop.f32.mrb[0].mxu0
        %v4285 = vpop.f32.mrb[0].mxu0
        %v4286 = vadd.f32 %v4190, %v4285
        %v4287 = vpop.f32.mrb[0].mxu0
        %4288 = vdwg.mxu0
        %v4289 = vadd.f32 %v2768, %v4275
        %v4290 = vadd.f32 %v2769, %v4278
        %v4291 = vadd.f32 %v2770, %v4283
        %v4292 = vadd.f32 %v2771, %v4286
        %s4293 = scalar_lea.vmem %s9, 1
        %v4294 = vld [vmem:[%s4293] sm:$0x1]
        %s4295 = scalar_lea.vmem %s10, 1
        %v4296 = vld [vmem:[%s4295] sm:$0x1]
        %4297 = vadd.xlane.f32.xlu0 %v4289
        %v4298 = vpop.xlane.xlu0 %4297
        %4299 = vadd.xlane.f32.xlu0 %v4290
        %v4300 = vpop.xlane.xlu0 %4299
        %4301 = vadd.xlane.f32.xlu0 %v4291
        %v4302 = vpop.xlane.xlu0 %4301
        %4303 = vadd.xlane.f32.xlu0 %v4292
        %v4304 = vpop.xlane.xlu0 %4303
        %v4305 = vmul.f32 %v4298, %v769
        %v4306 = vmul.f32 %v4300, %v769
        %v4307 = vmul.f32 %v4302, %v769
        %v4308 = vmul.f32 %v4304, %v769
        %v4309 = vsub.f32 %v4289, %v4305
        %v4310 = vsub.f32 %v4290, %v4306
        %v4311 = vsub.f32 %v4291, %v4307
        %v4312 = vsub.f32 %v4292, %v4308
        %v4313 = vmul.f32 %v4309, %v4309
        %v4314 = vmul.f32 %v4310, %v4310
        %v4315 = vmul.f32 %v4311, %v4311
        %v4316 = vmul.f32 %v4312, %v4312
        %4317 = vadd.xlane.f32.xlu0 %v4313
        %v4318 = vpop.xlane.xlu0 %4317
        %4319 = vadd.xlane.f32.xlu0 %v4314
        %v4320 = vpop.xlane.xlu0 %4319
        %4321 = vadd.xlane.f32.xlu0 %v4315
        %v4322 = vpop.xlane.xlu0 %4321
        %4323 = vadd.xlane.f32.xlu0 %v4316
        %v4324 = vpop.xlane.xlu0 %4323
        %v4325 = vmul.f32 %v4318, %v769
        %v4326 = vmul.f32 %v4320, %v769
        %v4327 = vmul.f32 %v4322, %v769
        %v4328 = vmul.f32 %v4324, %v769
        %v4329 = vadd.f32 %v4325, 1e-06
        %v4330 = vadd.f32 %v4326, 1e-06
        %v4331 = vadd.f32 %v4327, 1e-06
        %v4332 = vadd.f32 %v4328, 1e-06
        %v4333 = vrsqrt.pop %v4329
        %v4334 = vrsqrt.pop %v4330
        %v4335 = vrsqrt.pop %v4331
        %v4336 = vrsqrt.pop %v4332
        %v4337 = vmul.f32 %v4309, %v4333
        %v4338 = vmul.f32 %v4310, %v4334
        %v4339 = vmul.f32 %v4311, %v4335
        %v4340 = vmul.f32 %v4312, %v4336
        %v4342 = vlaneseq
        %v4343 = vshrl.u32 %v4342, 7
        %v4344 = vsub.s32 0, %v4343
        %v4345 = vrot.slane %v4294, %v4344
        %v4347 = vmul.f32 %v4337, %v4345
        %v4348 = vmul.f32 %v4338, %v4345
        %v4349 = vmul.f32 %v4339, %v4345
        %v4350 = vmul.f32 %v4340, %v4345
        %v4352 = vlaneseq
        %v4353 = vshrl.u32 %v4352, 7
        %v4354 = vsub.s32 0, %v4353
        %v4355 = vrot.slane %v4296, %v4354
        %v4357 = vadd.f32 %v4347, %v4355
        %v4358 = vadd.f32 %v4348, %v4355
        %v4359 = vadd.f32 %v4349, %v4355
        %v4360 = vadd.f32 %v4350, %v4355
        %v4361 = vpack.c.bf16 %v4358, %v4357
        %v4362 = vpack.c.bf16 %v4360, %v4359
        %s4363 = scalar_lea.vmem %s11, 128
        %v4364 = vld [vmem:[%s4363] sm:$0xff]
        %v4365 = vld [vmem:[%s4363 + $0x8] sm:$0xff]
        %v4366 = vld [vmem:[%s4363 + $0x10] sm:$0xff]
        %v4367 = vld [vmem:[%s4363 + $0x18] sm:$0xff]
        %v4368 = vld [vmem:[%s4363 + $0x20] sm:$0xff]
        %v4369 = vld [vmem:[%s4363 + $0x28] sm:$0xff]
        %v4370 = vld [vmem:[%s4363 + $0x30] sm:$0xff]
        %v4371 = vld [vmem:[%s4363 + $0x38] sm:$0xff]
        %v4372 = vld [vmem:[%s4363 + $0x40] sm:$0xff]
        %v4373 = vld [vmem:[%s4363 + $0x48] sm:$0xff]
        %v4374 = vld [vmem:[%s4363 + $0x50] sm:$0xff]
        %v4375 = vld [vmem:[%s4363 + $0x58] sm:$0xff]
        %v4376 = vld [vmem:[%s4363 + $0x60] sm:$0xff]
        %v4377 = vld [vmem:[%s4363 + $0x68] sm:$0xff]
        %v4378 = vld [vmem:[%s4363 + $0x70] sm:$0xff]
        %v4379 = vld [vmem:[%s4363 + $0x78] sm:$0xff]
        %s4380 = scalar_lea.vmem %s12, 2
        %v4381 = vld [vmem:[%s4380] sm:$0x3]
        %v4383 = vlaneseq
        %v4384 = vshrl.u32 %v4383, 7
        %v4385 = vsub.s32 0, %v4384
        %v4386 = vrot.slane %v4381, %v4385
        %v4387 = vlaneseq
        %v4388 = vshrl.u32 %v4387, 7
        %v4389 = vsub.s32 1, %v4388
        %v4390 = vrot.slane %v4381, %v4389
        %v4409 = vunpack.c.l.b16 %v4364
        %v4410 = vunpack.c.h.b16 %v4364
        %v4411 = vunpack.c.l.b16 %v4365
        %v4412 = vunpack.c.h.b16 %v4365
        %v4413 = vunpack.c.l.b16 %v4366
        %v4414 = vunpack.c.h.b16 %v4366
        %v4415 = vunpack.c.l.b16 %v4367
        %v4416 = vunpack.c.h.b16 %v4367
        %v4417 = vunpack.c.l.b16 %v4368
        %v4418 = vunpack.c.h.b16 %v4368
        %v4419 = vunpack.c.l.b16 %v4369
        %v4420 = vunpack.c.h.b16 %v4369
        %v4421 = vunpack.c.l.b16 %v4370
        %v4422 = vunpack.c.h.b16 %v4370
        %v4423 = vunpack.c.l.b16 %v4371
        %v4424 = vunpack.c.h.b16 %v4371
        %v4425 = vunpack.c.l.b16 %v4372
        %v4426 = vunpack.c.h.b16 %v4372
        %v4427 = vunpack.c.l.b16 %v4373
        %v4428 = vunpack.c.h.b16 %v4373
        %v4429 = vunpack.c.l.b16 %v4374
        %v4430 = vunpack.c.h.b16 %v4374
        %v4431 = vunpack.c.l.b16 %v4375
        %v4432 = vunpack.c.h.b16 %v4375
        %v4433 = vunpack.c.l.b16 %v4376
        %v4434 = vunpack.c.h.b16 %v4376
        %v4435 = vunpack.c.l.b16 %v4377
        %v4436 = vunpack.c.h.b16 %v4377
        %v4437 = vunpack.c.l.b16 %v4378
        %v4438 = vunpack.c.h.b16 %v4378
        %v4439 = vunpack.c.l.b16 %v4379
        %v4440 = vunpack.c.h.b16 %v4379
        %v4441 = vpack.c.b16 %v4411, %v4409
        %v4442 = vpack.c.b16 %v4412, %v4410
        %v4443 = vpack.c.b16 %v4415, %v4413
        %v4444 = vpack.c.b16 %v4416, %v4414
        %v4445 = vpack.c.b16 %v4419, %v4417
        %v4446 = vpack.c.b16 %v4420, %v4418
        %v4447 = vpack.c.b16 %v4423, %v4421
        %v4448 = vpack.c.b16 %v4424, %v4422
        %v4449 = vpack.c.b16 %v4427, %v4425
        %v4450 = vpack.c.b16 %v4428, %v4426
        %v4451 = vpack.c.b16 %v4431, %v4429
        %v4452 = vpack.c.b16 %v4432, %v4430
        %v4453 = vpack.c.b16 %v4435, %v4433
        %v4454 = vpack.c.b16 %v4436, %v4434
        %v4455 = vpack.c.b16 %v4439, %v4437
        %v4456 = vpack.c.b16 %v4440, %v4438
        %4473 = vmatprep.subr.bf16.mxu0 %v4442
        %4474 = vmatpush1.bf16.msra.mxu0 %v4441
        %4475 = vmatprep.subr.bf16.mxu0 %v4444
        %4476 = vmatpush1.bf16.msra.mxu0 %v4443
        %4477 = vmatprep.subr.bf16.mxu0 %v4446
        %4478 = vmatpush1.bf16.msra.mxu0 %v4445
        %4479 = vmatprep.subr.bf16.mxu0 %v4448
        %4480 = vmatpush1.bf16.msra.mxu0 %v4447
        %4481 = vmatprep.subr.bf16.mxu0 %v4450
        %4482 = vmatpush1.bf16.msra.mxu0 %v4449
        %4483 = vmatprep.subr.bf16.mxu0 %v4452
        %4484 = vmatpush1.bf16.msra.mxu0 %v4451
        %4485 = vmatprep.subr.bf16.mxu0 %v4454
        %4486 = vmatpush1.bf16.msra.mxu0 %v4453
        %4487 = vmatprep.subr.bf16.mxu0 %v4456
        %4488 = vmatpush1.bf16.msra.mxu0 %v4455
        %4489 = vmatprep.subr.bf16.mxu0 0
        %4490 = vmatpush1.bf16.msra.mxu0 0
        %4491 = vmatprep.subr.bf16.mxu0 0
        %4492 = vmatpush1.bf16.msra.mxu0 0
        %4493 = vmatprep.subr.bf16.mxu0 0
        %4494 = vmatpush1.bf16.msra.mxu0 0
        %4495 = vmatprep.subr.bf16.mxu0 0
        %4496 = vmatpush1.bf16.msra.mxu0 0
        %4497 = vmatprep.subr.bf16.mxu0 0
        %4498 = vmatpush1.bf16.msra.mxu0 0
        %4499 = vmatprep.subr.bf16.mxu0 0
        %4500 = vmatpush1.bf16.msra.mxu0 0
        %4501 = vmatprep.subr.bf16.mxu0 0
        %4502 = vmatpush1.bf16.msra.mxu0 0
        %4503 = vmatprep.subr.bf16.mxu0 0
        %4504 = vmatpush1.bf16.msra.mxu0 0
        %4505 = vmatprep.mubr.bf16.mxu0 0
        %4506 = vmatmul.mubr.bf16.gmra.mrb[0].mxu0 %v4361
        %v4507 = vpop.f32.mrb[0].mxu0
        %v4508 = vadd.f32 %v4386, %v4507
        %v4509 = vpop.f32.mrb[0].mxu0
        %v4510 = vadd.f32 %v4390, %v4509
        %v4511 = vpop.f32.mrb[0].mxu0
        %v4512 = vadd.f32 %v4386, %v4511
        %v4513 = vpop.f32.mrb[0].mxu0
        %v4514 = vadd.f32 %v4390, %v4513
        %4515 = vmatprep.mubr.bf16.mxu0 0
        %4516 = vmatmul.mubr.bf16.gmra.mrb[0].mxu0 %v4362
        %v4517 = vpop.f32.mrb[0].mxu0
        %v4518 = vadd.f32 %v4386, %v4517
        %v4519 = vpop.f32.mrb[0].mxu0
        %v4520 = vadd.f32 %v4390, %v4519
        %v4521 = vpop.f32.mrb[0].mxu0
        %v4522 = vadd.f32 %v4386, %v4521
        %v4523 = vpop.f32.mrb[0].mxu0
        %v4524 = vadd.f32 %v4390, %v4523
        %4525 = vdwg.mxu0
        %v4526 = vmul.f32 %v4508, 0.5
        %v4527 = vmul.f32 %v4510, 0.5
        %v4528 = vmul.f32 %v4512, 0.5
        %v4529 = vmul.f32 %v4514, 0.5
        %v4530 = vmul.f32 %v4518, 0.5
        %v4531 = vmul.f32 %v4520, 0.5
        %v4532 = vmul.f32 %v4522, 0.5
        %v4533 = vmul.f32 %v4524, 0.5
        %v4534 = vmul.f32 %v4508, 0.044715
        %v4535 = vmul.f32 %v4510, 0.044715
        %v4536 = vmul.f32 %v4512, 0.044715
        %v4537 = vmul.f32 %v4514, 0.044715
        %v4538 = vmul.f32 %v4518, 0.044715
        %v4539 = vmul.f32 %v4520, 0.044715
        %v4540 = vmul.f32 %v4522, 0.044715
        %v4541 = vmul.f32 %v4524, 0.044715
        %v4542 = vmul.f32 %v4534, %v4508
        %v4543 = vmul.f32 %v4535, %v4510
        %v4544 = vmul.f32 %v4536, %v4512
        %v4545 = vmul.f32 %v4537, %v4514
        %v4546 = vmul.f32 %v4538, %v4518
        %v4547 = vmul.f32 %v4539, %v4520
        %v4548 = vmul.f32 %v4540, %v4522
        %v4549 = vmul.f32 %v4541, %v4524
        %v4550 = vmul.f32 %v4542, %v4508
        %v4551 = vmul.f32 %v4543, %v4510
        %v4552 = vmul.f32 %v4544, %v4512
        %v4553 = vmul.f32 %v4545, %v4514
        %v4554 = vmul.f32 %v4546, %v4518
        %v4555 = vmul.f32 %v4547, %v4520
        %v4556 = vmul.f32 %v4548, %v4522
        %v4557 = vmul.f32 %v4549, %v4524
        %v4558 = vadd.f32 %v4508, %v4550
        %v4559 = vadd.f32 %v4510, %v4551
        %v4560 = vadd.f32 %v4512, %v4552
        %v4561 = vadd.f32 %v4514, %v4553
        %v4562 = vadd.f32 %v4518, %v4554
        %v4563 = vadd.f32 %v4520, %v4555
        %v4564 = vadd.f32 %v4522, %v4556
        %v4565 = vadd.f32 %v4524, %v4557
        %v4566 = vmul.f32 %v4558, 0.7978846
        %v4567 = vmul.f32 %v4559, 0.7978846
        %v4568 = vmul.f32 %v4560, 0.7978846
        %v4569 = vmul.f32 %v4561, 0.7978846
        %v4570 = vmul.f32 %v4562, 0.7978846
        %v4571 = vmul.f32 %v4563, 0.7978846
        %v4572 = vmul.f32 %v4564, 0.7978846
        %v4573 = vmul.f32 %v4565, 0.7978846
        %v4574 = vtanh.pop %v4566
        %v4575 = vtanh.pop %v4567
        %v4576 = vtanh.pop %v4568
        %v4577 = vtanh.pop %v4569
        %v4578 = vtanh.pop %v4570
        %v4579 = vtanh.pop %v4571
        %v4580 = vtanh.pop %v4572
        %v4581 = vtanh.pop %v4573
        %v4582 = vadd.f32 %v4574, 1.0
        %v4583 = vadd.f32 %v4575, 1.0
        %v4584 = vadd.f32 %v4576, 1.0
        %v4585 = vadd.f32 %v4577, 1.0
        %v4586 = vadd.f32 %v4578, 1.0
        %v4587 = vadd.f32 %v4579, 1.0
        %v4588 = vadd.f32 %v4580, 1.0
        %v4589 = vadd.f32 %v4581, 1.0
        %v4590 = vmul.f32 %v4526, %v4582
        %v4591 = vmul.f32 %v4527, %v4583
        %v4592 = vmul.f32 %v4528, %v4584
        %v4593 = vmul.f32 %v4529, %v4585
        %v4594 = vmul.f32 %v4530, %v4586
        %v4595 = vmul.f32 %v4531, %v4587
        %v4596 = vmul.f32 %v4532, %v4588
        %v4597 = vmul.f32 %v4533, %v4589
        %v4598 = vpack.c.bf16 %v4592, %v4590
        %v4599 = vpack.c.bf16 %v4593, %v4591
        %v4600 = vpack.c.bf16 %v4596, %v4594
        %v4601 = vpack.c.bf16 %v4597, %v4595
        %s4602 = scalar_lea.vmem %s13, 128
        %v4603 = vld [vmem:[%s4602] sm:$0xf]
        %v4604 = vld [vmem:[%s4602 + $0x4] sm:$0xf]
        %v4605 = vld [vmem:[%s4602 + $0x8] sm:$0xf]
        %v4606 = vld [vmem:[%s4602 + $0xc] sm:$0xf]
        %v4607 = vld [vmem:[%s4602 + $0x10] sm:$0xf]
        %v4608 = vld [vmem:[%s4602 + $0x14] sm:$0xf]
        %v4609 = vld [vmem:[%s4602 + $0x18] sm:$0xf]
        %v4610 = vld [vmem:[%s4602 + $0x1c] sm:$0xf]
        %v4611 = vld [vmem:[%s4602 + $0x20] sm:$0xf]
        %v4612 = vld [vmem:[%s4602 + $0x24] sm:$0xf]
        %v4613 = vld [vmem:[%s4602 + $0x28] sm:$0xf]
        %v4614 = vld [vmem:[%s4602 + $0x2c] sm:$0xf]
        %v4615 = vld [vmem:[%s4602 + $0x30] sm:$0xf]
        %v4616 = vld [vmem:[%s4602 + $0x34] sm:$0xf]
        %v4617 = vld [vmem:[%s4602 + $0x38] sm:$0xf]
        %v4618 = vld [vmem:[%s4602 + $0x3c] sm:$0xf]
        %v4619 = vld [vmem:[%s4602 + $0x40] sm:$0xf]
        %v4620 = vld [vmem:[%s4602 + $0x44] sm:$0xf]
        %v4621 = vld [vmem:[%s4602 + $0x48] sm:$0xf]
        %v4622 = vld [vmem:[%s4602 + $0x4c] sm:$0xf]
        %v4623 = vld [vmem:[%s4602 + $0x50] sm:$0xf]
        %v4624 = vld [vmem:[%s4602 + $0x54] sm:$0xf]
        %v4625 = vld [vmem:[%s4602 + $0x58] sm:$0xf]
        %v4626 = vld [vmem:[%s4602 + $0x5c] sm:$0xf]
        %v4627 = vld [vmem:[%s4602 + $0x60] sm:$0xf]
        %v4628 = vld [vmem:[%s4602 + $0x64] sm:$0xf]
        %v4629 = vld [vmem:[%s4602 + $0x68] sm:$0xf]
        %v4630 = vld [vmem:[%s4602 + $0x6c] sm:$0xf]
        %v4631 = vld [vmem:[%s4602 + $0x70] sm:$0xf]
        %v4632 = vld [vmem:[%s4602 + $0x74] sm:$0xf]
        %v4633 = vld [vmem:[%s4602 + $0x78] sm:$0xf]
        %v4634 = vld [vmem:[%s4602 + $0x7c] sm:$0xf]
        %s4635 = scalar_lea.vmem %s14, 1
        %v4636 = vld [vmem:[%s4635] sm:$0x1]
        %v4638 = vlaneseq
        %v4639 = vshrl.u32 %v4638, 7
        %v4640 = vsub.s32 0, %v4639
        %v4641 = vrot.slane %v4636, %v4640
        %v4675 = vunpack.c.l.b16 %v4603
        %v4676 = vunpack.c.l.b16 %v4604
        %v4677 = vunpack.c.l.b16 %v4605
        %v4678 = vunpack.c.l.b16 %v4606
        %v4679 = vunpack.c.l.b16 %v4607
        %v4680 = vunpack.c.l.b16 %v4608
        %v4681 = vunpack.c.l.b16 %v4609
        %v4682 = vunpack.c.l.b16 %v4610
        %v4683 = vunpack.c.l.b16 %v4611
        %v4684 = vunpack.c.l.b16 %v4612
        %v4685 = vunpack.c.l.b16 %v4613
        %v4686 = vunpack.c.l.b16 %v4614
        %v4687 = vunpack.c.l.b16 %v4615
        %v4688 = vunpack.c.l.b16 %v4616
        %v4689 = vunpack.c.l.b16 %v4617
        %v4690 = vunpack.c.l.b16 %v4618
        %v4691 = vunpack.c.l.b16 %v4619
        %v4692 = vunpack.c.l.b16 %v4620
        %v4693 = vunpack.c.l.b16 %v4621
        %v4694 = vunpack.c.l.b16 %v4622
        %v4695 = vunpack.c.l.b16 %v4623
        %v4696 = vunpack.c.l.b16 %v4624
        %v4697 = vunpack.c.l.b16 %v4625
        %v4698 = vunpack.c.l.b16 %v4626
        %v4699 = vunpack.c.l.b16 %v4627
        %v4700 = vunpack.c.l.b16 %v4628
        %v4701 = vunpack.c.l.b16 %v4629
        %v4702 = vunpack.c.l.b16 %v4630
        %v4703 = vunpack.c.l.b16 %v4631
        %v4704 = vunpack.c.l.b16 %v4632
        %v4705 = vunpack.c.l.b16 %v4633
        %v4706 = vunpack.c.l.b16 %v4634
        %v4707 = vpack.c.b16 %v4676, %v4675
        %v4708 = vpack.c.b16 %v4678, %v4677
        %v4709 = vpack.c.b16 %v4680, %v4679
        %v4710 = vpack.c.b16 %v4682, %v4681
        %v4711 = vpack.c.b16 %v4684, %v4683
        %v4712 = vpack.c.b16 %v4686, %v4685
        %v4713 = vpack.c.b16 %v4688, %v4687
        %v4714 = vpack.c.b16 %v4690, %v4689
        %v4715 = vpack.c.b16 %v4692, %v4691
        %v4716 = vpack.c.b16 %v4694, %v4693
        %v4717 = vpack.c.b16 %v4696, %v4695
        %v4718 = vpack.c.b16 %v4698, %v4697
        %v4719 = vpack.c.b16 %v4700, %v4699
        %v4720 = vpack.c.b16 %v4702, %v4701
        %v4721 = vpack.c.b16 %v4704, %v4703
        %v4722 = vpack.c.b16 %v4706, %v4705
        %4739 = vmatprep.subr.bf16.mxu0 0
        %4740 = vmatpush1.bf16.msra.mxu0 %v4707
        %4741 = vmatprep.subr.bf16.mxu0 0
        %4742 = vmatpush1.bf16.msra.mxu0 %v4708
        %4743 = vmatprep.subr.bf16.mxu0 0
        %4744 = vmatpush1.bf16.msra.mxu0 %v4709
        %4745 = vmatprep.subr.bf16.mxu0 0
        %4746 = vmatpush1.bf16.msra.mxu0 %v4710
        %4747 = vmatprep.subr.bf16.mxu0 0
        %4748 = vmatpush1.bf16.msra.mxu0 %v4711
        %4749 = vmatprep.subr.bf16.mxu0 0
        %4750 = vmatpush1.bf16.msra.mxu0 %v4712
        %4751 = vmatprep.subr.bf16.mxu0 0
        %4752 = vmatpush1.bf16.msra.mxu0 %v4713
        %4753 = vmatprep.subr.bf16.mxu0 0
        %4754 = vmatpush1.bf16.msra.mxu0 %v4714
        %4755 = vmatprep.subr.bf16.mxu0 0
        %4756 = vmatpush1.bf16.msra.mxu0 %v4715
        %4757 = vmatprep.subr.bf16.mxu0 0
        %4758 = vmatpush1.bf16.msra.mxu0 %v4716
        %4759 = vmatprep.subr.bf16.mxu0 0
        %4760 = vmatpush1.bf16.msra.mxu0 %v4717
        %4761 = vmatprep.subr.bf16.mxu0 0
        %4762 = vmatpush1.bf16.msra.mxu0 %v4718
        %4763 = vmatprep.subr.bf16.mxu0 0
        %4764 = vmatpush1.bf16.msra.mxu0 %v4719
        %4765 = vmatprep.subr.bf16.mxu0 0
        %4766 = vmatpush1.bf16.msra.mxu0 %v4720
        %4767 = vmatprep.subr.bf16.mxu0 0
        %4768 = vmatpush1.bf16.msra.mxu0 %v4721
        %4769 = vmatprep.subr.bf16.mxu0 0
        %4770 = vmatpush1.bf16.msra.mxu0 %v4722
        %4771 = vmatprep.mubr.bf16.mxu0 %v4599
        %4772 = vmatmul.mubr.bf16.gmra.mrb[0].mxu0 %v4598
        %v4773 = vpop.f32.mrb[0].mxu0
        %v4774 = vadd.f32 %v4641, %v4773
        %v4775 = vpop.f32.mrb[0].mxu0
        %v4776 = vpop.f32.mrb[0].mxu0
        %v4777 = vadd.f32 %v4641, %v4776
        %v4778 = vpop.f32.mrb[0].mxu0
        %4779 = vmatprep.mubr.bf16.mxu0 %v4601
        %4780 = vmatmul.mubr.bf16.gmra.mrb[0].mxu0 %v4600
        %v4781 = vpop.f32.mrb[0].mxu0
        %v4782 = vadd.f32 %v4641, %v4781
        %v4783 = vpop.f32.mrb[0].mxu0
        %v4784 = vpop.f32.mrb[0].mxu0
        %v4785 = vadd.f32 %v4641, %v4784
        %v4786 = vpop.f32.mrb[0].mxu0
        %4787 = vdwg.mxu0
        %v4788 = vadd.f32 %v4289, %v4774
        %v4789 = vadd.f32 %v4290, %v4777
        %v4790 = vadd.f32 %v4291, %v4782
        %v4791 = vadd.f32 %v4292, %v4785
        %v4792 = vld [vmem:[%s15] sm:$0x1]
        %v4793 = vld [vmem:[%s16] sm:$0x1]
        %4794 = vadd.xlane.f32.xlu0 %v4788
        %v4795 = vpop.xlane.xlu0 %4794
        %4796 = vadd.xlane.f32.xlu0 %v4789
        %v4797 = vpop.xlane.xlu0 %4796
        %4798 = vadd.xlane.f32.xlu0 %v4790
        %v4799 = vpop.xlane.xlu0 %4798
        %4800 = vadd.xlane.f32.xlu0 %v4791
        %v4801 = vpop.xlane.xlu0 %4800
        %v4802 = vmul.f32 %v4795, %v769
        %v4803 = vmul.f32 %v4797, %v769
        %v4804 = vmul.f32 %v4799, %v769
        %v4805 = vmul.f32 %v4801, %v769
        %v4806 = vsub.f32 %v4788, %v4802
        %v4807 = vsub.f32 %v4789, %v4803
        %v4808 = vsub.f32 %v4790, %v4804
        %v4809 = vsub.f32 %v4791, %v4805
        %v4810 = vmul.f32 %v4806, %v4806
        %v4811 = vmul.f32 %v4807, %v4807
        %v4812 = vmul.f32 %v4808, %v4808
        %v4813 = vmul.f32 %v4809, %v4809
        %4814 = vadd.xlane.f32.xlu0 %v4810
        %v4815 = vpop.xlane.xlu0 %4814
        %4816 = vadd.xlane.f32.xlu0 %v4811
        %v4817 = vpop.xlane.xlu0 %4816
        %4818 = vadd.xlane.f32.xlu0 %v4812
        %v4819 = vpop.xlane.xlu0 %4818
        %4820 = vadd.xlane.f32.xlu0 %v4813
        %v4821 = vpop.xlane.xlu0 %4820
        %v4822 = vmul.f32 %v4815, %v769
        %v4823 = vmul.f32 %v4817, %v769
        %v4824 = vmul.f32 %v4819, %v769
        %v4825 = vmul.f32 %v4821, %v769
        %v4826 = vadd.f32 %v4822, 1e-06
        %v4827 = vadd.f32 %v4823, 1e-06
        %v4828 = vadd.f32 %v4824, 1e-06
        %v4829 = vadd.f32 %v4825, 1e-06
        %v4830 = vrsqrt.pop %v4826
        %v4831 = vrsqrt.pop %v4827
        %v4832 = vrsqrt.pop %v4828
        %v4833 = vrsqrt.pop %v4829
        %v4834 = vmul.f32 %v4806, %v4830
        %v4835 = vmul.f32 %v4807, %v4831
        %v4836 = vmul.f32 %v4808, %v4832
        %v4837 = vmul.f32 %v4809, %v4833
        %v4839 = vlaneseq
        %v4840 = vshrl.u32 %v4839, 7
        %v4841 = vsub.s32 0, %v4840
        %v4842 = vrot.slane %v4792, %v4841
        %v4844 = vmul.f32 %v4834, %v4842
        %v4845 = vmul.f32 %v4835, %v4842
        %v4846 = vmul.f32 %v4836, %v4842
        %v4847 = vmul.f32 %v4837, %v4842
        %v4849 = vlaneseq
        %v4850 = vshrl.u32 %v4849, 7
        %v4851 = vsub.s32 0, %v4850
        %v4852 = vrot.slane %v4793, %v4851
        %v4854 = vadd.f32 %v4844, %v4852
        %v4855 = vadd.f32 %v4845, %v4852
        %v4856 = vadd.f32 %v4846, %v4852
        %v4857 = vadd.f32 %v4847, %v4852
        %4858 = vst [vmem:[%s544] sm:$0xff] %v4854
        %4859 = vst [vmem:[%s544 + $0x8] sm:$0xff] %v4855
        %4860 = vst [vmem:[%s544 + $0x10] sm:$0xff] %v4856
        %4861 = vst [vmem:[%s544 + $0x18] sm:$0xff] %v4857
        %s4862 = sand.u32 %s401, 1
        %s4863 = scalar_lea.sflag [#allocation3], %s4862
        %s4864 = sand.u32 %s401, 1
        %s4865 = smul.addr %s4864, 32
        %s4866 = scalar_lea.vmem [#allocation2], %s4865
        // Predicated region
        $region89: #{siglip_vision_forward.1} parent=87 // pred_check
          %p4867 = pneg %p411
        $region90: #{siglip_vision_forward.1} parent=87 // pred_check_branch
          %4869 = sbr.rel (%p4867) target = $region92
        $region91: #{siglip_vision_forward.1} parent=87 // pred_region
          %s4870 = smul.u32 4, %s31
          %s4872 = ssub.s32 512, 512
          %4873 = vsyncadd %s4863, %s4872
          %s4874 = smul.addr %s4870, 128
          %s4875 = scalar_lea.hbm %s17, %s4874
          %s4876 = sshll.u32 %s4866, 4
          %s4877 = int_to_ptr.vmem [resolvable:$true] %s4876
          %4882 = dma.vmem_to_hbm [thread:$0]  %s4877, 512, %s4875, %s4863, 128, 128, 8
        $region92: #{siglip_vision_forward.1} parent=87 // pred_fallthru
          _
      $region88: #{siglip_vision_forward.1} parent=5 // pred_fallthru
        _
      %p4883 = scmp.le.s32.totalorder 2, %s26
      // Predicated region
      $region93: #{siglip_vision_forward.1} parent=5 // pred_check
        %p4884 = pneg %p4883
      $region94: #{siglip_vision_forward.1} parent=5 // pred_check_branch
        %4886 = sbr.rel (%p4884) target = $region96
      $region95: #{siglip_vision_forward.1} parent=5 // pred_region
        %s4887 = ssub.s32 %s26, 2
        // Predicated region
        $region97: #{siglip_vision_forward.1} parent=95 // pred_check
          %p4888 = pneg %p417
        $region98: #{siglip_vision_forward.1} parent=95 // pred_check_branch
          %4890 = sbr.rel (%p4888) target = $region100
        $region99: #{siglip_vision_forward.1} parent=95 // pred_region
          %s4891 = sand.u32 %s402, 1
          %s4892 = scalar_lea.sflag [#allocation3], %s4891
          %s4893 = sand.u32 %s402, 1
          %s4894 = smul.addr %s4893, 32
          %s4895 = scalar_lea.vmem [#allocation2], %s4894
          %4896 = dma.done %s4892, 512
        $region100: #{siglip_vision_forward.1} parent=95 // pred_fallthru
          _
      $region96: #{siglip_vision_forward.1} parent=5 // pred_fallthru
        _
    $region6: #{siglip_vision_forward.1} parent=1 // loop_footer
      %s30 = sadd.s32 1, %s26
    $region7: #{siglip_vision_forward.1} parent=1 // loop_footer_branch
      %25 = sbr.rel target = $region3
    $region8: #{siglip_vision_forward.1} parent=1 // loop_exit
      _
    %4897 = vsyncpa [#allocation3], 1
    %s4898 = scalar_lea.sflag [#allocation3], 1
    %4899 = vsyncpa %s4898, 1

</llo_original>
